<compile_context>
chip_gen: v6e
topology: v6e:2x2x1
jax: 0.10.0
libtpu: 0.0.40
codegen_flags: <defaults>
</compile_context>

<pallas_src>
import math

import jax
import jax.numpy as jnp
from jax import lax
from jax.experimental import pallas as pl
from jax.experimental.pallas import tpu as pltpu


# ------------------------------------------------------------------ configs --
class MODEL_CONFIGS:
    HGT_N_HID = 32
    HGT_N_OUT = 32
    HGT_N_LAYERS = 2
    HGT_N_HEADS = 2
    HGT_DROPOUT = 0.0          # eval mode
    HGT_USE_NORM = True
    OUTPUT_EMBED_SIZE = 16
    N_CLASS = 4


def _vmem():
    return pl.BlockSpec(memory_space=pltpu.MemorySpace.VMEM)


def _smem():
    return pl.BlockSpec(memory_space=pltpu.MemorySpace.SMEM)


# ----------------------------------------------------------- fused kernel ----
def make_fused_kernel(n_layers, n_heads, d_head, n_hid):
    neg_inf = -1e30
    n_layer_args = 10

    def kernel(*refs):
        it = iter(refs)

        def nxt():
            return next(it)

        xt_ref = nxt(); xu_ref = nxt()
        a_u2t_ref = nxt(); a_t2u_ref = nxt(); a_u2u_ref = nxt()
        sel_ref = nxt()
        awt_ref = nxt(); abt_ref = nxt(); awu_ref = nxt(); abu_ref = nxt()
        layer_refs = [tuple(nxt() for _ in range(n_layer_args))
                      for _ in range(n_layers)]
        how_ref = nxt(); hob_ref = nxt()
        hlw_ref = nxt(); hlb_ref = nxt()
        ow_ref = nxt(); ob_ref = nxt()
        alphas_ref = nxt()                      # SMEM, shape (2 * n_layers,)
        out_ref = nxt(); uemb_ref = nxt()

        def linear(x, w_ref, b_ref):
            return jnp.dot(x, w_ref[...],
                           preferred_element_type=jnp.float32) + b_ref[...]

        def layer_norm(x, g_ref, b_ref):
            mu = jnp.mean(x, axis=1, keepdims=True)
            var = jnp.mean((x - mu) ** 2, axis=1, keepdims=True)
            return (x - mu) * lax.rsqrt(var + 1e-5) * g_ref[...] + b_ref[...]

        def rel_trans(q, k_eff, v_pre, mask):
            """sum_h softmax_mask(q_h @ k_eff_h^T) @ v_pre_h.

            att*pri*scale is pre-folded into k_eff; msg@Wa (the destination
            A-linear) is pre-folded into v_pre (per-head blocks of width
            n_hid), so each head is one MXU q.k^T, a masked softmax and one
            MXU attn@v — no lane concat, no post-hoc Wa matmul."""
            acc = None
            for hh in range(n_heads):
                qh = q[:, hh * d_head:(hh + 1) * d_head]
                kh = k_eff[:, hh * d_head:(hh + 1) * d_head]
                vh = v_pre[:, hh * n_hid:(hh + 1) * n_hid]
                # q_h @ k_h^T without an explicit transpose
                score = lax.dot_general(
                    qh, kh, (((1,), (1,)), ((), ())),
                    preferred_element_type=jnp.float32)          # [Nd, Ns]
                score = jnp.where(mask > 0, score, neg_inf)
                score = score - jnp.max(score, axis=1, keepdims=True)
                p = jnp.exp(score)
                denom = jnp.maximum(jnp.sum(p, axis=1, keepdims=True), 1e-20)
                attn = p / denom
                contrib = jnp.dot(attn, vh,
                                  preferred_element_type=jnp.float32)
                acc = contrib if acc is None else acc + contrib
            return acc

        # ---- input adaptation (adapt_ws + gelu) ----
        h_t = jax.nn.gelu(linear(xt_ref[...], awt_ref, abt_ref),
                          approximate=True)
        h_u = jax.nn.gelu(linear(xu_ref[...], awu_ref, abu_ref),
                          approximate=True)

        a_u2t = a_u2t_ref[...]
        a_t2u = a_t2u_ref[...]
        a_u2u = a_u2u_ref[...]

        # ---- HGT layers (weights & activations stay in VMEM) ----
        for li, (wpt, bpt, wpu, bpu, bat, bau,
                 lngt, lnbt, lngu, lnbu) in enumerate(layer_refs):
            # one lane-dense projection matmul per node type
            proj_t = linear(h_t, wpt, bpt)   # [Nt, 4*n_hid]  (q|k_wn|v_wn*H)
            proj_u = linear(h_u, wpu, bpu)   # [Nu, 7*n_hid]

            q_t = proj_t[:, 0:n_hid]
            k_wn = proj_t[:, n_hid:2 * n_hid]
            v_wn = proj_t[:, 2 * n_hid:(2 + n_heads) * n_hid]

            q_u = proj_u[:, 0:n_hid]
            o = n_hid
            k_wr = proj_u[:, o:o + n_hid]; o += n_hid
            v_wr = proj_u[:, o:o + n_heads * n_hid]; o += n_heads * n_hid
            k_fo = proj_u[:, o:o + n_hid]; o += n_hid
            v_fo = proj_u[:, o:o + n_heads * n_hid]

            # relation 'write' : user -> tweet
            trans_t = rel_trans(q_t, k_wr, v_wr, a_u2t) + bat[...]
            # relations 'written' (tweet->user) + 'follow' (user->user),
            # cross_reducer = 'mean'
            acc_u = (rel_trans(q_u, k_wn, v_wn, a_t2u)
                     + rel_trans(q_u, k_fo, v_fo, a_u2u))
            trans_u = 0.5 * acc_u + bau[...]

            alpha_t = alphas_ref[2 * li]       # sigmoid(skip), host-computed
            alpha_u = alphas_ref[2 * li + 1]
            h_t = layer_norm(trans_t * alpha_t + h_t * (1.0 - alpha_t),
                             lngt, lnbt)
            h_u = layer_norm(trans_u * alpha_u + h_u * (1.0 - alpha_u),
                             lngu, lnbu)

        # ---- HGT output projection, gather (one-hot matmul) and head ----
        uemb_ref[...] = h_u
        hgt_sampled = linear(h_t, how_ref, hob_ref)               # [Nt, n_out]
        gathered = jnp.dot(sel_ref[...], hgt_sampled,
                           preferred_element_type=jnp.float32)    # [n_sel, n_out]
        hid = jnp.maximum(linear(gathered, hlw_ref, hlb_ref), 0.0)
        logits = linear(hid, ow_ref, ob_ref)
        m = jnp.max(logits, axis=1, keepdims=True)
        lse = m + jnp.log(jnp.sum(jnp.exp(logits - m), axis=1, keepdims=True))
        out_ref[...] = logits - lse

    return kernel


# --------------------------------------------------------------- param setup --
def xavier_normal(key, fan_in, fan_out):
    std = math.sqrt(2.0 / (fan_in + fan_out))
    return jax.random.normal(key, (fan_in, fan_out), jnp.float32) * std


def init_params(key, n_inp_dict, ntypes, relations):
    cfg = MODEL_CONFIGS
    n_hid, n_out, H = cfg.HGT_N_HID, cfg.HGT_N_OUT, cfg.HGT_N_HEADS
    d = n_hid // H
    keys = iter(jax.random.split(key, 512))
    p = {}

    p["adapt"] = {}
    for nt in ntypes:
        p["adapt"][nt] = {
            "w": xavier_normal(next(keys), n_inp_dict[nt], n_hid),
            "b": jnp.zeros((1, n_hid), jnp.float32),
        }

    p["layers"] = []
    for _ in range(cfg.HGT_N_LAYERS):
        layer = {"ntype": {}, "rel": {}}
        for nt in ntypes:
            layer["ntype"][nt] = {
                "wk": xavier_normal(next(keys), n_hid, n_hid),
                "bk": jnp.zeros((1, n_hid), jnp.float32),
                "wq": xavier_normal(next(keys), n_hid, n_hid),
                "bq": jnp.zeros((1, n_hid), jnp.float32),
                "wv": xavier_normal(next(keys), n_hid, n_hid),
                "bv": jnp.zeros((1, n_hid), jnp.float32),
                "wa": xavier_normal(next(keys), n_hid, n_hid),
                "ba": jnp.zeros((1, n_hid), jnp.float32),
                "skip": jnp.ones((1,), jnp.float32),
                "ln_g": jnp.ones((1, n_hid), jnp.float32),
                "ln_b": jnp.zeros((1, n_hid), jnp.float32),
            }
        for rel in relations:
            layer["rel"][rel] = {
                "att": jax.random.normal(next(keys), (H, d, d), jnp.float32)
                       * math.sqrt(1.0 / d),
                "msg": jax.random.normal(next(keys), (H, d, d), jnp.float32)
                       * math.sqrt(1.0 / d),
                "pri": jnp.ones((H,), jnp.float32),
            }
        p["layers"].append(layer)

    p["hgt_out"] = {"w": xavier_normal(next(keys), n_hid, n_out),
                    "b": jnp.zeros((1, n_out), jnp.float32)}
    p["hgt_linear"] = {"w": xavier_normal(next(keys), n_out,
                                          cfg.OUTPUT_EMBED_SIZE),
                       "b": jnp.zeros((1, cfg.OUTPUT_EMBED_SIZE), jnp.float32)}
    p["out"] = {"w": xavier_normal(next(keys), cfg.OUTPUT_EMBED_SIZE,
                                   cfg.N_CLASS),
                "b": jnp.zeros((1, cfg.N_CLASS), jnp.float32)}
    return p


def _block_diag_heads(mats):
    """[H, d, d] -> [H*d, H*d] block diagonal."""
    return jax.scipy.linalg.block_diag(*[mats[h] for h in range(mats.shape[0])])


# ----------------------------------------------------------------- forward ---
@jax.jit
def rtcs_hgt_forward_fused(params, x_tweet, x_user,
                           adj_u2t, adj_t2u, adj_u2u, sel):
    """Fused RTCS_HGT forward.  Node types {'tweet','user'}; relations
    user->tweet ('write'), tweet->user ('written'), user->user ('follow').
    Returns (log_softmax head output over selected tweet nodes, user_embed)."""
    cfg = MODEL_CONFIGS
    H, n_hid = cfg.HGT_N_HEADS, cfg.HGT_N_HID
    d = n_hid // H
    scale = 1.0 / math.sqrt(d)

    flat, specs = [], []

    def add_v(x):
        flat.append(x); specs.append(_vmem())

    def add_s(x):
        flat.append(x); specs.append(_smem())

    add_v(x_tweet); add_v(x_user)
    add_v(adj_u2t); add_v(adj_t2u); add_v(adj_u2u)
    add_v(sel)
    add_v(params["adapt"]["tweet"]["w"]); add_v(params["adapt"]["tweet"]["b"])
    add_v(params["adapt"]["user"]["w"]); add_v(params["adapt"]["user"]["b"])

    alphas = []
    for layer in params["layers"]:
        nt, rel = layer["ntype"], layer["rel"]

        def fold_k(src, r):
            # att * pri * scale folded into K projection (per-head block diag)
            bd = _block_diag_heads(
                rel[r]["att"] * (rel[r]["pri"] * scale)[:, None, None])
            return nt[src]["wk"] @ bd, nt[src]["bk"] @ bd

        def fold_v(src, r, wa_dst):
            # per-head: wv[:,h-block] @ msg[h] @ Wa[h-block,:]  -> [n_hid,n_hid]
            ws, bs = [], []
            for h in range(H):
                sl = slice(h * d, (h + 1) * d)
                m = rel[r]["msg"][h] @ wa_dst[sl, :]
                ws.append(nt[src]["wv"][:, sl] @ m)
                bs.append(nt[src]["bv"][:, sl] @ m)
            return jnp.concatenate(ws, axis=1), jnp.concatenate(bs, axis=1)

        wa_t, wa_u = nt["tweet"]["wa"], nt["user"]["wa"]
        wk_wr, bk_wr = fold_k("user", "write")       # user  -> tweet
        wv_wr, bv_wr = fold_v("user", "write", wa_t)
        wk_wn, bk_wn = fold_k("tweet", "written")    # tweet -> user
        wv_wn, bv_wn = fold_v("tweet", "written", wa_u)
        wk_fo, bk_fo = fold_k("user", "follow")      # user  -> user
        wv_fo, bv_fo = fold_v("user", "follow", wa_u)

        # [32, 128] (lane-dense) and [32, 224]
        w_proj_t = jnp.concatenate([nt["tweet"]["wq"], wk_wn, wv_wn], axis=1)
        b_proj_t = jnp.concatenate([nt["tweet"]["bq"], bk_wn, bv_wn], axis=1)
        w_proj_u = jnp.concatenate(
            [nt["user"]["wq"], wk_wr, wv_wr, wk_fo, wv_fo], axis=1)
        b_proj_u = jnp.concatenate(
            [nt["user"]["bq"], bk_wr, bv_wr, bk_fo, bv_fo], axis=1)

        add_v(w_proj_t); add_v(b_proj_t); add_v(w_proj_u); add_v(b_proj_u)
        add_v(nt["tweet"]["ba"]); add_v(nt["user"]["ba"])
        add_v(nt["tweet"]["ln_g"]); add_v(nt["tweet"]["ln_b"])
        add_v(nt["user"]["ln_g"]); add_v(nt["user"]["ln_b"])

        alphas.append(jax.nn.sigmoid(nt["tweet"]["skip"][0]))
        alphas.append(jax.nn.sigmoid(nt["user"]["skip"][0]))

    add_v(params["hgt_out"]["w"]); add_v(params["hgt_out"]["b"])
    add_v(params["hgt_linear"]["w"]); add_v(params["hgt_linear"]["b"])
    add_v(params["out"]["w"]); add_v(params["out"]["b"])
    add_s(jnp.stack(alphas).astype(jnp.float32))     # SMEM scalars

    n_sel = sel.shape[0]
    kernel = make_fused_kernel(cfg.HGT_N_LAYERS, H, d, n_hid)
    out_shapes = (
        jax.ShapeDtypeStruct((n_sel, cfg.N_CLASS), jnp.float32),
        jax.ShapeDtypeStruct((x_user.shape[0], n_hid), jnp.float32),
    )
    output, user_embed = pl.pallas_call(
        kernel,
        out_shape=out_shapes,
        in_specs=specs,
        out_specs=(_vmem(), _vmem()),
    )(*flat)
    return output, user_embed


# ------------------------------------------------ pure-JAX reference (check) --
def reference_forward(params, x_tweet, x_user, adj_u2t, adj_t2u, adj_u2u,
                      gather_idx):
    cfg = MODEL_CONFIGS
    H, n_hid = cfg.HGT_N_HEADS, cfg.HGT_N_HID
    d = n_hid // H
    scale = 1.0 / math.sqrt(d)
    PH = lax.Precision.HIGHEST

    def dot(a, b):
        return jnp.dot(a, b, precision=PH)

    def lin(x, w, b):
        return dot(x, w) + b

    h = {
        "tweet": jax.nn.gelu(lin(x_tweet, params["adapt"]["tweet"]["w"],
                                 params["adapt"]["tweet"]["b"]),
                             approximate=True),
        "user": jax.nn.gelu(lin(x_user, params["adapt"]["user"]["w"],
                                params["adapt"]["user"]["b"]),
                            approximate=True),
    }
    for layer in params["layers"]:
        nt, rl = layer["ntype"], layer["rel"]

        def relation(src, dst, adj, r):
            s, dd, rr = nt[src], nt[dst], rl[r]
            k = lin(h[src], s["wk"], s["bk"])
            q = lin(h[dst], dd["wq"], dd["bq"])
            v = lin(h[src], s["wv"], s["bv"])
            outs = []
            for hh in range(H):
                sl = slice(hh * d, (hh + 1) * d)
                kt = dot(k[:, sl], rr["att"][hh])
                vt = dot(v[:, sl], rr["msg"][hh])
                sc = dot(q[:, sl], kt.T) * (rr["pri"][hh] * scale)
                sc = jnp.where(adj > 0, sc, -1e30)
                sc = sc - jnp.max(sc, axis=1, keepdims=True)
                p = jnp.exp(sc)
                attn = p / jnp.maximum(jnp.sum(p, axis=1, keepdims=True), 1e-20)
                outs.append(dot(attn, vt))
            return jnp.concatenate(outs, axis=1)

        msg_t = relation("user", "tweet", adj_u2t, "write")
        msg_u = 0.5 * (relation("tweet", "user", adj_t2u, "written")
                       + relation("user", "user", adj_u2u, "follow"))

        def upd(msg, hold, p):
            trans = lin(msg, p["wa"], p["ba"])
            alpha = jax.nn.sigmoid(p["skip"][0])
            out = trans * alpha + hold * (1.0 - alpha)
            mu = out.mean(axis=1, keepdims=True)
            var = ((out - mu) ** 2).mean(axis=1, keepdims=True)
            return (out - mu) * lax.rsqrt(var + 1e-5) * p["ln_g"] + p["ln_b"]

        h = {"tweet": upd(msg_t, h["tweet"], nt["tweet"]),
             "user": upd(msg_u, h["user"], nt["user"])}

    hgt_sampled = lin(h["tweet"], params["hgt_out"]["w"], params["hgt_out"]["b"])
    gathered = jnp.take(hgt_sampled, gather_idx, axis=0)
    hid = jnp.maximum(lin(gathered, params["hgt_linear"]["w"],
                          params["hgt_linear"]["b"]), 0.0)
    logits = lin(hid, params["out"]["w"], params["out"]["b"])
    return jax.nn.log_softmax(logits, axis=1), h["user"]


# --------------------------------------------------------------------- main --
if __name__ == "__main__":
    key = jax.random.PRNGKey(0)
    k_param, k_xt, k_xu = jax.random.split(key, 3)

    N_TWEET, N_USER = 16, 12
    n_inp_dict = {"tweet": 24, "user": 20}
    ntypes = ("tweet", "user")
    relations = ("write", "written", "follow")

    params = init_params(k_param, n_inp_dict, ntypes, relations)

    x_tweet = jax.random.normal(k_xt, (N_TWEET, n_inp_dict["tweet"]),
                                jnp.float32)
    x_user = jax.random.normal(k_xu, (N_USER, n_inp_dict["user"]),
                               jnp.float32)

    # deterministic dense adjacency masks (dst x src), every dst has >=1 src
    ti = jnp.arange(N_TWEET)[:, None]
    uj = jnp.arange(N_USER)[None, :]
    adj_u2t = ((ti + uj) % 3 == 0).astype(jnp.float32)        # [N_TWEET, N_USER]
    adj_t2u = adj_u2t.T                                        # [N_USER, N_TWEET]
    ui = jnp.arange(N_USER)[:, None]
    adj_u2u = (((2 * ui + uj) % 4 == 0) | (ui == uj)).astype(jnp.float32)

    sg_nodes = list(range(N_TWEET))
    output_nodes = [3, 0, 7, 5, 12, 9]
    node2row = {int(n): i for i, n in enumerate(sg_nodes)}
    gather_idx = jnp.asarray([node2row[int(n)] for n in output_nodes],
                             dtype=jnp.int32)
    # one-hot gather matrix so the row gather rides the MXU inside the kernel
    sel = jax.nn.one_hot(gather_idx, num_classes=len(sg_nodes),
                         dtype=jnp.float32)                    # [6, N_TWEET]

    output, user_embed = rtcs_hgt_forward_fused(
        params, x_tweet, x_user, adj_u2t, adj_t2u, adj_u2u, sel)
    jax.block_until_ready(output)
    jax.block_until_ready(user_embed)

    assert output.shape == (len(output_nodes), MODEL_CONFIGS.N_CLASS)
    assert user_embed.shape == (N_USER, MODEL_CONFIGS.HGT_N_HID)
    # log_softmax rows exponentiate-and-sum to 1
    assert jnp.allclose(jnp.exp(output).sum(axis=1), 1.0, atol=1e-4)

    # verify weight-folding / fusion against a pure-JAX reference
    ref_out, ref_uemb = reference_forward(
        params, x_tweet, x_user, adj_u2t, adj_t2u, adj_u2u, gather_idx)
    assert jnp.allclose(output, ref_out, atol=2e-3, rtol=2e-3), \
        float(jnp.max(jnp.abs(output - ref_out)))
    assert jnp.allclose(user_embed, ref_uemb, atol=2e-3, rtol=2e-3), \
        float(jnp.max(jnp.abs(user_embed - ref_uemb)))

    print("KERNEL_OK")
</pallas_src>

<mosaic_0001>
module attributes {stable_mosaic.version = 11 : i64} {
  func.func @kernel(%arg0: memref<16x24xf32, #tpu.memory_space<vmem>>, %arg1: memref<12x20xf32, #tpu.memory_space<vmem>>, %arg2: memref<16x12xf32, #tpu.memory_space<vmem>>, %arg3: memref<12x16xf32, #tpu.memory_space<vmem>>, %arg4: memref<12x12xf32, #tpu.memory_space<vmem>>, %arg5: memref<6x16xf32, #tpu.memory_space<vmem>>, %arg6: memref<24x32xf32, #tpu.memory_space<vmem>>, %arg7: memref<1x32xf32, #tpu.memory_space<vmem>>, %arg8: memref<20x32xf32, #tpu.memory_space<vmem>>, %arg9: memref<1x32xf32, #tpu.memory_space<vmem>>, %arg10: memref<32x128xf32, #tpu.memory_space<vmem>>, %arg11: memref<1x128xf32, #tpu.memory_space<vmem>>, %arg12: memref<32x224xf32, #tpu.memory_space<vmem>>, %arg13: memref<1x224xf32, #tpu.memory_space<vmem>>, %arg14: memref<1x32xf32, #tpu.memory_space<vmem>>, %arg15: memref<1x32xf32, #tpu.memory_space<vmem>>, %arg16: memref<1x32xf32, #tpu.memory_space<vmem>>, %arg17: memref<1x32xf32, #tpu.memory_space<vmem>>, %arg18: memref<1x32xf32, #tpu.memory_space<vmem>>, %arg19: memref<1x32xf32, #tpu.memory_space<vmem>>, %arg20: memref<32x128xf32, #tpu.memory_space<vmem>>, %arg21: memref<1x128xf32, #tpu.memory_space<vmem>>, %arg22: memref<32x224xf32, #tpu.memory_space<vmem>>, %arg23: memref<1x224xf32, #tpu.memory_space<vmem>>, %arg24: memref<1x32xf32, #tpu.memory_space<vmem>>, %arg25: memref<1x32xf32, #tpu.memory_space<vmem>>, %arg26: memref<1x32xf32, #tpu.memory_space<vmem>>, %arg27: memref<1x32xf32, #tpu.memory_space<vmem>>, %arg28: memref<1x32xf32, #tpu.memory_space<vmem>>, %arg29: memref<1x32xf32, #tpu.memory_space<vmem>>, %arg30: memref<32x32xf32, #tpu.memory_space<vmem>>, %arg31: memref<1x32xf32, #tpu.memory_space<vmem>>, %arg32: memref<32x16xf32, #tpu.memory_space<vmem>>, %arg33: memref<1x16xf32, #tpu.memory_space<vmem>>, %arg34: memref<16x4xf32, #tpu.memory_space<vmem>>, %arg35: memref<1x4xf32, #tpu.memory_space<vmem>>, %arg36: memref<4xf32, #tpu.memory_space<smem>>, %arg37: memref<6x4xf32, #tpu.memory_space<vmem>>, %arg38: memref<12x32xf32, #tpu.memory_space<vmem>>) attributes {dimension_semantics = [], scalar_prefetch = 0 : i64, scratch_operands = 0 : i64, tpu.core_type = #tpu.core_type<tc>} {
    %c0 = arith.constant 0 : index
    %c0_0 = arith.constant 0 : index
    %0 = vector.load %arg0[%c0, %c0_0] : memref<16x24xf32, #tpu.memory_space<vmem>>, vector<16x24xf32>
    %c0_1 = arith.constant 0 : index
    %c0_2 = arith.constant 0 : index
    %1 = vector.load %arg6[%c0_1, %c0_2] : memref<24x32xf32, #tpu.memory_space<vmem>>, vector<24x32xf32>
    %cst = arith.constant dense<0.000000e+00> : vector<16x32xf32>
    %2 = tpu.matmul %0, %1, %cst {dimension_numbers = #tpu.dot_dimension_numbers<[1], [0], [0], [1], [0, 0, 1, 1], [], []>} : vector<16x24xf32>, vector<24x32xf32>, vector<16x32xf32> -> vector<16x32xf32>
    %c0_3 = arith.constant 0 : index
    %c0_4 = arith.constant 0 : index
    %3 = vector.load %arg7[%c0_3, %c0_4] : memref<1x32xf32, #tpu.memory_space<vmem>>, vector<1x32xf32>
    %4 = vector.broadcast %3 : vector<1x32xf32> to vector<16x32xf32>
    %5 = arith.addf %2, %4 : vector<16x32xf32>
    %6 = arith.mulf %5, %5 : vector<16x32xf32>
    %7 = arith.mulf %5, %6 : vector<16x32xf32>
    %cst_5 = arith.constant 4.471500e-02 : f32
    %8 = vector.broadcast %cst_5 : f32 to vector<16x32xf32>
    %9 = arith.mulf %8, %7 : vector<16x32xf32>
    %10 = arith.addf %5, %9 : vector<16x32xf32>
    %cst_6 = arith.constant 0.797884583 : f32
    %11 = vector.broadcast %cst_6 : f32 to vector<16x32xf32>
    %12 = arith.mulf %11, %10 : vector<16x32xf32>
    %13 = math.tanh %12 : vector<16x32xf32>
    %cst_7 = arith.constant 1.000000e+00 : f32
    %14 = vector.broadcast %cst_7 : f32 to vector<16x32xf32>
    %15 = arith.addf %14, %13 : vector<16x32xf32>
    %cst_8 = arith.constant 5.000000e-01 : f32
    %16 = vector.broadcast %cst_8 : f32 to vector<16x32xf32>
    %17 = arith.mulf %16, %15 : vector<16x32xf32>
    %18 = arith.mulf %5, %17 : vector<16x32xf32>
    %c0_9 = arith.constant 0 : index
    %c0_10 = arith.constant 0 : index
    %19 = vector.load %arg1[%c0_9, %c0_10] : memref<12x20xf32, #tpu.memory_space<vmem>>, vector<12x20xf32>
    %c0_11 = arith.constant 0 : index
    %c0_12 = arith.constant 0 : index
    %20 = vector.load %arg8[%c0_11, %c0_12] : memref<20x32xf32, #tpu.memory_space<vmem>>, vector<20x32xf32>
    %cst_13 = arith.constant dense<0.000000e+00> : vector<12x32xf32>
    %21 = tpu.matmul %19, %20, %cst_13 {dimension_numbers = #tpu.dot_dimension_numbers<[1], [0], [0], [1], [0, 0, 1, 1], [], []>} : vector<12x20xf32>, vector<20x32xf32>, vector<12x32xf32> -> vector<12x32xf32>
    %c0_14 = arith.constant 0 : index
    %c0_15 = arith.constant 0 : index
    %22 = vector.load %arg9[%c0_14, %c0_15] : memref<1x32xf32, #tpu.memory_space<vmem>>, vector<1x32xf32>
    %23 = vector.broadcast %22 : vector<1x32xf32> to vector<12x32xf32>
    %24 = arith.addf %21, %23 : vector<12x32xf32>
    %25 = arith.mulf %24, %24 : vector<12x32xf32>
    %26 = arith.mulf %24, %25 : vector<12x32xf32>
    %cst_16 = arith.constant 4.471500e-02 : f32
    %27 = vector.broadcast %cst_16 : f32 to vector<12x32xf32>
    %28 = arith.mulf %27, %26 : vector<12x32xf32>
    %29 = arith.addf %24, %28 : vector<12x32xf32>
    %cst_17 = arith.constant 0.797884583 : f32
    %30 = vector.broadcast %cst_17 : f32 to vector<12x32xf32>
    %31 = arith.mulf %30, %29 : vector<12x32xf32>
    %32 = math.tanh %31 : vector<12x32xf32>
    %cst_18 = arith.constant 1.000000e+00 : f32
    %33 = vector.broadcast %cst_18 : f32 to vector<12x32xf32>
    %34 = arith.addf %33, %32 : vector<12x32xf32>
    %cst_19 = arith.constant 5.000000e-01 : f32
    %35 = vector.broadcast %cst_19 : f32 to vector<12x32xf32>
    %36 = arith.mulf %35, %34 : vector<12x32xf32>
    %37 = arith.mulf %24, %36 : vector<12x32xf32>
    %c0_20 = arith.constant 0 : index
    %c0_21 = arith.constant 0 : index
    %38 = vector.load %arg2[%c0_20, %c0_21] : memref<16x12xf32, #tpu.memory_space<vmem>>, vector<16x12xf32>
    %c0_22 = arith.constant 0 : index
    %c0_23 = arith.constant 0 : index
    %39 = vector.load %arg3[%c0_22, %c0_23] : memref<12x16xf32, #tpu.memory_space<vmem>>, vector<12x16xf32>
    %c0_24 = arith.constant 0 : index
    %c0_25 = arith.constant 0 : index
    %40 = vector.load %arg4[%c0_24, %c0_25] : memref<12x12xf32, #tpu.memory_space<vmem>>, vector<12x12xf32>
    %c0_26 = arith.constant 0 : index
    %c0_27 = arith.constant 0 : index
    %41 = vector.load %arg10[%c0_26, %c0_27] : memref<32x128xf32, #tpu.memory_space<vmem>>, vector<32x128xf32>
    %cst_28 = arith.constant dense<0.000000e+00> : vector<16x128xf32>
    %42 = tpu.matmul %18, %41, %cst_28 {dimension_numbers = #tpu.dot_dimension_numbers<[1], [0], [0], [1], [0, 0, 1, 1], [], []>} : vector<16x32xf32>, vector<32x128xf32>, vector<16x128xf32> -> vector<16x128xf32>
    %c0_29 = arith.constant 0 : index
    %c0_30 = arith.constant 0 : index
    %43 = vector.load %arg11[%c0_29, %c0_30] : memref<1x128xf32, #tpu.memory_space<vmem>>, vector<1x128xf32>
    %44 = vector.broadcast %43 : vector<1x128xf32> to vector<16x128xf32>
    %45 = arith.addf %42, %44 : vector<16x128xf32>
    %c0_31 = arith.constant 0 : index
    %c0_32 = arith.constant 0 : index
    %46 = vector.load %arg12[%c0_31, %c0_32] : memref<32x224xf32, #tpu.memory_space<vmem>>, vector<32x224xf32>
    %cst_33 = arith.constant dense<0.000000e+00> : vector<12x224xf32>
    %47 = tpu.matmul %37, %46, %cst_33 {dimension_numbers = #tpu.dot_dimension_numbers<[1], [0], [0], [1], [0, 0, 1, 1], [], []>} : vector<12x32xf32>, vector<32x224xf32>, vector<12x224xf32> -> vector<12x224xf32>
    %c0_34 = arith.constant 0 : index
    %c0_35 = arith.constant 0 : index
    %48 = vector.load %arg13[%c0_34, %c0_35] : memref<1x224xf32, #tpu.memory_space<vmem>>, vector<1x224xf32>
    %49 = vector.broadcast %48 : vector<1x224xf32> to vector<12x224xf32>
    %50 = arith.addf %47, %49 : vector<12x224xf32>
    %51 = vector.extract_strided_slice %45 {offsets = [0, 0], sizes = [16, 32], strides = [1, 1]} : vector<16x128xf32> to vector<16x32xf32>
    %52 = vector.extract_strided_slice %45 {offsets = [0, 32], sizes = [16, 32], strides = [1, 1]} : vector<16x128xf32> to vector<16x32xf32>
    %53 = vector.extract_strided_slice %45 {offsets = [0, 64], sizes = [16, 64], strides = [1, 1]} : vector<16x128xf32> to vector<16x64xf32>
    %54 = vector.extract_strided_slice %50 {offsets = [0, 0], sizes = [12, 32], strides = [1, 1]} : vector<12x224xf32> to vector<12x32xf32>
    %55 = vector.extract_strided_slice %50 {offsets = [0, 32], sizes = [12, 32], strides = [1, 1]} : vector<12x224xf32> to vector<12x32xf32>
    %56 = vector.extract_strided_slice %50 {offsets = [0, 64], sizes = [12, 64], strides = [1, 1]} : vector<12x224xf32> to vector<12x64xf32>
    %57 = vector.extract_strided_slice %50 {offsets = [0, 128], sizes = [12, 32], strides = [1, 1]} : vector<12x224xf32> to vector<12x32xf32>
    %58 = vector.extract_strided_slice %50 {offsets = [0, 160], sizes = [12, 64], strides = [1, 1]} : vector<12x224xf32> to vector<12x64xf32>
    %59 = vector.extract_strided_slice %51 {offsets = [0, 0], sizes = [16, 16], strides = [1, 1]} : vector<16x32xf32> to vector<16x16xf32>
    %60 = vector.extract_strided_slice %55 {offsets = [0, 0], sizes = [12, 16], strides = [1, 1]} : vector<12x32xf32> to vector<12x16xf32>
    %61 = vector.extract_strided_slice %56 {offsets = [0, 0], sizes = [12, 32], strides = [1, 1]} : vector<12x64xf32> to vector<12x32xf32>
    %cst_36 = arith.constant dense<0.000000e+00> : vector<16x12xf32>
    %62 = tpu.matmul %59, %60, %cst_36 {dimension_numbers = #tpu.dot_dimension_numbers<[1], [1], [0], [0], [0, 0, 1, 0], [], []>} : vector<16x16xf32>, vector<12x16xf32>, vector<16x12xf32> -> vector<16x12xf32>
    %cst_37 = arith.constant 0.000000e+00 : f32
    %63 = vector.broadcast %cst_37 : f32 to vector<16x12xf32>
    %64 = arith.cmpf ogt, %38, %63 : vector<16x12xf32>
    %cst_38 = arith.constant -1.000000e+30 : f32
    %65 = vector.broadcast %cst_38 : f32 to vector<16x12xf32>
    %66 = arith.select %64, %62, %65 : vector<16x12xi1>, vector<16x12xf32>
    %cst_39 = arith.constant dense<0xFF800000> : vector<16xf32>
    %67 = vector.multi_reduction <maximumf>, %66, %cst_39 [1] : vector<16x12xf32> to vector<16xf32>
    %68 = vector.shape_cast %67 : vector<16xf32> to vector<16x1xf32>
    %69 = vector.broadcast %68 : vector<16x1xf32> to vector<16x12xf32>
    %70 = arith.subf %66, %69 : vector<16x12xf32>
    %71 = math.exp %70 : vector<16x12xf32>
    %cst_40 = arith.constant dense<0.000000e+00> : vector<16xf32>
    %72 = vector.multi_reduction <add>, %71, %cst_40 [1] : vector<16x12xf32> to vector<16xf32>
    %73 = vector.shape_cast %72 : vector<16xf32> to vector<16x1xf32>
    %cst_41 = arith.constant 9.99999968E-21 : f32
    %74 = vector.broadcast %cst_41 : f32 to vector<16x1xf32>
    %75 = arith.maximumf %73, %74 : vector<16x1xf32>
    %76 = vector.broadcast %75 : vector<16x1xf32> to vector<16x12xf32>
    %77 = arith.divf %71, %76 : vector<16x12xf32>
    %cst_42 = arith.constant dense<0.000000e+00> : vector<16x32xf32>
    %78 = tpu.matmul %77, %61, %cst_42 {dimension_numbers = #tpu.dot_dimension_numbers<[1], [0], [0], [1], [0, 0, 1, 1], [], []>} : vector<16x12xf32>, vector<12x32xf32>, vector<16x32xf32> -> vector<16x32xf32>
    %79 = vector.extract_strided_slice %51 {offsets = [0, 16], sizes = [16, 16], strides = [1, 1]} : vector<16x32xf32> to vector<16x16xf32>
    %80 = vector.extract_strided_slice %55 {offsets = [0, 16], sizes = [12, 16], strides = [1, 1]} : vector<12x32xf32> to vector<12x16xf32>
    %81 = vector.extract_strided_slice %56 {offsets = [0, 32], sizes = [12, 32], strides = [1, 1]} : vector<12x64xf32> to vector<12x32xf32>
    %cst_43 = arith.constant dense<0.000000e+00> : vector<16x12xf32>
    %82 = tpu.matmul %79, %80, %cst_43 {dimension_numbers = #tpu.dot_dimension_numbers<[1], [1], [0], [0], [0, 0, 1, 0], [], []>} : vector<16x16xf32>, vector<12x16xf32>, vector<16x12xf32> -> vector<16x12xf32>
    %cst_44 = arith.constant 0.000000e+00 : f32
    %83 = vector.broadcast %cst_44 : f32 to vector<16x12xf32>
    %84 = arith.cmpf ogt, %38, %83 : vector<16x12xf32>
    %cst_45 = arith.constant -1.000000e+30 : f32
    %85 = vector.broadcast %cst_45 : f32 to vector<16x12xf32>
    %86 = arith.select %84, %82, %85 : vector<16x12xi1>, vector<16x12xf32>
    %cst_46 = arith.constant dense<0xFF800000> : vector<16xf32>
    %87 = vector.multi_reduction <maximumf>, %86, %cst_46 [1] : vector<16x12xf32> to vector<16xf32>
    %88 = vector.shape_cast %87 : vector<16xf32> to vector<16x1xf32>
    %89 = vector.broadcast %88 : vector<16x1xf32> to vector<16x12xf32>
    %90 = arith.subf %86, %89 : vector<16x12xf32>
    %91 = math.exp %90 : vector<16x12xf32>
    %cst_47 = arith.constant dense<0.000000e+00> : vector<16xf32>
    %92 = vector.multi_reduction <add>, %91, %cst_47 [1] : vector<16x12xf32> to vector<16xf32>
    %93 = vector.shape_cast %92 : vector<16xf32> to vector<16x1xf32>
    %cst_48 = arith.constant 9.99999968E-21 : f32
    %94 = vector.broadcast %cst_48 : f32 to vector<16x1xf32>
    %95 = arith.maximumf %93, %94 : vector<16x1xf32>
    %96 = vector.broadcast %95 : vector<16x1xf32> to vector<16x12xf32>
    %97 = arith.divf %91, %96 : vector<16x12xf32>
    %cst_49 = arith.constant dense<0.000000e+00> : vector<16x32xf32>
    %98 = tpu.matmul %97, %81, %cst_49 {dimension_numbers = #tpu.dot_dimension_numbers<[1], [0], [0], [1], [0, 0, 1, 1], [], []>} : vector<16x12xf32>, vector<12x32xf32>, vector<16x32xf32> -> vector<16x32xf32>
    %99 = arith.addf %78, %98 : vector<16x32xf32>
    %c0_50 = arith.constant 0 : index
    %c0_51 = arith.constant 0 : index
    %100 = vector.load %arg14[%c0_50, %c0_51] : memref<1x32xf32, #tpu.memory_space<vmem>>, vector<1x32xf32>
    %101 = vector.broadcast %100 : vector<1x32xf32> to vector<16x32xf32>
    %102 = arith.addf %99, %101 : vector<16x32xf32>
    %103 = vector.extract_strided_slice %54 {offsets = [0, 0], sizes = [12, 16], strides = [1, 1]} : vector<12x32xf32> to vector<12x16xf32>
    %104 = vector.extract_strided_slice %52 {offsets = [0, 0], sizes = [16, 16], strides = [1, 1]} : vector<16x32xf32> to vector<16x16xf32>
    %105 = vector.extract_strided_slice %53 {offsets = [0, 0], sizes = [16, 32], strides = [1, 1]} : vector<16x64xf32> to vector<16x32xf32>
    %cst_52 = arith.constant dense<0.000000e+00> : vector<12x16xf32>
    %106 = tpu.matmul %103, %104, %cst_52 {dimension_numbers = #tpu.dot_dimension_numbers<[1], [1], [0], [0], [0, 0, 1, 0], [], []>} : vector<12x16xf32>, vector<16x16xf32>, vector<12x16xf32> -> vector<12x16xf32>
    %cst_53 = arith.constant 0.000000e+00 : f32
    %107 = vector.broadcast %cst_53 : f32 to vector<12x16xf32>
    %108 = arith.cmpf ogt, %39, %107 : vector<12x16xf32>
    %cst_54 = arith.constant -1.000000e+30 : f32
    %109 = vector.broadcast %cst_54 : f32 to vector<12x16xf32>
    %110 = arith.select %108, %106, %109 : vector<12x16xi1>, vector<12x16xf32>
    %cst_55 = arith.constant dense<0xFF800000> : vector<12xf32>
    %111 = vector.multi_reduction <maximumf>, %110, %cst_55 [1] : vector<12x16xf32> to vector<12xf32>
    %112 = vector.shape_cast %111 : vector<12xf32> to vector<12x1xf32>
    %113 = vector.broadcast %112 : vector<12x1xf32> to vector<12x16xf32>
    %114 = arith.subf %110, %113 : vector<12x16xf32>
    %115 = math.exp %114 : vector<12x16xf32>
    %cst_56 = arith.constant dense<0.000000e+00> : vector<12xf32>
    %116 = vector.multi_reduction <add>, %115, %cst_56 [1] : vector<12x16xf32> to vector<12xf32>
    %117 = vector.shape_cast %116 : vector<12xf32> to vector<12x1xf32>
    %cst_57 = arith.constant 9.99999968E-21 : f32
    %118 = vector.broadcast %cst_57 : f32 to vector<12x1xf32>
    %119 = arith.maximumf %117, %118 : vector<12x1xf32>
    %120 = vector.broadcast %119 : vector<12x1xf32> to vector<12x16xf32>
    %121 = arith.divf %115, %120 : vector<12x16xf32>
    %cst_58 = arith.constant dense<0.000000e+00> : vector<12x32xf32>
    %122 = tpu.matmul %121, %105, %cst_58 {dimension_numbers = #tpu.dot_dimension_numbers<[1], [0], [0], [1], [0, 0, 1, 1], [], []>} : vector<12x16xf32>, vector<16x32xf32>, vector<12x32xf32> -> vector<12x32xf32>
    %123 = vector.extract_strided_slice %54 {offsets = [0, 16], sizes = [12, 16], strides = [1, 1]} : vector<12x32xf32> to vector<12x16xf32>
    %124 = vector.extract_strided_slice %52 {offsets = [0, 16], sizes = [16, 16], strides = [1, 1]} : vector<16x32xf32> to vector<16x16xf32>
    %125 = vector.extract_strided_slice %53 {offsets = [0, 32], sizes = [16, 32], strides = [1, 1]} : vector<16x64xf32> to vector<16x32xf32>
    %cst_59 = arith.constant dense<0.000000e+00> : vector<12x16xf32>
    %126 = tpu.matmul %123, %124, %cst_59 {dimension_numbers = #tpu.dot_dimension_numbers<[1], [1], [0], [0], [0, 0, 1, 0], [], []>} : vector<12x16xf32>, vector<16x16xf32>, vector<12x16xf32> -> vector<12x16xf32>
    %cst_60 = arith.constant 0.000000e+00 : f32
    %127 = vector.broadcast %cst_60 : f32 to vector<12x16xf32>
    %128 = arith.cmpf ogt, %39, %127 : vector<12x16xf32>
    %cst_61 = arith.constant -1.000000e+30 : f32
    %129 = vector.broadcast %cst_61 : f32 to vector<12x16xf32>
    %130 = arith.select %128, %126, %129 : vector<12x16xi1>, vector<12x16xf32>
    %cst_62 = arith.constant dense<0xFF800000> : vector<12xf32>
    %131 = vector.multi_reduction <maximumf>, %130, %cst_62 [1] : vector<12x16xf32> to vector<12xf32>
    %132 = vector.shape_cast %131 : vector<12xf32> to vector<12x1xf32>
    %133 = vector.broadcast %132 : vector<12x1xf32> to vector<12x16xf32>
    %134 = arith.subf %130, %133 : vector<12x16xf32>
    %135 = math.exp %134 : vector<12x16xf32>
    %cst_63 = arith.constant dense<0.000000e+00> : vector<12xf32>
    %136 = vector.multi_reduction <add>, %135, %cst_63 [1] : vector<12x16xf32> to vector<12xf32>
    %137 = vector.shape_cast %136 : vector<12xf32> to vector<12x1xf32>
    %cst_64 = arith.constant 9.99999968E-21 : f32
    %138 = vector.broadcast %cst_64 : f32 to vector<12x1xf32>
    %139 = arith.maximumf %137, %138 : vector<12x1xf32>
    %140 = vector.broadcast %139 : vector<12x1xf32> to vector<12x16xf32>
    %141 = arith.divf %135, %140 : vector<12x16xf32>
    %cst_65 = arith.constant dense<0.000000e+00> : vector<12x32xf32>
    %142 = tpu.matmul %141, %125, %cst_65 {dimension_numbers = #tpu.dot_dimension_numbers<[1], [0], [0], [1], [0, 0, 1, 1], [], []>} : vector<12x16xf32>, vector<16x32xf32>, vector<12x32xf32> -> vector<12x32xf32>
    %143 = arith.addf %122, %142 : vector<12x32xf32>
    %144 = vector.extract_strided_slice %54 {offsets = [0, 0], sizes = [12, 16], strides = [1, 1]} : vector<12x32xf32> to vector<12x16xf32>
    %145 = vector.extract_strided_slice %57 {offsets = [0, 0], sizes = [12, 16], strides = [1, 1]} : vector<12x32xf32> to vector<12x16xf32>
    %146 = vector.extract_strided_slice %58 {offsets = [0, 0], sizes = [12, 32], strides = [1, 1]} : vector<12x64xf32> to vector<12x32xf32>
    %cst_66 = arith.constant dense<0.000000e+00> : vector<12x12xf32>
    %147 = tpu.matmul %144, %145, %cst_66 {dimension_numbers = #tpu.dot_dimension_numbers<[1], [1], [0], [0], [0, 0, 1, 0], [], []>} : vector<12x16xf32>, vector<12x16xf32>, vector<12x12xf32> -> vector<12x12xf32>
    %cst_67 = arith.constant 0.000000e+00 : f32
    %148 = vector.broadcast %cst_67 : f32 to vector<12x12xf32>
    %149 = arith.cmpf ogt, %40, %148 : vector<12x12xf32>
    %cst_68 = arith.constant -1.000000e+30 : f32
    %150 = vector.broadcast %cst_68 : f32 to vector<12x12xf32>
    %151 = arith.select %149, %147, %150 : vector<12x12xi1>, vector<12x12xf32>
    %cst_69 = arith.constant dense<0xFF800000> : vector<12xf32>
    %152 = vector.multi_reduction <maximumf>, %151, %cst_69 [1] : vector<12x12xf32> to vector<12xf32>
    %153 = vector.shape_cast %152 : vector<12xf32> to vector<12x1xf32>
    %154 = vector.broadcast %153 : vector<12x1xf32> to vector<12x12xf32>
    %155 = arith.subf %151, %154 : vector<12x12xf32>
    %156 = math.exp %155 : vector<12x12xf32>
    %cst_70 = arith.constant dense<0.000000e+00> : vector<12xf32>
    %157 = vector.multi_reduction <add>, %156, %cst_70 [1] : vector<12x12xf32> to vector<12xf32>
    %158 = vector.shape_cast %157 : vector<12xf32> to vector<12x1xf32>
    %cst_71 = arith.constant 9.99999968E-21 : f32
    %159 = vector.broadcast %cst_71 : f32 to vector<12x1xf32>
    %160 = arith.maximumf %158, %159 : vector<12x1xf32>
    %161 = vector.broadcast %160 : vector<12x1xf32> to vector<12x12xf32>
    %162 = arith.divf %156, %161 : vector<12x12xf32>
    %cst_72 = arith.constant dense<0.000000e+00> : vector<12x32xf32>
    %163 = tpu.matmul %162, %146, %cst_72 {dimension_numbers = #tpu.dot_dimension_numbers<[1], [0], [0], [1], [0, 0, 1, 1], [], []>} : vector<12x12xf32>, vector<12x32xf32>, vector<12x32xf32> -> vector<12x32xf32>
    %164 = vector.extract_strided_slice %54 {offsets = [0, 16], sizes = [12, 16], strides = [1, 1]} : vector<12x32xf32> to vector<12x16xf32>
    %165 = vector.extract_strided_slice %57 {offsets = [0, 16], sizes = [12, 16], strides = [1, 1]} : vector<12x32xf32> to vector<12x16xf32>
    %166 = vector.extract_strided_slice %58 {offsets = [0, 32], sizes = [12, 32], strides = [1, 1]} : vector<12x64xf32> to vector<12x32xf32>
    %cst_73 = arith.constant dense<0.000000e+00> : vector<12x12xf32>
    %167 = tpu.matmul %164, %165, %cst_73 {dimension_numbers = #tpu.dot_dimension_numbers<[1], [1], [0], [0], [0, 0, 1, 0], [], []>} : vector<12x16xf32>, vector<12x16xf32>, vector<12x12xf32> -> vector<12x12xf32>
    %cst_74 = arith.constant 0.000000e+00 : f32
    %168 = vector.broadcast %cst_74 : f32 to vector<12x12xf32>
    %169 = arith.cmpf ogt, %40, %168 : vector<12x12xf32>
    %cst_75 = arith.constant -1.000000e+30 : f32
    %170 = vector.broadcast %cst_75 : f32 to vector<12x12xf32>
    %171 = arith.select %169, %167, %170 : vector<12x12xi1>, vector<12x12xf32>
    %cst_76 = arith.constant dense<0xFF800000> : vector<12xf32>
    %172 = vector.multi_reduction <maximumf>, %171, %cst_76 [1] : vector<12x12xf32> to vector<12xf32>
    %173 = vector.shape_cast %172 : vector<12xf32> to vector<12x1xf32>
    %174 = vector.broadcast %173 : vector<12x1xf32> to vector<12x12xf32>
    %175 = arith.subf %171, %174 : vector<12x12xf32>
    %176 = math.exp %175 : vector<12x12xf32>
    %cst_77 = arith.constant dense<0.000000e+00> : vector<12xf32>
    %177 = vector.multi_reduction <add>, %176, %cst_77 [1] : vector<12x12xf32> to vector<12xf32>
    %178 = vector.shape_cast %177 : vector<12xf32> to vector<12x1xf32>
    %cst_78 = arith.constant 9.99999968E-21 : f32
    %179 = vector.broadcast %cst_78 : f32 to vector<12x1xf32>
    %180 = arith.maximumf %178, %179 : vector<12x1xf32>
    %181 = vector.broadcast %180 : vector<12x1xf32> to vector<12x12xf32>
    %182 = arith.divf %176, %181 : vector<12x12xf32>
    %cst_79 = arith.constant dense<0.000000e+00> : vector<12x32xf32>
    %183 = tpu.matmul %182, %166, %cst_79 {dimension_numbers = #tpu.dot_dimension_numbers<[1], [0], [0], [1], [0, 0, 1, 1], [], []>} : vector<12x12xf32>, vector<12x32xf32>, vector<12x32xf32> -> vector<12x32xf32>
    %184 = arith.addf %163, %183 : vector<12x32xf32>
    %185 = arith.addf %143, %184 : vector<12x32xf32>
    %cst_80 = arith.constant 5.000000e-01 : f32
    %186 = vector.broadcast %cst_80 : f32 to vector<12x32xf32>
    %187 = arith.mulf %186, %185 : vector<12x32xf32>
    %c0_81 = arith.constant 0 : index
    %c0_82 = arith.constant 0 : index
    %188 = vector.load %arg15[%c0_81, %c0_82] : memref<1x32xf32, #tpu.memory_space<vmem>>, vector<1x32xf32>
    %189 = vector.broadcast %188 : vector<1x32xf32> to vector<12x32xf32>
    %190 = arith.addf %187, %189 : vector<12x32xf32>
    %c0_83 = arith.constant 0 : index
    %191 = memref.load %arg36[%c0_83] : memref<4xf32, #tpu.memory_space<smem>>
    %c1 = arith.constant 1 : index
    %192 = memref.load %arg36[%c1] : memref<4xf32, #tpu.memory_space<smem>>
    %193 = vector.broadcast %191 : f32 to vector<16x32xf32>
    %194 = arith.mulf %102, %193 : vector<16x32xf32>
    %cst_84 = arith.constant 1.000000e+00 : f32
    %195 = arith.subf %cst_84, %191 : f32
    %196 = vector.broadcast %195 : f32 to vector<16x32xf32>
    %197 = arith.mulf %18, %196 : vector<16x32xf32>
    %198 = arith.addf %194, %197 : vector<16x32xf32>
    %cst_85 = arith.constant dense<0.000000e+00> : vector<16xf32>
    %199 = vector.multi_reduction <add>, %198, %cst_85 [1] : vector<16x32xf32> to vector<16xf32>
    %200 = vector.shape_cast %199 : vector<16xf32> to vector<16x1xf32>
    %cst_86 = arith.constant 3.200000e+01 : f32
    %201 = vector.broadcast %cst_86 : f32 to vector<16x1xf32>
    %202 = arith.divf %200, %201 : vector<16x1xf32>
    %203 = vector.broadcast %202 : vector<16x1xf32> to vector<16x32xf32>
    %204 = arith.subf %198, %203 : vector<16x32xf32>
    %205 = arith.mulf %204, %204 : vector<16x32xf32>
    %cst_87 = arith.constant dense<0.000000e+00> : vector<16xf32>
    %206 = vector.multi_reduction <add>, %205, %cst_87 [1] : vector<16x32xf32> to vector<16xf32>
    %207 = vector.shape_cast %206 : vector<16xf32> to vector<16x1xf32>
    %cst_88 = arith.constant 3.200000e+01 : f32
    %208 = vector.broadcast %cst_88 : f32 to vector<16x1xf32>
    %209 = arith.divf %207, %208 : vector<16x1xf32>
    %210 = vector.broadcast %202 : vector<16x1xf32> to vector<16x32xf32>
    %211 = arith.subf %198, %210 : vector<16x32xf32>
    %cst_89 = arith.constant 9.99999974E-6 : f32
    %212 = vector.broadcast %cst_89 : f32 to vector<16x1xf32>
    %213 = arith.addf %209, %212 : vector<16x1xf32>
    %214 = math.rsqrt %213 : vector<16x1xf32>
    %215 = vector.broadcast %214 : vector<16x1xf32> to vector<16x32xf32>
    %216 = arith.mulf %211, %215 : vector<16x32xf32>
    %c0_90 = arith.constant 0 : index
    %c0_91 = arith.constant 0 : index
    %217 = vector.load %arg16[%c0_90, %c0_91] : memref<1x32xf32, #tpu.memory_space<vmem>>, vector<1x32xf32>
    %218 = vector.broadcast %217 : vector<1x32xf32> to vector<16x32xf32>
    %219 = arith.mulf %216, %218 : vector<16x32xf32>
    %c0_92 = arith.constant 0 : index
    %c0_93 = arith.constant 0 : index
    %220 = vector.load %arg17[%c0_92, %c0_93] : memref<1x32xf32, #tpu.memory_space<vmem>>, vector<1x32xf32>
    %221 = vector.broadcast %220 : vector<1x32xf32> to vector<16x32xf32>
    %222 = arith.addf %219, %221 : vector<16x32xf32>
    %223 = vector.broadcast %192 : f32 to vector<12x32xf32>
    %224 = arith.mulf %190, %223 : vector<12x32xf32>
    %cst_94 = arith.constant 1.000000e+00 : f32
    %225 = arith.subf %cst_94, %192 : f32
    %226 = vector.broadcast %225 : f32 to vector<12x32xf32>
    %227 = arith.mulf %37, %226 : vector<12x32xf32>
    %228 = arith.addf %224, %227 : vector<12x32xf32>
    %cst_95 = arith.constant dense<0.000000e+00> : vector<12xf32>
    %229 = vector.multi_reduction <add>, %228, %cst_95 [1] : vector<12x32xf32> to vector<12xf32>
    %230 = vector.shape_cast %229 : vector<12xf32> to vector<12x1xf32>
    %cst_96 = arith.constant 3.200000e+01 : f32
    %231 = vector.broadcast %cst_96 : f32 to vector<12x1xf32>
    %232 = arith.divf %230, %231 : vector<12x1xf32>
    %233 = vector.broadcast %232 : vector<12x1xf32> to vector<12x32xf32>
    %234 = arith.subf %228, %233 : vector<12x32xf32>
    %235 = arith.mulf %234, %234 : vector<12x32xf32>
    %cst_97 = arith.constant dense<0.000000e+00> : vector<12xf32>
    %236 = vector.multi_reduction <add>, %235, %cst_97 [1] : vector<12x32xf32> to vector<12xf32>
    %237 = vector.shape_cast %236 : vector<12xf32> to vector<12x1xf32>
    %cst_98 = arith.constant 3.200000e+01 : f32
    %238 = vector.broadcast %cst_98 : f32 to vector<12x1xf32>
    %239 = arith.divf %237, %238 : vector<12x1xf32>
    %240 = vector.broadcast %232 : vector<12x1xf32> to vector<12x32xf32>
    %241 = arith.subf %228, %240 : vector<12x32xf32>
    %cst_99 = arith.constant 9.99999974E-6 : f32
    %242 = vector.broadcast %cst_99 : f32 to vector<12x1xf32>
    %243 = arith.addf %239, %242 : vector<12x1xf32>
    %244 = math.rsqrt %243 : vector<12x1xf32>
    %245 = vector.broadcast %244 : vector<12x1xf32> to vector<12x32xf32>
    %246 = arith.mulf %241, %245 : vector<12x32xf32>
    %c0_100 = arith.constant 0 : index
    %c0_101 = arith.constant 0 : index
    %247 = vector.load %arg18[%c0_100, %c0_101] : memref<1x32xf32, #tpu.memory_space<vmem>>, vector<1x32xf32>
    %248 = vector.broadcast %247 : vector<1x32xf32> to vector<12x32xf32>
    %249 = arith.mulf %246, %248 : vector<12x32xf32>
    %c0_102 = arith.constant 0 : index
    %c0_103 = arith.constant 0 : index
    %250 = vector.load %arg19[%c0_102, %c0_103] : memref<1x32xf32, #tpu.memory_space<vmem>>, vector<1x32xf32>
    %251 = vector.broadcast %250 : vector<1x32xf32> to vector<12x32xf32>
    %252 = arith.addf %249, %251 : vector<12x32xf32>
    %c0_104 = arith.constant 0 : index
    %c0_105 = arith.constant 0 : index
    %253 = vector.load %arg20[%c0_104, %c0_105] : memref<32x128xf32, #tpu.memory_space<vmem>>, vector<32x128xf32>
    %cst_106 = arith.constant dense<0.000000e+00> : vector<16x128xf32>
    %254 = tpu.matmul %222, %253, %cst_106 {dimension_numbers = #tpu.dot_dimension_numbers<[1], [0], [0], [1], [0, 0, 1, 1], [], []>} : vector<16x32xf32>, vector<32x128xf32>, vector<16x128xf32> -> vector<16x128xf32>
    %c0_107 = arith.constant 0 : index
    %c0_108 = arith.constant 0 : index
    %255 = vector.load %arg21[%c0_107, %c0_108] : memref<1x128xf32, #tpu.memory_space<vmem>>, vector<1x128xf32>
    %256 = vector.broadcast %255 : vector<1x128xf32> to vector<16x128xf32>
    %257 = arith.addf %254, %256 : vector<16x128xf32>
    %c0_109 = arith.constant 0 : index
    %c0_110 = arith.constant 0 : index
    %258 = vector.load %arg22[%c0_109, %c0_110] : memref<32x224xf32, #tpu.memory_space<vmem>>, vector<32x224xf32>
    %cst_111 = arith.constant dense<0.000000e+00> : vector<12x224xf32>
    %259 = tpu.matmul %252, %258, %cst_111 {dimension_numbers = #tpu.dot_dimension_numbers<[1], [0], [0], [1], [0, 0, 1, 1], [], []>} : vector<12x32xf32>, vector<32x224xf32>, vector<12x224xf32> -> vector<12x224xf32>
    %c0_112 = arith.constant 0 : index
    %c0_113 = arith.constant 0 : index
    %260 = vector.load %arg23[%c0_112, %c0_113] : memref<1x224xf32, #tpu.memory_space<vmem>>, vector<1x224xf32>
    %261 = vector.broadcast %260 : vector<1x224xf32> to vector<12x224xf32>
    %262 = arith.addf %259, %261 : vector<12x224xf32>
    %263 = vector.extract_strided_slice %257 {offsets = [0, 0], sizes = [16, 32], strides = [1, 1]} : vector<16x128xf32> to vector<16x32xf32>
    %264 = vector.extract_strided_slice %257 {offsets = [0, 32], sizes = [16, 32], strides = [1, 1]} : vector<16x128xf32> to vector<16x32xf32>
    %265 = vector.extract_strided_slice %257 {offsets = [0, 64], sizes = [16, 64], strides = [1, 1]} : vector<16x128xf32> to vector<16x64xf32>
    %266 = vector.extract_strided_slice %262 {offsets = [0, 0], sizes = [12, 32], strides = [1, 1]} : vector<12x224xf32> to vector<12x32xf32>
    %267 = vector.extract_strided_slice %262 {offsets = [0, 32], sizes = [12, 32], strides = [1, 1]} : vector<12x224xf32> to vector<12x32xf32>
    %268 = vector.extract_strided_slice %262 {offsets = [0, 64], sizes = [12, 64], strides = [1, 1]} : vector<12x224xf32> to vector<12x64xf32>
    %269 = vector.extract_strided_slice %262 {offsets = [0, 128], sizes = [12, 32], strides = [1, 1]} : vector<12x224xf32> to vector<12x32xf32>
    %270 = vector.extract_strided_slice %262 {offsets = [0, 160], sizes = [12, 64], strides = [1, 1]} : vector<12x224xf32> to vector<12x64xf32>
    %271 = vector.extract_strided_slice %263 {offsets = [0, 0], sizes = [16, 16], strides = [1, 1]} : vector<16x32xf32> to vector<16x16xf32>
    %272 = vector.extract_strided_slice %267 {offsets = [0, 0], sizes = [12, 16], strides = [1, 1]} : vector<12x32xf32> to vector<12x16xf32>
    %273 = vector.extract_strided_slice %268 {offsets = [0, 0], sizes = [12, 32], strides = [1, 1]} : vector<12x64xf32> to vector<12x32xf32>
    %cst_114 = arith.constant dense<0.000000e+00> : vector<16x12xf32>
    %274 = tpu.matmul %271, %272, %cst_114 {dimension_numbers = #tpu.dot_dimension_numbers<[1], [1], [0], [0], [0, 0, 1, 0], [], []>} : vector<16x16xf32>, vector<12x16xf32>, vector<16x12xf32> -> vector<16x12xf32>
    %cst_115 = arith.constant 0.000000e+00 : f32
    %275 = vector.broadcast %cst_115 : f32 to vector<16x12xf32>
    %276 = arith.cmpf ogt, %38, %275 : vector<16x12xf32>
    %cst_116 = arith.constant -1.000000e+30 : f32
    %277 = vector.broadcast %cst_116 : f32 to vector<16x12xf32>
    %278 = arith.select %276, %274, %277 : vector<16x12xi1>, vector<16x12xf32>
    %cst_117 = arith.constant dense<0xFF800000> : vector<16xf32>
    %279 = vector.multi_reduction <maximumf>, %278, %cst_117 [1] : vector<16x12xf32> to vector<16xf32>
    %280 = vector.shape_cast %279 : vector<16xf32> to vector<16x1xf32>
    %281 = vector.broadcast %280 : vector<16x1xf32> to vector<16x12xf32>
    %282 = arith.subf %278, %281 : vector<16x12xf32>
    %283 = math.exp %282 : vector<16x12xf32>
    %cst_118 = arith.constant dense<0.000000e+00> : vector<16xf32>
    %284 = vector.multi_reduction <add>, %283, %cst_118 [1] : vector<16x12xf32> to vector<16xf32>
    %285 = vector.shape_cast %284 : vector<16xf32> to vector<16x1xf32>
    %cst_119 = arith.constant 9.99999968E-21 : f32
    %286 = vector.broadcast %cst_119 : f32 to vector<16x1xf32>
    %287 = arith.maximumf %285, %286 : vector<16x1xf32>
    %288 = vector.broadcast %287 : vector<16x1xf32> to vector<16x12xf32>
    %289 = arith.divf %283, %288 : vector<16x12xf32>
    %cst_120 = arith.constant dense<0.000000e+00> : vector<16x32xf32>
    %290 = tpu.matmul %289, %273, %cst_120 {dimension_numbers = #tpu.dot_dimension_numbers<[1], [0], [0], [1], [0, 0, 1, 1], [], []>} : vector<16x12xf32>, vector<12x32xf32>, vector<16x32xf32> -> vector<16x32xf32>
    %291 = vector.extract_strided_slice %263 {offsets = [0, 16], sizes = [16, 16], strides = [1, 1]} : vector<16x32xf32> to vector<16x16xf32>
    %292 = vector.extract_strided_slice %267 {offsets = [0, 16], sizes = [12, 16], strides = [1, 1]} : vector<12x32xf32> to vector<12x16xf32>
    %293 = vector.extract_strided_slice %268 {offsets = [0, 32], sizes = [12, 32], strides = [1, 1]} : vector<12x64xf32> to vector<12x32xf32>
    %cst_121 = arith.constant dense<0.000000e+00> : vector<16x12xf32>
    %294 = tpu.matmul %291, %292, %cst_121 {dimension_numbers = #tpu.dot_dimension_numbers<[1], [1], [0], [0], [0, 0, 1, 0], [], []>} : vector<16x16xf32>, vector<12x16xf32>, vector<16x12xf32> -> vector<16x12xf32>
    %cst_122 = arith.constant 0.000000e+00 : f32
    %295 = vector.broadcast %cst_122 : f32 to vector<16x12xf32>
    %296 = arith.cmpf ogt, %38, %295 : vector<16x12xf32>
    %cst_123 = arith.constant -1.000000e+30 : f32
    %297 = vector.broadcast %cst_123 : f32 to vector<16x12xf32>
    %298 = arith.select %296, %294, %297 : vector<16x12xi1>, vector<16x12xf32>
    %cst_124 = arith.constant dense<0xFF800000> : vector<16xf32>
    %299 = vector.multi_reduction <maximumf>, %298, %cst_124 [1] : vector<16x12xf32> to vector<16xf32>
    %300 = vector.shape_cast %299 : vector<16xf32> to vector<16x1xf32>
    %301 = vector.broadcast %300 : vector<16x1xf32> to vector<16x12xf32>
    %302 = arith.subf %298, %301 : vector<16x12xf32>
    %303 = math.exp %302 : vector<16x12xf32>
    %cst_125 = arith.constant dense<0.000000e+00> : vector<16xf32>
    %304 = vector.multi_reduction <add>, %303, %cst_125 [1] : vector<16x12xf32> to vector<16xf32>
    %305 = vector.shape_cast %304 : vector<16xf32> to vector<16x1xf32>
    %cst_126 = arith.constant 9.99999968E-21 : f32
    %306 = vector.broadcast %cst_126 : f32 to vector<16x1xf32>
    %307 = arith.maximumf %305, %306 : vector<16x1xf32>
    %308 = vector.broadcast %307 : vector<16x1xf32> to vector<16x12xf32>
    %309 = arith.divf %303, %308 : vector<16x12xf32>
    %cst_127 = arith.constant dense<0.000000e+00> : vector<16x32xf32>
    %310 = tpu.matmul %309, %293, %cst_127 {dimension_numbers = #tpu.dot_dimension_numbers<[1], [0], [0], [1], [0, 0, 1, 1], [], []>} : vector<16x12xf32>, vector<12x32xf32>, vector<16x32xf32> -> vector<16x32xf32>
    %311 = arith.addf %290, %310 : vector<16x32xf32>
    %c0_128 = arith.constant 0 : index
    %c0_129 = arith.constant 0 : index
    %312 = vector.load %arg24[%c0_128, %c0_129] : memref<1x32xf32, #tpu.memory_space<vmem>>, vector<1x32xf32>
    %313 = vector.broadcast %312 : vector<1x32xf32> to vector<16x32xf32>
    %314 = arith.addf %311, %313 : vector<16x32xf32>
    %315 = vector.extract_strided_slice %266 {offsets = [0, 0], sizes = [12, 16], strides = [1, 1]} : vector<12x32xf32> to vector<12x16xf32>
    %316 = vector.extract_strided_slice %264 {offsets = [0, 0], sizes = [16, 16], strides = [1, 1]} : vector<16x32xf32> to vector<16x16xf32>
    %317 = vector.extract_strided_slice %265 {offsets = [0, 0], sizes = [16, 32], strides = [1, 1]} : vector<16x64xf32> to vector<16x32xf32>
    %cst_130 = arith.constant dense<0.000000e+00> : vector<12x16xf32>
    %318 = tpu.matmul %315, %316, %cst_130 {dimension_numbers = #tpu.dot_dimension_numbers<[1], [1], [0], [0], [0, 0, 1, 0], [], []>} : vector<12x16xf32>, vector<16x16xf32>, vector<12x16xf32> -> vector<12x16xf32>
    %cst_131 = arith.constant 0.000000e+00 : f32
    %319 = vector.broadcast %cst_131 : f32 to vector<12x16xf32>
    %320 = arith.cmpf ogt, %39, %319 : vector<12x16xf32>
    %cst_132 = arith.constant -1.000000e+30 : f32
    %321 = vector.broadcast %cst_132 : f32 to vector<12x16xf32>
    %322 = arith.select %320, %318, %321 : vector<12x16xi1>, vector<12x16xf32>
    %cst_133 = arith.constant dense<0xFF800000> : vector<12xf32>
    %323 = vector.multi_reduction <maximumf>, %322, %cst_133 [1] : vector<12x16xf32> to vector<12xf32>
    %324 = vector.shape_cast %323 : vector<12xf32> to vector<12x1xf32>
    %325 = vector.broadcast %324 : vector<12x1xf32> to vector<12x16xf32>
    %326 = arith.subf %322, %325 : vector<12x16xf32>
    %327 = math.exp %326 : vector<12x16xf32>
    %cst_134 = arith.constant dense<0.000000e+00> : vector<12xf32>
    %328 = vector.multi_reduction <add>, %327, %cst_134 [1] : vector<12x16xf32> to vector<12xf32>
    %329 = vector.shape_cast %328 : vector<12xf32> to vector<12x1xf32>
    %cst_135 = arith.constant 9.99999968E-21 : f32
    %330 = vector.broadcast %cst_135 : f32 to vector<12x1xf32>
    %331 = arith.maximumf %329, %330 : vector<12x1xf32>
    %332 = vector.broadcast %331 : vector<12x1xf32> to vector<12x16xf32>
    %333 = arith.divf %327, %332 : vector<12x16xf32>
    %cst_136 = arith.constant dense<0.000000e+00> : vector<12x32xf32>
    %334 = tpu.matmul %333, %317, %cst_136 {dimension_numbers = #tpu.dot_dimension_numbers<[1], [0], [0], [1], [0, 0, 1, 1], [], []>} : vector<12x16xf32>, vector<16x32xf32>, vector<12x32xf32> -> vector<12x32xf32>
    %335 = vector.extract_strided_slice %266 {offsets = [0, 16], sizes = [12, 16], strides = [1, 1]} : vector<12x32xf32> to vector<12x16xf32>
    %336 = vector.extract_strided_slice %264 {offsets = [0, 16], sizes = [16, 16], strides = [1, 1]} : vector<16x32xf32> to vector<16x16xf32>
    %337 = vector.extract_strided_slice %265 {offsets = [0, 32], sizes = [16, 32], strides = [1, 1]} : vector<16x64xf32> to vector<16x32xf32>
    %cst_137 = arith.constant dense<0.000000e+00> : vector<12x16xf32>
    %338 = tpu.matmul %335, %336, %cst_137 {dimension_numbers = #tpu.dot_dimension_numbers<[1], [1], [0], [0], [0, 0, 1, 0], [], []>} : vector<12x16xf32>, vector<16x16xf32>, vector<12x16xf32> -> vector<12x16xf32>
    %cst_138 = arith.constant 0.000000e+00 : f32
    %339 = vector.broadcast %cst_138 : f32 to vector<12x16xf32>
    %340 = arith.cmpf ogt, %39, %339 : vector<12x16xf32>
    %cst_139 = arith.constant -1.000000e+30 : f32
    %341 = vector.broadcast %cst_139 : f32 to vector<12x16xf32>
    %342 = arith.select %340, %338, %341 : vector<12x16xi1>, vector<12x16xf32>
    %cst_140 = arith.constant dense<0xFF800000> : vector<12xf32>
    %343 = vector.multi_reduction <maximumf>, %342, %cst_140 [1] : vector<12x16xf32> to vector<12xf32>
    %344 = vector.shape_cast %343 : vector<12xf32> to vector<12x1xf32>
    %345 = vector.broadcast %344 : vector<12x1xf32> to vector<12x16xf32>
    %346 = arith.subf %342, %345 : vector<12x16xf32>
    %347 = math.exp %346 : vector<12x16xf32>
    %cst_141 = arith.constant dense<0.000000e+00> : vector<12xf32>
    %348 = vector.multi_reduction <add>, %347, %cst_141 [1] : vector<12x16xf32> to vector<12xf32>
    %349 = vector.shape_cast %348 : vector<12xf32> to vector<12x1xf32>
    %cst_142 = arith.constant 9.99999968E-21 : f32
    %350 = vector.broadcast %cst_142 : f32 to vector<12x1xf32>
    %351 = arith.maximumf %349, %350 : vector<12x1xf32>
    %352 = vector.broadcast %351 : vector<12x1xf32> to vector<12x16xf32>
    %353 = arith.divf %347, %352 : vector<12x16xf32>
    %cst_143 = arith.constant dense<0.000000e+00> : vector<12x32xf32>
    %354 = tpu.matmul %353, %337, %cst_143 {dimension_numbers = #tpu.dot_dimension_numbers<[1], [0], [0], [1], [0, 0, 1, 1], [], []>} : vector<12x16xf32>, vector<16x32xf32>, vector<12x32xf32> -> vector<12x32xf32>
    %355 = arith.addf %334, %354 : vector<12x32xf32>
    %356 = vector.extract_strided_slice %266 {offsets = [0, 0], sizes = [12, 16], strides = [1, 1]} : vector<12x32xf32> to vector<12x16xf32>
    %357 = vector.extract_strided_slice %269 {offsets = [0, 0], sizes = [12, 16], strides = [1, 1]} : vector<12x32xf32> to vector<12x16xf32>
    %358 = vector.extract_strided_slice %270 {offsets = [0, 0], sizes = [12, 32], strides = [1, 1]} : vector<12x64xf32> to vector<12x32xf32>
    %cst_144 = arith.constant dense<0.000000e+00> : vector<12x12xf32>
    %359 = tpu.matmul %356, %357, %cst_144 {dimension_numbers = #tpu.dot_dimension_numbers<[1], [1], [0], [0], [0, 0, 1, 0], [], []>} : vector<12x16xf32>, vector<12x16xf32>, vector<12x12xf32> -> vector<12x12xf32>
    %cst_145 = arith.constant 0.000000e+00 : f32
    %360 = vector.broadcast %cst_145 : f32 to vector<12x12xf32>
    %361 = arith.cmpf ogt, %40, %360 : vector<12x12xf32>
    %cst_146 = arith.constant -1.000000e+30 : f32
    %362 = vector.broadcast %cst_146 : f32 to vector<12x12xf32>
    %363 = arith.select %361, %359, %362 : vector<12x12xi1>, vector<12x12xf32>
    %cst_147 = arith.constant dense<0xFF800000> : vector<12xf32>
    %364 = vector.multi_reduction <maximumf>, %363, %cst_147 [1] : vector<12x12xf32> to vector<12xf32>
    %365 = vector.shape_cast %364 : vector<12xf32> to vector<12x1xf32>
    %366 = vector.broadcast %365 : vector<12x1xf32> to vector<12x12xf32>
    %367 = arith.subf %363, %366 : vector<12x12xf32>
    %368 = math.exp %367 : vector<12x12xf32>
    %cst_148 = arith.constant dense<0.000000e+00> : vector<12xf32>
    %369 = vector.multi_reduction <add>, %368, %cst_148 [1] : vector<12x12xf32> to vector<12xf32>
    %370 = vector.shape_cast %369 : vector<12xf32> to vector<12x1xf32>
    %cst_149 = arith.constant 9.99999968E-21 : f32
    %371 = vector.broadcast %cst_149 : f32 to vector<12x1xf32>
    %372 = arith.maximumf %370, %371 : vector<12x1xf32>
    %373 = vector.broadcast %372 : vector<12x1xf32> to vector<12x12xf32>
    %374 = arith.divf %368, %373 : vector<12x12xf32>
    %cst_150 = arith.constant dense<0.000000e+00> : vector<12x32xf32>
    %375 = tpu.matmul %374, %358, %cst_150 {dimension_numbers = #tpu.dot_dimension_numbers<[1], [0], [0], [1], [0, 0, 1, 1], [], []>} : vector<12x12xf32>, vector<12x32xf32>, vector<12x32xf32> -> vector<12x32xf32>
    %376 = vector.extract_strided_slice %266 {offsets = [0, 16], sizes = [12, 16], strides = [1, 1]} : vector<12x32xf32> to vector<12x16xf32>
    %377 = vector.extract_strided_slice %269 {offsets = [0, 16], sizes = [12, 16], strides = [1, 1]} : vector<12x32xf32> to vector<12x16xf32>
    %378 = vector.extract_strided_slice %270 {offsets = [0, 32], sizes = [12, 32], strides = [1, 1]} : vector<12x64xf32> to vector<12x32xf32>
    %cst_151 = arith.constant dense<0.000000e+00> : vector<12x12xf32>
    %379 = tpu.matmul %376, %377, %cst_151 {dimension_numbers = #tpu.dot_dimension_numbers<[1], [1], [0], [0], [0, 0, 1, 0], [], []>} : vector<12x16xf32>, vector<12x16xf32>, vector<12x12xf32> -> vector<12x12xf32>
    %cst_152 = arith.constant 0.000000e+00 : f32
    %380 = vector.broadcast %cst_152 : f32 to vector<12x12xf32>
    %381 = arith.cmpf ogt, %40, %380 : vector<12x12xf32>
    %cst_153 = arith.constant -1.000000e+30 : f32
    %382 = vector.broadcast %cst_153 : f32 to vector<12x12xf32>
    %383 = arith.select %381, %379, %382 : vector<12x12xi1>, vector<12x12xf32>
    %cst_154 = arith.constant dense<0xFF800000> : vector<12xf32>
    %384 = vector.multi_reduction <maximumf>, %383, %cst_154 [1] : vector<12x12xf32> to vector<12xf32>
    %385 = vector.shape_cast %384 : vector<12xf32> to vector<12x1xf32>
    %386 = vector.broadcast %385 : vector<12x1xf32> to vector<12x12xf32>
    %387 = arith.subf %383, %386 : vector<12x12xf32>
    %388 = math.exp %387 : vector<12x12xf32>
    %cst_155 = arith.constant dense<0.000000e+00> : vector<12xf32>
    %389 = vector.multi_reduction <add>, %388, %cst_155 [1] : vector<12x12xf32> to vector<12xf32>
    %390 = vector.shape_cast %389 : vector<12xf32> to vector<12x1xf32>
    %cst_156 = arith.constant 9.99999968E-21 : f32
    %391 = vector.broadcast %cst_156 : f32 to vector<12x1xf32>
    %392 = arith.maximumf %390, %391 : vector<12x1xf32>
    %393 = vector.broadcast %392 : vector<12x1xf32> to vector<12x12xf32>
    %394 = arith.divf %388, %393 : vector<12x12xf32>
    %cst_157 = arith.constant dense<0.000000e+00> : vector<12x32xf32>
    %395 = tpu.matmul %394, %378, %cst_157 {dimension_numbers = #tpu.dot_dimension_numbers<[1], [0], [0], [1], [0, 0, 1, 1], [], []>} : vector<12x12xf32>, vector<12x32xf32>, vector<12x32xf32> -> vector<12x32xf32>
    %396 = arith.addf %375, %395 : vector<12x32xf32>
    %397 = arith.addf %355, %396 : vector<12x32xf32>
    %cst_158 = arith.constant 5.000000e-01 : f32
    %398 = vector.broadcast %cst_158 : f32 to vector<12x32xf32>
    %399 = arith.mulf %398, %397 : vector<12x32xf32>
    %c0_159 = arith.constant 0 : index
    %c0_160 = arith.constant 0 : index
    %400 = vector.load %arg25[%c0_159, %c0_160] : memref<1x32xf32, #tpu.memory_space<vmem>>, vector<1x32xf32>
    %401 = vector.broadcast %400 : vector<1x32xf32> to vector<12x32xf32>
    %402 = arith.addf %399, %401 : vector<12x32xf32>
    %c2 = arith.constant 2 : index
    %403 = memref.load %arg36[%c2] : memref<4xf32, #tpu.memory_space<smem>>
    %c3 = arith.constant 3 : index
    %404 = memref.load %arg36[%c3] : memref<4xf32, #tpu.memory_space<smem>>
    %405 = vector.broadcast %403 : f32 to vector<16x32xf32>
    %406 = arith.mulf %314, %405 : vector<16x32xf32>
    %cst_161 = arith.constant 1.000000e+00 : f32
    %407 = arith.subf %cst_161, %403 : f32
    %408 = vector.broadcast %407 : f32 to vector<16x32xf32>
    %409 = arith.mulf %222, %408 : vector<16x32xf32>
    %410 = arith.addf %406, %409 : vector<16x32xf32>
    %cst_162 = arith.constant dense<0.000000e+00> : vector<16xf32>
    %411 = vector.multi_reduction <add>, %410, %cst_162 [1] : vector<16x32xf32> to vector<16xf32>
    %412 = vector.shape_cast %411 : vector<16xf32> to vector<16x1xf32>
    %cst_163 = arith.constant 3.200000e+01 : f32
    %413 = vector.broadcast %cst_163 : f32 to vector<16x1xf32>
    %414 = arith.divf %412, %413 : vector<16x1xf32>
    %415 = vector.broadcast %414 : vector<16x1xf32> to vector<16x32xf32>
    %416 = arith.subf %410, %415 : vector<16x32xf32>
    %417 = arith.mulf %416, %416 : vector<16x32xf32>
    %cst_164 = arith.constant dense<0.000000e+00> : vector<16xf32>
    %418 = vector.multi_reduction <add>, %417, %cst_164 [1] : vector<16x32xf32> to vector<16xf32>
    %419 = vector.shape_cast %418 : vector<16xf32> to vector<16x1xf32>
    %cst_165 = arith.constant 3.200000e+01 : f32
    %420 = vector.broadcast %cst_165 : f32 to vector<16x1xf32>
    %421 = arith.divf %419, %420 : vector<16x1xf32>
    %422 = vector.broadcast %414 : vector<16x1xf32> to vector<16x32xf32>
    %423 = arith.subf %410, %422 : vector<16x32xf32>
    %cst_166 = arith.constant 9.99999974E-6 : f32
    %424 = vector.broadcast %cst_166 : f32 to vector<16x1xf32>
    %425 = arith.addf %421, %424 : vector<16x1xf32>
    %426 = math.rsqrt %425 : vector<16x1xf32>
    %427 = vector.broadcast %426 : vector<16x1xf32> to vector<16x32xf32>
    %428 = arith.mulf %423, %427 : vector<16x32xf32>
    %c0_167 = arith.constant 0 : index
    %c0_168 = arith.constant 0 : index
    %429 = vector.load %arg26[%c0_167, %c0_168] : memref<1x32xf32, #tpu.memory_space<vmem>>, vector<1x32xf32>
    %430 = vector.broadcast %429 : vector<1x32xf32> to vector<16x32xf32>
    %431 = arith.mulf %428, %430 : vector<16x32xf32>
    %c0_169 = arith.constant 0 : index
    %c0_170 = arith.constant 0 : index
    %432 = vector.load %arg27[%c0_169, %c0_170] : memref<1x32xf32, #tpu.memory_space<vmem>>, vector<1x32xf32>
    %433 = vector.broadcast %432 : vector<1x32xf32> to vector<16x32xf32>
    %434 = arith.addf %431, %433 : vector<16x32xf32>
    %435 = vector.broadcast %404 : f32 to vector<12x32xf32>
    %436 = arith.mulf %402, %435 : vector<12x32xf32>
    %cst_171 = arith.constant 1.000000e+00 : f32
    %437 = arith.subf %cst_171, %404 : f32
    %438 = vector.broadcast %437 : f32 to vector<12x32xf32>
    %439 = arith.mulf %252, %438 : vector<12x32xf32>
    %440 = arith.addf %436, %439 : vector<12x32xf32>
    %cst_172 = arith.constant dense<0.000000e+00> : vector<12xf32>
    %441 = vector.multi_reduction <add>, %440, %cst_172 [1] : vector<12x32xf32> to vector<12xf32>
    %442 = vector.shape_cast %441 : vector<12xf32> to vector<12x1xf32>
    %cst_173 = arith.constant 3.200000e+01 : f32
    %443 = vector.broadcast %cst_173 : f32 to vector<12x1xf32>
    %444 = arith.divf %442, %443 : vector<12x1xf32>
    %445 = vector.broadcast %444 : vector<12x1xf32> to vector<12x32xf32>
    %446 = arith.subf %440, %445 : vector<12x32xf32>
    %447 = arith.mulf %446, %446 : vector<12x32xf32>
    %cst_174 = arith.constant dense<0.000000e+00> : vector<12xf32>
    %448 = vector.multi_reduction <add>, %447, %cst_174 [1] : vector<12x32xf32> to vector<12xf32>
    %449 = vector.shape_cast %448 : vector<12xf32> to vector<12x1xf32>
    %cst_175 = arith.constant 3.200000e+01 : f32
    %450 = vector.broadcast %cst_175 : f32 to vector<12x1xf32>
    %451 = arith.divf %449, %450 : vector<12x1xf32>
    %452 = vector.broadcast %444 : vector<12x1xf32> to vector<12x32xf32>
    %453 = arith.subf %440, %452 : vector<12x32xf32>
    %cst_176 = arith.constant 9.99999974E-6 : f32
    %454 = vector.broadcast %cst_176 : f32 to vector<12x1xf32>
    %455 = arith.addf %451, %454 : vector<12x1xf32>
    %456 = math.rsqrt %455 : vector<12x1xf32>
    %457 = vector.broadcast %456 : vector<12x1xf32> to vector<12x32xf32>
    %458 = arith.mulf %453, %457 : vector<12x32xf32>
    %c0_177 = arith.constant 0 : index
    %c0_178 = arith.constant 0 : index
    %459 = vector.load %arg28[%c0_177, %c0_178] : memref<1x32xf32, #tpu.memory_space<vmem>>, vector<1x32xf32>
    %460 = vector.broadcast %459 : vector<1x32xf32> to vector<12x32xf32>
    %461 = arith.mulf %458, %460 : vector<12x32xf32>
    %c0_179 = arith.constant 0 : index
    %c0_180 = arith.constant 0 : index
    %462 = vector.load %arg29[%c0_179, %c0_180] : memref<1x32xf32, #tpu.memory_space<vmem>>, vector<1x32xf32>
    %463 = vector.broadcast %462 : vector<1x32xf32> to vector<12x32xf32>
    %464 = arith.addf %461, %463 : vector<12x32xf32>
    %c0_181 = arith.constant 0 : index
    %c0_182 = arith.constant 0 : index
    %465 = vector.load %arg38[%c0_181, %c0_182] : memref<12x32xf32, #tpu.memory_space<vmem>>, vector<12x32xf32>
    tpu.vector_store %arg38[%c0_181, %c0_182], %464 {strides = array<i32>} : memref<12x32xf32, #tpu.memory_space<vmem>>, vector<12x32xf32>,
    %c0_183 = arith.constant 0 : index
    %c0_184 = arith.constant 0 : index
    %466 = vector.load %arg30[%c0_183, %c0_184] : memref<32x32xf32, #tpu.memory_space<vmem>>, vector<32x32xf32>
    %cst_185 = arith.constant dense<0.000000e+00> : vector<16x32xf32>
    %467 = tpu.matmul %434, %466, %cst_185 {dimension_numbers = #tpu.dot_dimension_numbers<[1], [0], [0], [1], [0, 0, 1, 1], [], []>} : vector<16x32xf32>, vector<32x32xf32>, vector<16x32xf32> -> vector<16x32xf32>
    %c0_186 = arith.constant 0 : index
    %c0_187 = arith.constant 0 : index
    %468 = vector.load %arg31[%c0_186, %c0_187] : memref<1x32xf32, #tpu.memory_space<vmem>>, vector<1x32xf32>
    %469 = vector.broadcast %468 : vector<1x32xf32> to vector<16x32xf32>
    %470 = arith.addf %467, %469 : vector<16x32xf32>
    %c0_188 = arith.constant 0 : index
    %c0_189 = arith.constant 0 : index
    %471 = vector.load %arg5[%c0_188, %c0_189] : memref<6x16xf32, #tpu.memory_space<vmem>>, vector<6x16xf32>
    %cst_190 = arith.constant dense<0.000000e+00> : vector<6x32xf32>
    %472 = tpu.matmul %471, %470, %cst_190 {dimension_numbers = #tpu.dot_dimension_numbers<[1], [0], [0], [1], [0, 0, 1, 1], [], []>} : vector<6x16xf32>, vector<16x32xf32>, vector<6x32xf32> -> vector<6x32xf32>
    %c0_191 = arith.constant 0 : index
    %c0_192 = arith.constant 0 : index
    %473 = vector.load %arg32[%c0_191, %c0_192] : memref<32x16xf32, #tpu.memory_space<vmem>>, vector<32x16xf32>
    %cst_193 = arith.constant dense<0.000000e+00> : vector<6x16xf32>
    %474 = tpu.matmul %472, %473, %cst_193 {dimension_numbers = #tpu.dot_dimension_numbers<[1], [0], [0], [1], [0, 0, 1, 1], [], []>} : vector<6x32xf32>, vector<32x16xf32>, vector<6x16xf32> -> vector<6x16xf32>
    %c0_194 = arith.constant 0 : index
    %c0_195 = arith.constant 0 : index
    %475 = vector.load %arg33[%c0_194, %c0_195] : memref<1x16xf32, #tpu.memory_space<vmem>>, vector<1x16xf32>
    %476 = vector.broadcast %475 : vector<1x16xf32> to vector<6x16xf32>
    %477 = arith.addf %474, %476 : vector<6x16xf32>
    %cst_196 = arith.constant 0.000000e+00 : f32
    %478 = vector.broadcast %cst_196 : f32 to vector<6x16xf32>
    %479 = arith.maximumf %477, %478 : vector<6x16xf32>
    %c0_197 = arith.constant 0 : index
    %c0_198 = arith.constant 0 : index
    %480 = vector.load %arg34[%c0_197, %c0_198] : memref<16x4xf32, #tpu.memory_space<vmem>>, vector<16x4xf32>
    %cst_199 = arith.constant dense<0.000000e+00> : vector<6x4xf32>
    %481 = tpu.matmul %479, %480, %cst_199 {dimension_numbers = #tpu.dot_dimension_numbers<[1], [0], [0], [1], [0, 0, 1, 1], [], []>} : vector<6x16xf32>, vector<16x4xf32>, vector<6x4xf32> -> vector<6x4xf32>
    %c0_200 = arith.constant 0 : index
    %c0_201 = arith.constant 0 : index
    %482 = vector.load %arg35[%c0_200, %c0_201] : memref<1x4xf32, #tpu.memory_space<vmem>>, vector<1x4xf32>
    %483 = vector.broadcast %482 : vector<1x4xf32> to vector<6x4xf32>
    %484 = arith.addf %481, %483 : vector<6x4xf32>
    %cst_202 = arith.constant dense<0xFF800000> : vector<6xf32>
    %485 = vector.multi_reduction <maximumf>, %484, %cst_202 [1] : vector<6x4xf32> to vector<6xf32>
    %486 = vector.shape_cast %485 : vector<6xf32> to vector<6x1xf32>
    %487 = vector.broadcast %486 : vector<6x1xf32> to vector<6x4xf32>
    %488 = arith.subf %484, %487 : vector<6x4xf32>
    %489 = math.exp %488 : vector<6x4xf32>
    %cst_203 = arith.constant dense<0.000000e+00> : vector<6xf32>
    %490 = vector.multi_reduction <add>, %489, %cst_203 [1] : vector<6x4xf32> to vector<6xf32>
    %491 = vector.shape_cast %490 : vector<6xf32> to vector<6x1xf32>
    %492 = math.log %491 : vector<6x1xf32>
    %493 = arith.addf %486, %492 : vector<6x1xf32>
    %494 = vector.broadcast %493 : vector<6x1xf32> to vector<6x4xf32>
    %495 = arith.subf %484, %494 : vector<6x4xf32>
    %c0_204 = arith.constant 0 : index
    %c0_205 = arith.constant 0 : index
    %496 = vector.load %arg37[%c0_204, %c0_205] : memref<6x4xf32, #tpu.memory_space<vmem>>, vector<6x4xf32>
    tpu.vector_store %arg37[%c0_204, %c0_205], %495 {strides = array<i32>} : memref<6x4xf32, #tpu.memory_space<vmem>>, vector<6x4xf32>,
    return
  }
}

</mosaic_0001>

<llo_original>
// kernel: rtcs_hgt_forward_fused.1
$region0: #{rtcs_hgt_forward_fused.1}
  #allocation0 [shape = 'u32[]', space=smem, size = 0x4, offset = 0x4, fixed_abs, tag = 'smem constant byte address 0x4 - core index']
  #allocation1 [shape = 'u32[144,128]{1,0:T(1,128)}', space=vmem, size = 0x12000, scoped, tag = 'internal scratch']
  %s0 = inlined_call_operand.smem [shape: u32[39], index: -1, kind: input, shape index: {}]
  %s1 = sld [smem:[%s0]]
  %s2 = scalar_lea.smem %s0, 1
  %s3 = sld [smem:[%s2]]
  %s4 = scalar_lea.smem %s0, 2
  %s5 = sld [smem:[%s4]]
  %s6 = scalar_lea.smem %s0, 3
  %s7 = sld [smem:[%s6]]
  %s8 = scalar_lea.smem %s0, 4
  %s9 = sld [smem:[%s8]]
  %s10 = scalar_lea.smem %s0, 5
  %s11 = sld [smem:[%s10]]
  %s12 = scalar_lea.smem %s0, 6
  %s13 = sld [smem:[%s12]]
  %s14 = scalar_lea.smem %s0, 7
  %s15 = sld [smem:[%s14]]
  %s16 = scalar_lea.smem %s0, 8
  %s17 = sld [smem:[%s16]]
  %s18 = scalar_lea.smem %s0, 9
  %s19 = sld [smem:[%s18]]
  %s20 = scalar_lea.smem %s0, 10
  %s21 = sld [smem:[%s20]]
  %s22 = scalar_lea.smem %s0, 11
  %s23 = sld [smem:[%s22]]
  %s24 = scalar_lea.smem %s0, 12
  %s25 = sld [smem:[%s24]]
  %s26 = scalar_lea.smem %s0, 13
  %s27 = sld [smem:[%s26]]
  %s28 = scalar_lea.smem %s0, 14
  %s29 = sld [smem:[%s28]]
  %s30 = scalar_lea.smem %s0, 15
  %s31 = sld [smem:[%s30]]
  %s32 = scalar_lea.smem %s0, 16
  %s33 = sld [smem:[%s32]]
  %s34 = scalar_lea.smem %s0, 17
  %s35 = sld [smem:[%s34]]
  %s36 = scalar_lea.smem %s0, 18
  %s37 = sld [smem:[%s36]]
  %s38 = scalar_lea.smem %s0, 19
  %s39 = sld [smem:[%s38]]
  %s40 = scalar_lea.smem %s0, 20
  %s41 = sld [smem:[%s40]]
  %s42 = scalar_lea.smem %s0, 21
  %s43 = sld [smem:[%s42]]
  %s44 = scalar_lea.smem %s0, 22
  %s45 = sld [smem:[%s44]]
  %s46 = scalar_lea.smem %s0, 23
  %s47 = sld [smem:[%s46]]
  %s48 = scalar_lea.smem %s0, 24
  %s49 = sld [smem:[%s48]]
  %s50 = scalar_lea.smem %s0, 25
  %s51 = sld [smem:[%s50]]
  %s52 = scalar_lea.smem %s0, 26
  %s53 = sld [smem:[%s52]]
  %s54 = scalar_lea.smem %s0, 27
  %s55 = sld [smem:[%s54]]
  %s56 = scalar_lea.smem %s0, 28
  %s57 = sld [smem:[%s56]]
  %s58 = scalar_lea.smem %s0, 29
  %s59 = sld [smem:[%s58]]
  %s60 = scalar_lea.smem %s0, 30
  %s61 = sld [smem:[%s60]]
  %s62 = scalar_lea.smem %s0, 31
  %s63 = sld [smem:[%s62]]
  %s64 = scalar_lea.smem %s0, 32
  %s65 = sld [smem:[%s64]]
  %s66 = scalar_lea.smem %s0, 33
  %s67 = sld [smem:[%s66]]
  %s68 = scalar_lea.smem %s0, 34
  %s69 = sld [smem:[%s68]]
  %s70 = scalar_lea.smem %s0, 35
  %s71 = sld [smem:[%s70]]
  %s72 = scalar_lea.smem %s0, 36
  %s73 = sld [smem:[%s72]]
  %s74 = scalar_lea.smem %s0, 37
  %s75 = sld [smem:[%s74]]
  %s76 = scalar_lea.smem %s0, 38
  %s77 = sld [smem:[%s76]]
  %78 = xla_tuple %s75, %s77
  %s79 = sld [smem:[#allocation0]]
  $region170: #{rtcs_hgt_forward_fused.1} parent=0
    _
  %s81 = ssub.s32 1, %s79
  %s82 = scalar_select 0, %s81, %s79
  $region1: #{rtcs_hgt_forward_fused.1} parent=0
    #allocation2 [shape = 'u8[512]{0}', space=smem, size = 0x200, scoped, tag = 'input window, operand 36, single buffered']
    #allocation3 [shape = 's32[1]{0}', space=sflag, size = 0x4, scoped, tag = 'scoped memory for rtcs_hgt_forward_fused.1']
    #allocation4 [shape = 's32[1]{0}', space=sflag, size = 0x4, scoped, tag = 'scoped memory for rtcs_hgt_forward_fused.1']
    #allocation5 [shape = 'u8[8192]{0}', space=vmem, size = 0x2000, scoped, tag = 'output window, operand 1, single buffered']
    %83 = vsyncpa [#allocation4], 0
    %84 = vsyncpa [#allocation3], 0
    // Predicated region
    $region2: #{rtcs_hgt_forward_fused.1} parent=1 // pred_check
      _
    $region3: #{rtcs_hgt_forward_fused.1} parent=1 // pred_check_branch
      %86 = sbr.rel (0) target = $region5
    $region4: #{rtcs_hgt_forward_fused.1} parent=1 // pred_region
      _
    $region5: #{rtcs_hgt_forward_fused.1} parent=1 // pred_fallthru
      _
    // Predicated region
    $region6: #{rtcs_hgt_forward_fused.1} parent=1 // pred_check
      _
    $region7: #{rtcs_hgt_forward_fused.1} parent=1 // pred_check_branch
      %88 = sbr.rel (0) target = $region9
    $region8: #{rtcs_hgt_forward_fused.1} parent=1 // pred_region
      _
    $region9: #{rtcs_hgt_forward_fused.1} parent=1 // pred_fallthru
      _
    // Predicated region
    $region10: #{rtcs_hgt_forward_fused.1} parent=1 // pred_check
      _
    $region11: #{rtcs_hgt_forward_fused.1} parent=1 // pred_check_branch
      %90 = sbr.rel (0) target = $region13
    $region12: #{rtcs_hgt_forward_fused.1} parent=1 // pred_region
      _
    $region13: #{rtcs_hgt_forward_fused.1} parent=1 // pred_fallthru
      _
    // Predicated region
    $region14: #{rtcs_hgt_forward_fused.1} parent=1 // pred_check
      _
    $region15: #{rtcs_hgt_forward_fused.1} parent=1 // pred_check_branch
      %92 = sbr.rel (0) target = $region17
    $region16: #{rtcs_hgt_forward_fused.1} parent=1 // pred_region
      _
    $region17: #{rtcs_hgt_forward_fused.1} parent=1 // pred_fallthru
      _
    // Predicated region
    $region18: #{rtcs_hgt_forward_fused.1} parent=1 // pred_check
      _
    $region19: #{rtcs_hgt_forward_fused.1} parent=1 // pred_check_branch
      %94 = sbr.rel (0) target = $region21
    $region20: #{rtcs_hgt_forward_fused.1} parent=1 // pred_region
      _
    $region21: #{rtcs_hgt_forward_fused.1} parent=1 // pred_fallthru
      _
    // Predicated region
    $region22: #{rtcs_hgt_forward_fused.1} parent=1 // pred_check
      _
    $region23: #{rtcs_hgt_forward_fused.1} parent=1 // pred_check_branch
      %96 = sbr.rel (0) target = $region25
    $region24: #{rtcs_hgt_forward_fused.1} parent=1 // pred_region
      _
    $region25: #{rtcs_hgt_forward_fused.1} parent=1 // pred_fallthru
      _
    // Predicated region
    $region26: #{rtcs_hgt_forward_fused.1} parent=1 // pred_check
      _
    $region27: #{rtcs_hgt_forward_fused.1} parent=1 // pred_check_branch
      %98 = sbr.rel (0) target = $region29
    $region28: #{rtcs_hgt_forward_fused.1} parent=1 // pred_region
      _
    $region29: #{rtcs_hgt_forward_fused.1} parent=1 // pred_fallthru
      _
    // Predicated region
    $region30: #{rtcs_hgt_forward_fused.1} parent=1 // pred_check
      _
    $region31: #{rtcs_hgt_forward_fused.1} parent=1 // pred_check_branch
      %100 = sbr.rel (0) target = $region33
    $region32: #{rtcs_hgt_forward_fused.1} parent=1 // pred_region
      _
    $region33: #{rtcs_hgt_forward_fused.1} parent=1 // pred_fallthru
      _
    // Predicated region
    $region34: #{rtcs_hgt_forward_fused.1} parent=1 // pred_check
      _
    $region35: #{rtcs_hgt_forward_fused.1} parent=1 // pred_check_branch
      %102 = sbr.rel (0) target = $region37
    $region36: #{rtcs_hgt_forward_fused.1} parent=1 // pred_region
      _
    $region37: #{rtcs_hgt_forward_fused.1} parent=1 // pred_fallthru
      _
    // Predicated region
    $region38: #{rtcs_hgt_forward_fused.1} parent=1 // pred_check
      _
    $region39: #{rtcs_hgt_forward_fused.1} parent=1 // pred_check_branch
      %104 = sbr.rel (0) target = $region41
    $region40: #{rtcs_hgt_forward_fused.1} parent=1 // pred_region
      _
    $region41: #{rtcs_hgt_forward_fused.1} parent=1 // pred_fallthru
      _
    // Predicated region
    $region42: #{rtcs_hgt_forward_fused.1} parent=1 // pred_check
      _
    $region43: #{rtcs_hgt_forward_fused.1} parent=1 // pred_check_branch
      %106 = sbr.rel (0) target = $region45
    $region44: #{rtcs_hgt_forward_fused.1} parent=1 // pred_region
      _
    $region45: #{rtcs_hgt_forward_fused.1} parent=1 // pred_fallthru
      _
    // Predicated region
    $region46: #{rtcs_hgt_forward_fused.1} parent=1 // pred_check
      _
    $region47: #{rtcs_hgt_forward_fused.1} parent=1 // pred_check_branch
      %108 = sbr.rel (0) target = $region49
    $region48: #{rtcs_hgt_forward_fused.1} parent=1 // pred_region
      _
    $region49: #{rtcs_hgt_forward_fused.1} parent=1 // pred_fallthru
      _
    // Predicated region
    $region50: #{rtcs_hgt_forward_fused.1} parent=1 // pred_check
      _
    $region51: #{rtcs_hgt_forward_fused.1} parent=1 // pred_check_branch
      %110 = sbr.rel (0) target = $region53
    $region52: #{rtcs_hgt_forward_fused.1} parent=1 // pred_region
      _
    $region53: #{rtcs_hgt_forward_fused.1} parent=1 // pred_fallthru
      _
    // Predicated region
    $region54: #{rtcs_hgt_forward_fused.1} parent=1 // pred_check
      _
    $region55: #{rtcs_hgt_forward_fused.1} parent=1 // pred_check_branch
      %112 = sbr.rel (0) target = $region57
    $region56: #{rtcs_hgt_forward_fused.1} parent=1 // pred_region
      _
    $region57: #{rtcs_hgt_forward_fused.1} parent=1 // pred_fallthru
      _
    // Predicated region
    $region58: #{rtcs_hgt_forward_fused.1} parent=1 // pred_check
      _
    $region59: #{rtcs_hgt_forward_fused.1} parent=1 // pred_check_branch
      %114 = sbr.rel (0) target = $region61
    $region60: #{rtcs_hgt_forward_fused.1} parent=1 // pred_region
      _
    $region61: #{rtcs_hgt_forward_fused.1} parent=1 // pred_fallthru
      _
    // Predicated region
    $region62: #{rtcs_hgt_forward_fused.1} parent=1 // pred_check
      _
    $region63: #{rtcs_hgt_forward_fused.1} parent=1 // pred_check_branch
      %116 = sbr.rel (0) target = $region65
    $region64: #{rtcs_hgt_forward_fused.1} parent=1 // pred_region
      _
    $region65: #{rtcs_hgt_forward_fused.1} parent=1 // pred_fallthru
      _
    // Predicated region
    $region66: #{rtcs_hgt_forward_fused.1} parent=1 // pred_check
      _
    $region67: #{rtcs_hgt_forward_fused.1} parent=1 // pred_check_branch
      %118 = sbr.rel (0) target = $region69
    $region68: #{rtcs_hgt_forward_fused.1} parent=1 // pred_region
      _
    $region69: #{rtcs_hgt_forward_fused.1} parent=1 // pred_fallthru
      _
    // Predicated region
    $region70: #{rtcs_hgt_forward_fused.1} parent=1 // pred_check
      _
    $region71: #{rtcs_hgt_forward_fused.1} parent=1 // pred_check_branch
      %120 = sbr.rel (0) target = $region73
    $region72: #{rtcs_hgt_forward_fused.1} parent=1 // pred_region
      _
    $region73: #{rtcs_hgt_forward_fused.1} parent=1 // pred_fallthru
      _
    // Predicated region
    $region74: #{rtcs_hgt_forward_fused.1} parent=1 // pred_check
      _
    $region75: #{rtcs_hgt_forward_fused.1} parent=1 // pred_check_branch
      %122 = sbr.rel (0) target = $region77
    $region76: #{rtcs_hgt_forward_fused.1} parent=1 // pred_region
      _
    $region77: #{rtcs_hgt_forward_fused.1} parent=1 // pred_fallthru
      _
    // Predicated region
    $region78: #{rtcs_hgt_forward_fused.1} parent=1 // pred_check
      _
    $region79: #{rtcs_hgt_forward_fused.1} parent=1 // pred_check_branch
      %124 = sbr.rel (0) target = $region81
    $region80: #{rtcs_hgt_forward_fused.1} parent=1 // pred_region
      _
    $region81: #{rtcs_hgt_forward_fused.1} parent=1 // pred_fallthru
      _
    // Predicated region
    $region82: #{rtcs_hgt_forward_fused.1} parent=1 // pred_check
      _
    $region83: #{rtcs_hgt_forward_fused.1} parent=1 // pred_check_branch
      %126 = sbr.rel (0) target = $region85
    $region84: #{rtcs_hgt_forward_fused.1} parent=1 // pred_region
      _
    $region85: #{rtcs_hgt_forward_fused.1} parent=1 // pred_fallthru
      _
    // Predicated region
    $region86: #{rtcs_hgt_forward_fused.1} parent=1 // pred_check
      _
    $region87: #{rtcs_hgt_forward_fused.1} parent=1 // pred_check_branch
      %128 = sbr.rel (0) target = $region89
    $region88: #{rtcs_hgt_forward_fused.1} parent=1 // pred_region
      _
    $region89: #{rtcs_hgt_forward_fused.1} parent=1 // pred_fallthru
      _
    // Predicated region
    $region90: #{rtcs_hgt_forward_fused.1} parent=1 // pred_check
      _
    $region91: #{rtcs_hgt_forward_fused.1} parent=1 // pred_check_branch
      %130 = sbr.rel (0) target = $region93
    $region92: #{rtcs_hgt_forward_fused.1} parent=1 // pred_region
      _
    $region93: #{rtcs_hgt_forward_fused.1} parent=1 // pred_fallthru
      _
    // Predicated region
    $region94: #{rtcs_hgt_forward_fused.1} parent=1 // pred_check
      _
    $region95: #{rtcs_hgt_forward_fused.1} parent=1 // pred_check_branch
      %132 = sbr.rel (0) target = $region97
    $region96: #{rtcs_hgt_forward_fused.1} parent=1 // pred_region
      _
    $region97: #{rtcs_hgt_forward_fused.1} parent=1 // pred_fallthru
      _
    // Predicated region
    $region98: #{rtcs_hgt_forward_fused.1} parent=1 // pred_check
      _
    $region99: #{rtcs_hgt_forward_fused.1} parent=1 // pred_check_branch
      %134 = sbr.rel (0) target = $region101
    $region100: #{rtcs_hgt_forward_fused.1} parent=1 // pred_region
      _
    $region101: #{rtcs_hgt_forward_fused.1} parent=1 // pred_fallthru
      _
    // Predicated region
    $region102: #{rtcs_hgt_forward_fused.1} parent=1 // pred_check
      _
    $region103: #{rtcs_hgt_forward_fused.1} parent=1 // pred_check_branch
      %136 = sbr.rel (0) target = $region105
    $region104: #{rtcs_hgt_forward_fused.1} parent=1 // pred_region
      _
    $region105: #{rtcs_hgt_forward_fused.1} parent=1 // pred_fallthru
      _
    // Predicated region
    $region106: #{rtcs_hgt_forward_fused.1} parent=1 // pred_check
      _
    $region107: #{rtcs_hgt_forward_fused.1} parent=1 // pred_check_branch
      %138 = sbr.rel (0) target = $region109
    $region108: #{rtcs_hgt_forward_fused.1} parent=1 // pred_region
      _
    $region109: #{rtcs_hgt_forward_fused.1} parent=1 // pred_fallthru
      _
    // Predicated region
    $region110: #{rtcs_hgt_forward_fused.1} parent=1 // pred_check
      _
    $region111: #{rtcs_hgt_forward_fused.1} parent=1 // pred_check_branch
      %140 = sbr.rel (0) target = $region113
    $region112: #{rtcs_hgt_forward_fused.1} parent=1 // pred_region
      _
    $region113: #{rtcs_hgt_forward_fused.1} parent=1 // pred_fallthru
      _
    // Predicated region
    $region114: #{rtcs_hgt_forward_fused.1} parent=1 // pred_check
      _
    $region115: #{rtcs_hgt_forward_fused.1} parent=1 // pred_check_branch
      %142 = sbr.rel (0) target = $region117
    $region116: #{rtcs_hgt_forward_fused.1} parent=1 // pred_region
      _
    $region117: #{rtcs_hgt_forward_fused.1} parent=1 // pred_fallthru
      _
    // Predicated region
    $region118: #{rtcs_hgt_forward_fused.1} parent=1 // pred_check
      _
    $region119: #{rtcs_hgt_forward_fused.1} parent=1 // pred_check_branch
      %144 = sbr.rel (0) target = $region121
    $region120: #{rtcs_hgt_forward_fused.1} parent=1 // pred_region
      _
    $region121: #{rtcs_hgt_forward_fused.1} parent=1 // pred_fallthru
      _
    // Predicated region
    $region122: #{rtcs_hgt_forward_fused.1} parent=1 // pred_check
      _
    $region123: #{rtcs_hgt_forward_fused.1} parent=1 // pred_check_branch
      %146 = sbr.rel (0) target = $region125
    $region124: #{rtcs_hgt_forward_fused.1} parent=1 // pred_region
      _
    $region125: #{rtcs_hgt_forward_fused.1} parent=1 // pred_fallthru
      _
    // Predicated region
    $region126: #{rtcs_hgt_forward_fused.1} parent=1 // pred_check
      _
    $region127: #{rtcs_hgt_forward_fused.1} parent=1 // pred_check_branch
      %148 = sbr.rel (0) target = $region129
    $region128: #{rtcs_hgt_forward_fused.1} parent=1 // pred_region
      _
    $region129: #{rtcs_hgt_forward_fused.1} parent=1 // pred_fallthru
      _
    // Predicated region
    $region130: #{rtcs_hgt_forward_fused.1} parent=1 // pred_check
      _
    $region131: #{rtcs_hgt_forward_fused.1} parent=1 // pred_check_branch
      %150 = sbr.rel (0) target = $region133
    $region132: #{rtcs_hgt_forward_fused.1} parent=1 // pred_region
      _
    $region133: #{rtcs_hgt_forward_fused.1} parent=1 // pred_fallthru
      _
    // Predicated region
    $region134: #{rtcs_hgt_forward_fused.1} parent=1 // pred_check
      _
    $region135: #{rtcs_hgt_forward_fused.1} parent=1 // pred_check_branch
      %152 = sbr.rel (0) target = $region137
    $region136: #{rtcs_hgt_forward_fused.1} parent=1 // pred_region
      _
    $region137: #{rtcs_hgt_forward_fused.1} parent=1 // pred_fallthru
      _
    // Predicated region
    $region138: #{rtcs_hgt_forward_fused.1} parent=1 // pred_check
      _
    $region139: #{rtcs_hgt_forward_fused.1} parent=1 // pred_check_branch
      %154 = sbr.rel (0) target = $region141
    $region140: #{rtcs_hgt_forward_fused.1} parent=1 // pred_region
      _
    $region141: #{rtcs_hgt_forward_fused.1} parent=1 // pred_fallthru
      _
    // Predicated region
    $region142: #{rtcs_hgt_forward_fused.1} parent=1 // pred_check
      _
    $region143: #{rtcs_hgt_forward_fused.1} parent=1 // pred_check_branch
      %156 = sbr.rel (0) target = $region145
    $region144: #{rtcs_hgt_forward_fused.1} parent=1 // pred_region
      _
    $region145: #{rtcs_hgt_forward_fused.1} parent=1 // pred_fallthru
      _
    // Predicated region
    $region146: #{rtcs_hgt_forward_fused.1} parent=1 // pred_check
      _
    $region147: #{rtcs_hgt_forward_fused.1} parent=1 // pred_check_branch
      %158 = sbr.rel (0) target = $region149
    $region148: #{rtcs_hgt_forward_fused.1} parent=1 // pred_region
      %s160 = ssub.s32 16, 16
      %161 = vsyncadd [#allocation4], %s160
      %s163 = sshll.u32 %s73, 4
      %s164 = int_to_ptr.vmem [resolvable:$true] %s163
      %166 = dma.vmem_to_smem %s164, 16, [#allocation2], [#allocation4]
    $region149: #{rtcs_hgt_forward_fused.1} parent=1 // pred_fallthru
      _
    // Predicated region
    $region150: #{rtcs_hgt_forward_fused.1} parent=1 // pred_check
      _
    $region151: #{rtcs_hgt_forward_fused.1} parent=1 // pred_check_branch
      %168 = sbr.rel (0) target = $region153
    $region152: #{rtcs_hgt_forward_fused.1} parent=1 // pred_region
      %169 = dma.done [#allocation4], 16
    $region153: #{rtcs_hgt_forward_fused.1} parent=1 // pred_fallthru
      _
    %170 = sfence
    %v171 = vld [vmem:[%s1] sm:$0xff]
    %v172 = vld [vmem:[%s1 + $0x8] sm:$0xff]
    %v173 = vld [vmem:[%s13] sm:$0xff]
    %v174 = vld [vmem:[%s13 + $0x8] sm:$0xff]
    %v175 = vld [vmem:[%s13 + $0x10] sm:$0xff]
    %v176 = vld [vmem:[%s15] sm:$0x1]
    %v178 = vlaneseq
    %v179 = vshrl.u32 %v178, 7
    %v180 = vsub.s32 0, %v179
    %v181 = vrot.slane %v176, %v180
    %vm183 = vcmask 195584
    %v185 = vsel %vm183, %v171, 0
    %v188 = vsel %vm183, %v172, 0
    %190 = vmatprep.subr.mxu0 0.0
    %191 = vmatpush1.msra.mxu0 0.0
    %192 = vmatprep.subr.mxu0 0.0
    %193 = vmatpush1.msra.mxu0 0.0
    %194 = vmatprep.subr.mxu0 0.0
    %195 = vmatpush1.msra.mxu0 0.0
    %196 = vmatprep.subr.mxu0 0.0
    %197 = vmatpush1.msra.mxu0 0.0
    %198 = vmatprep.subr.mxu0 0.0
    %199 = vmatpush1.msra.mxu0 0.0
    %200 = vmatprep.subr.mxu0 0.0
    %201 = vmatpush1.msra.mxu0 0.0
    %202 = vmatprep.subr.mxu0 0.0
    %203 = vmatpush1.msra.mxu0 0.0
    %204 = vmatprep.subr.mxu0 0.0
    %205 = vmatpush1.msra.mxu0 0.0
    %206 = vmatprep.subr.mxu0 0.0
    %207 = vmatpush1.msra.mxu0 0.0
    %208 = vmatprep.subr.mxu0 0.0
    %209 = vmatpush1.msra.mxu0 0.0
    %210 = vmatprep.subr.mxu0 0.0
    %211 = vmatpush1.msra.mxu0 0.0
    %212 = vmatprep.subr.mxu0 0.0
    %213 = vmatpush1.msra.mxu0 0.0
    %214 = vmatprep.subr.mxu0 0.0
    %215 = vmatpush1.msra.mxu0 0.0
    %216 = vmatprep.subr.mxu0 0.0
    %217 = vmatpush1.msra.mxu0 %v175
    %218 = vmatprep.subr.mxu0 0.0
    %219 = vmatpush1.msra.mxu0 %v174
    %220 = vmatprep.subr.mxu0 0.0
    %221 = vmatpush1.msra.mxu0 %v173
    %222 = vmatprep.subr.mxu0 0.0
    %223 = vmatpush2.msra.mxu0 0.0
    %224 = vmatprep.subr.mxu0 0.0
    %225 = vmatpush2.msra.mxu0 0.0
    %226 = vmatprep.subr.mxu0 0.0
    %227 = vmatpush2.msra.mxu0 0.0
    %228 = vmatprep.subr.mxu0 0.0
    %229 = vmatpush2.msra.mxu0 0.0
    %230 = vmatprep.subr.mxu0 0.0
    %231 = vmatpush2.msra.mxu0 0.0
    %232 = vmatprep.subr.mxu0 0.0
    %233 = vmatpush2.msra.mxu0 0.0
    %234 = vmatprep.subr.mxu0 0.0
    %235 = vmatpush2.msra.mxu0 0.0
    %236 = vmatprep.subr.mxu0 0.0
    %237 = vmatpush2.msra.mxu0 0.0
    %238 = vmatprep.subr.mxu0 0.0
    %239 = vmatpush2.msra.mxu0 0.0
    %240 = vmatprep.subr.mxu0 0.0
    %241 = vmatpush2.msra.mxu0 0.0
    %242 = vmatprep.subr.mxu0 0.0
    %243 = vmatpush2.msra.mxu0 0.0
    %244 = vmatprep.subr.mxu0 0.0
    %245 = vmatpush2.msra.mxu0 0.0
    %246 = vmatprep.subr.mxu0 0.0
    %247 = vmatpush2.msra.mxu0 0.0
    %248 = vmatprep.subr.mxu0 0.0
    %249 = vmatpush2.msra.mxu0 0.0
    %250 = vmatprep.subr.mxu0 0.0
    %251 = vmatpush2.msra.mxu0 0.0
    %252 = vmatprep.subr.mxu0 0.0
    %253 = vmatpush2.msra.mxu0 0.0
    %254 = vmatprep.mubr.f32.mxu0 0.0
    %255 = vmatmul.mubr.f32.gmra.mxu0 %v185
    %v256 = vpop.f32.mrf.mxu0
    %v257 = vadd.f32 %v181, %v256
    %v258 = vpop.f32.mrf.mxu0
    %259 = vmatprep.mubr.f32.mxu0 0.0
    %260 = vmatmul.mubr.f32.gmra.mxu0 %v188
    %v261 = vpop.f32.mrf.mxu0
    %v262 = vadd.f32 %v181, %v261
    %v263 = vpop.f32.mrf.mxu0
    %264 = vdwg.mxu0
    %v265 = vmul.f32 %v257, %v257
    %v266 = vmul.f32 %v262, %v262
    %v267 = vmul.f32 %v257, %v265
    %v268 = vmul.f32 %v262, %v266
    %v269 = vmul.f32 %v267, 0.044715
    %v270 = vmul.f32 %v268, 0.044715
    %v271 = vadd.f32 %v257, %v269
    %v272 = vadd.f32 %v262, %v270
    %v273 = vmul.f32 %v271, 0.7978846
    %v274 = vmul.f32 %v272, 0.7978846
    %v275 = vtanh.pop %v273
    %v276 = vtanh.pop %v274
    %v277 = vadd.f32 %v275, 1.0
    %v278 = vadd.f32 %v276, 1.0
    %v279 = vmul.f32 %v277, 0.5
    %v280 = vmul.f32 %v278, 0.5
    %v281 = vmul.f32 %v257, %v279
    %v282 = vmul.f32 %v262, %v280
    %v283 = vld [vmem:[%s3] sm:$0xff]
    %v284 = vld [vmem:[%s3 + $0x8] sm:$0xf]
    %v285 = vld [vmem:[%s17] sm:$0xff]
    %v286 = vld [vmem:[%s17 + $0x8] sm:$0xff]
    %v287 = vld [vmem:[%s17 + $0x10] sm:$0xf]
    %v288 = vld [vmem:[%s19] sm:$0x1]
    %v290 = vlaneseq
    %v291 = vshrl.u32 %v290, 7
    %v292 = vsub.s32 0, %v291
    %v293 = vrot.slane %v288, %v292
    %vm295 = vcmask 162816
    %v297 = vsel %vm295, %v283, 0
    %v300 = vsel %vm295, %v284, 0
    %vm302 = vcmask 1043456
    %v304 = vsel %vm302, %v287, 0
    %306 = vmatprep.subr.mxu0 0.0
    %307 = vmatpush1.msra.mxu0 0.0
    %308 = vmatprep.subr.mxu0 0.0
    %309 = vmatpush1.msra.mxu0 0.0
    %310 = vmatprep.subr.mxu0 0.0
    %311 = vmatpush1.msra.mxu0 0.0
    %312 = vmatprep.subr.mxu0 0.0
    %313 = vmatpush1.msra.mxu0 0.0
    %314 = vmatprep.subr.mxu0 0.0
    %315 = vmatpush1.msra.mxu0 0.0
    %316 = vmatprep.subr.mxu0 0.0
    %317 = vmatpush1.msra.mxu0 0.0
    %318 = vmatprep.subr.mxu0 0.0
    %319 = vmatpush1.msra.mxu0 0.0
    %320 = vmatprep.subr.mxu0 0.0
    %321 = vmatpush1.msra.mxu0 0.0
    %322 = vmatprep.subr.mxu0 0.0
    %323 = vmatpush1.msra.mxu0 0.0
    %324 = vmatprep.subr.mxu0 0.0
    %325 = vmatpush1.msra.mxu0 0.0
    %326 = vmatprep.subr.mxu0 0.0
    %327 = vmatpush1.msra.mxu0 0.0
    %328 = vmatprep.subr.mxu0 0.0
    %329 = vmatpush1.msra.mxu0 0.0
    %330 = vmatprep.subr.mxu0 0.0
    %331 = vmatpush1.msra.mxu0 0.0
    %332 = vmatprep.subr.mxu0 0.0
    %333 = vmatpush1.msra.mxu0 %v304
    %334 = vmatprep.subr.mxu0 0.0
    %335 = vmatpush1.msra.mxu0 %v286
    %336 = vmatprep.subr.mxu0 0.0
    %337 = vmatpush1.msra.mxu0 %v285
    %338 = vmatprep.subr.mxu0 0.0
    %339 = vmatpush2.msra.mxu0 0.0
    %340 = vmatprep.subr.mxu0 0.0
    %341 = vmatpush2.msra.mxu0 0.0
    %342 = vmatprep.subr.mxu0 0.0
    %343 = vmatpush2.msra.mxu0 0.0
    %344 = vmatprep.subr.mxu0 0.0
    %345 = vmatpush2.msra.mxu0 0.0
    %346 = vmatprep.subr.mxu0 0.0
    %347 = vmatpush2.msra.mxu0 0.0
    %348 = vmatprep.subr.mxu0 0.0
    %349 = vmatpush2.msra.mxu0 0.0
    %350 = vmatprep.subr.mxu0 0.0
    %351 = vmatpush2.msra.mxu0 0.0
    %352 = vmatprep.subr.mxu0 0.0
    %353 = vmatpush2.msra.mxu0 0.0
    %354 = vmatprep.subr.mxu0 0.0
    %355 = vmatpush2.msra.mxu0 0.0
    %356 = vmatprep.subr.mxu0 0.0
    %357 = vmatpush2.msra.mxu0 0.0
    %358 = vmatprep.subr.mxu0 0.0
    %359 = vmatpush2.msra.mxu0 0.0
    %360 = vmatprep.subr.mxu0 0.0
    %361 = vmatpush2.msra.mxu0 0.0
    %362 = vmatprep.subr.mxu0 0.0
    %363 = vmatpush2.msra.mxu0 0.0
    %364 = vmatprep.subr.mxu0 0.0
    %365 = vmatpush2.msra.mxu0 0.0
    %366 = vmatprep.subr.mxu0 0.0
    %367 = vmatpush2.msra.mxu0 0.0
    %368 = vmatprep.subr.mxu0 0.0
    %369 = vmatpush2.msra.mxu0 0.0
    %370 = vmatprep.mubr.f32.mxu0 0.0
    %371 = vmatmul.mubr.f32.gmra.mxu0 %v297
    %v372 = vpop.f32.mrf.mxu0
    %v373 = vadd.f32 %v293, %v372
    %v374 = vpop.f32.mrf.mxu0
    %375 = vmatprep.mubr.f32.mxu0 0.0
    %376 = vmatmul.mubr.f32.gmra.mxu0 %v300
    %v377 = vpop.f32.mrf.mxu0
    %v378 = vadd.f32 %v293, %v377
    %v379 = vpop.f32.mrf.mxu0
    %380 = vdwg.mxu0
    %v381 = vmul.f32 %v373, %v373
    %v382 = vmul.f32 %v378, %v378
    %v383 = vmul.f32 %v373, %v381
    %v384 = vmul.f32 %v378, %v382
    %v385 = vmul.f32 %v383, 0.044715
    %v386 = vmul.f32 %v384, 0.044715
    %v387 = vadd.f32 %v373, %v385
    %v388 = vadd.f32 %v378, %v386
    %v389 = vmul.f32 %v387, 0.7978846
    %v390 = vmul.f32 %v388, 0.7978846
    %v391 = vtanh.pop %v389
    %v392 = vtanh.pop %v390
    %v393 = vadd.f32 %v391, 1.0
    %v394 = vadd.f32 %v392, 1.0
    %v395 = vmul.f32 %v393, 0.5
    %v396 = vmul.f32 %v394, 0.5
    %v397 = vmul.f32 %v373, %v395
    %v398 = vmul.f32 %v378, %v396
    %v399 = vld [vmem:[%s5] sm:$0xff]
    %v400 = vld [vmem:[%s5 + $0x8] sm:$0xff]
    %v401 = vld [vmem:[%s7] sm:$0xff]
    %v402 = vld [vmem:[%s7 + $0x8] sm:$0xf]
    %v403 = vld [vmem:[%s9] sm:$0xff]
    %v404 = vld [vmem:[%s9 + $0x8] sm:$0xf]
    %v405 = vld [vmem:[%s21] sm:$0xff]
    %v406 = vld [vmem:[%s21 + $0x8] sm:$0xff]
    %v407 = vld [vmem:[%s21 + $0x10] sm:$0xff]
    %v408 = vld [vmem:[%s21 + $0x18] sm:$0xff]
    %v409 = vld [vmem:[%s23] sm:$0x1]
    %v411 = vlaneseq
    %v412 = vshrl.u32 %v411, 7
    %v413 = vsub.s32 0, %v412
    %v414 = vrot.slane %v409, %v413
    %vm416 = vcmask 261120
    %v418 = vsel %vm416, %v281, 0
    %v421 = vsel %vm416, %v282, 0
    %423 = vmatprep.subr.mxu0 0.0
    %424 = vmatpush1.msra.mxu0 0.0
    %425 = vmatprep.subr.mxu0 0.0
    %426 = vmatpush1.msra.mxu0 0.0
    %427 = vmatprep.subr.mxu0 0.0
    %428 = vmatpush1.msra.mxu0 0.0
    %429 = vmatprep.subr.mxu0 0.0
    %430 = vmatpush1.msra.mxu0 0.0
    %431 = vmatprep.subr.mxu0 0.0
    %432 = vmatpush1.msra.mxu0 0.0
    %433 = vmatprep.subr.mxu0 0.0
    %434 = vmatpush1.msra.mxu0 0.0
    %435 = vmatprep.subr.mxu0 0.0
    %436 = vmatpush1.msra.mxu0 0.0
    %437 = vmatprep.subr.mxu0 0.0
    %438 = vmatpush1.msra.mxu0 0.0
    %439 = vmatprep.subr.mxu0 0.0
    %440 = vmatpush1.msra.mxu0 0.0
    %441 = vmatprep.subr.mxu0 0.0
    %442 = vmatpush1.msra.mxu0 0.0
    %443 = vmatprep.subr.mxu0 0.0
    %444 = vmatpush1.msra.mxu0 0.0
    %445 = vmatprep.subr.mxu0 0.0
    %446 = vmatpush1.msra.mxu0 0.0
    %447 = vmatprep.subr.mxu0 0.0
    %448 = vmatpush1.msra.mxu0 %v408
    %449 = vmatprep.subr.mxu0 0.0
    %450 = vmatpush1.msra.mxu0 %v407
    %451 = vmatprep.subr.mxu0 0.0
    %452 = vmatpush1.msra.mxu0 %v406
    %453 = vmatprep.subr.mxu0 0.0
    %454 = vmatpush1.msra.mxu0 %v405
    %455 = vmatprep.subr.mxu0 0.0
    %456 = vmatpush2.msra.mxu0 0.0
    %457 = vmatprep.subr.mxu0 0.0
    %458 = vmatpush2.msra.mxu0 0.0
    %459 = vmatprep.subr.mxu0 0.0
    %460 = vmatpush2.msra.mxu0 0.0
    %461 = vmatprep.subr.mxu0 0.0
    %462 = vmatpush2.msra.mxu0 0.0
    %463 = vmatprep.subr.mxu0 0.0
    %464 = vmatpush2.msra.mxu0 0.0
    %465 = vmatprep.subr.mxu0 0.0
    %466 = vmatpush2.msra.mxu0 0.0
    %467 = vmatprep.subr.mxu0 0.0
    %468 = vmatpush2.msra.mxu0 0.0
    %469 = vmatprep.subr.mxu0 0.0
    %470 = vmatpush2.msra.mxu0 0.0
    %471 = vmatprep.subr.mxu0 0.0
    %472 = vmatpush2.msra.mxu0 0.0
    %473 = vmatprep.subr.mxu0 0.0
    %474 = vmatpush2.msra.mxu0 0.0
    %475 = vmatprep.subr.mxu0 0.0
    %476 = vmatpush2.msra.mxu0 0.0
    %477 = vmatprep.subr.mxu0 0.0
    %478 = vmatpush2.msra.mxu0 0.0
    %479 = vmatprep.subr.mxu0 0.0
    %480 = vmatpush2.msra.mxu0 0.0
    %481 = vmatprep.subr.mxu0 0.0
    %482 = vmatpush2.msra.mxu0 0.0
    %483 = vmatprep.subr.mxu0 0.0
    %484 = vmatpush2.msra.mxu0 0.0
    %485 = vmatprep.subr.mxu0 0.0
    %486 = vmatpush2.msra.mxu0 0.0
    %487 = vmatprep.mubr.f32.mxu0 0.0
    %488 = vmatmul.mubr.f32.gmra.mxu0 %v418
    %v489 = vpop.f32.mrf.mxu0
    %v490 = vadd.f32 %v414, %v489
    %v491 = vpop.f32.mrf.mxu0
    %492 = vmatprep.mubr.f32.mxu0 0.0
    %493 = vmatmul.mubr.f32.gmra.mxu0 %v421
    %v494 = vpop.f32.mrf.mxu0
    %v495 = vadd.f32 %v414, %v494
    %v496 = vpop.f32.mrf.mxu0
    %497 = vdwg.mxu0
    %v498 = vld [vmem:[%s25] sm:$0xff]
    %v499 = vld [vmem:[%s25 + $0x8] sm:$0xff]
    %v500 = vld [vmem:[%s25 + $0x10] sm:$0xff]
    %v501 = vld [vmem:[%s25 + $0x18] sm:$0xff]
    %v502 = vld [vmem:[%s25 + $0x20] sm:$0xff]
    %v503 = vld [vmem:[%s25 + $0x28] sm:$0xff]
    %v504 = vld [vmem:[%s25 + $0x30] sm:$0xff]
    %v505 = vld [vmem:[%s25 + $0x38] sm:$0xff]
    %v506 = vld [vmem:[%s27] sm:$0x3]
    %v508 = vlaneseq
    %v509 = vshrl.u32 %v508, 7
    %v510 = vsub.s32 0, %v509
    %v511 = vrot.slane %v506, %v510
    %v512 = vlaneseq
    %v513 = vshrl.u32 %v512, 7
    %v514 = vsub.s32 1, %v513
    %v515 = vrot.slane %v506, %v514
    %v519 = vsel %vm416, %v397, 0
    %v522 = vsel %vm416, %v398, 0
    %524 = vmatprep.subr.mxu0 0.0
    %525 = vmatpush1.msra.mxu0 0.0
    %526 = vmatprep.subr.mxu0 0.0
    %527 = vmatpush1.msra.mxu0 0.0
    %528 = vmatprep.subr.mxu0 0.0
    %529 = vmatpush1.msra.mxu0 0.0
    %530 = vmatprep.subr.mxu0 0.0
    %531 = vmatpush1.msra.mxu0 0.0
    %532 = vmatprep.subr.mxu0 0.0
    %533 = vmatpush1.msra.mxu0 0.0
    %534 = vmatprep.subr.mxu0 0.0
    %535 = vmatpush1.msra.mxu0 0.0
    %536 = vmatprep.subr.mxu0 0.0
    %537 = vmatpush1.msra.mxu0 0.0
    %538 = vmatprep.subr.mxu0 0.0
    %539 = vmatpush1.msra.mxu0 0.0
    %540 = vmatprep.subr.mxu0 0.0
    %541 = vmatpush1.msra.mxu0 0.0
    %542 = vmatprep.subr.mxu0 0.0
    %543 = vmatpush1.msra.mxu0 0.0
    %544 = vmatprep.subr.mxu0 0.0
    %545 = vmatpush1.msra.mxu0 0.0
    %546 = vmatprep.subr.mxu0 0.0
    %547 = vmatpush1.msra.mxu0 0.0
    %548 = vmatprep.subr.mxu0 %v505
    %549 = vmatpush1.msra.mxu0 %v504
    %550 = vmatprep.subr.mxu0 %v503
    %551 = vmatpush1.msra.mxu0 %v502
    %552 = vmatprep.subr.mxu0 %v501
    %553 = vmatpush1.msra.mxu0 %v500
    %554 = vmatprep.subr.mxu0 %v499
    %555 = vmatpush1.msra.mxu0 %v498
    %556 = vmatprep.subr.mxu0 0.0
    %557 = vmatpush2.msra.mxu0 0.0
    %558 = vmatprep.subr.mxu0 0.0
    %559 = vmatpush2.msra.mxu0 0.0
    %560 = vmatprep.subr.mxu0 0.0
    %561 = vmatpush2.msra.mxu0 0.0
    %562 = vmatprep.subr.mxu0 0.0
    %563 = vmatpush2.msra.mxu0 0.0
    %564 = vmatprep.subr.mxu0 0.0
    %565 = vmatpush2.msra.mxu0 0.0
    %566 = vmatprep.subr.mxu0 0.0
    %567 = vmatpush2.msra.mxu0 0.0
    %568 = vmatprep.subr.mxu0 0.0
    %569 = vmatpush2.msra.mxu0 0.0
    %570 = vmatprep.subr.mxu0 0.0
    %571 = vmatpush2.msra.mxu0 0.0
    %572 = vmatprep.subr.mxu0 0.0
    %573 = vmatpush2.msra.mxu0 0.0
    %574 = vmatprep.subr.mxu0 0.0
    %575 = vmatpush2.msra.mxu0 0.0
    %576 = vmatprep.subr.mxu0 0.0
    %577 = vmatpush2.msra.mxu0 0.0
    %578 = vmatprep.subr.mxu0 0.0
    %579 = vmatpush2.msra.mxu0 0.0
    %580 = vmatprep.subr.mxu0 0.0
    %581 = vmatpush2.msra.mxu0 0.0
    %582 = vmatprep.subr.mxu0 0.0
    %583 = vmatpush2.msra.mxu0 0.0
    %584 = vmatprep.subr.mxu0 0.0
    %585 = vmatpush2.msra.mxu0 0.0
    %586 = vmatprep.subr.mxu0 0.0
    %587 = vmatpush2.msra.mxu0 0.0
    %588 = vmatprep.mubr.f32.mxu0 0.0
    %589 = vmatmul.mubr.f32.gmra.mxu0 %v519
    %v590 = vpop.f32.mrf.mxu0
    %v591 = vadd.f32 %v511, %v590
    %v592 = vpop.f32.mrf.mxu0
    %v593 = vadd.f32 %v515, %v592
    %594 = vmatprep.mubr.f32.mxu0 0.0
    %595 = vmatmul.mubr.f32.gmra.mxu0 %v522
    %v596 = vpop.f32.mrf.mxu0
    %v597 = vadd.f32 %v511, %v596
    %v598 = vpop.f32.mrf.mxu0
    %v599 = vadd.f32 %v515, %v598
    %600 = vdwg.mxu0
    %603 = vrot.lane.b32.xlu0 %v591, 96
    %v604 = vpop.permute.xlu0 %603
    %605 = vrot.lane.b32.xlu0 %v597, 96
    %v606 = vpop.permute.xlu0 %605
    %vm607 = vcmask 130048
    %v609 = vsel %vm607, %v490, 0
    %v612 = vsel %vm607, %v495, 0
    %v614 = vsel %vm607, %v604, 0
    %v616 = vsel %vm607, %v606, 0
    %618 = vmatprep.subr.mxu0 0.0
    %619 = vmatpush1.xpose.msra.mxu0 0.0
    %620 = vmatprep.subr.mxu0 0.0
    %621 = vmatpush1.xpose.msra.mxu0 0.0
    %622 = vmatprep.subr.mxu0 0.0
    %623 = vmatpush1.xpose.msra.mxu0 0.0
    %624 = vmatprep.subr.mxu0 0.0
    %625 = vmatpush1.xpose.msra.mxu0 0.0
    %626 = vmatprep.subr.mxu0 0.0
    %627 = vmatpush1.xpose.msra.mxu0 0.0
    %628 = vmatprep.subr.mxu0 0.0
    %629 = vmatpush1.xpose.msra.mxu0 0.0
    %630 = vmatprep.subr.mxu0 0.0
    %631 = vmatpush1.xpose.msra.mxu0 0.0
    %632 = vmatprep.subr.mxu0 0.0
    %633 = vmatpush1.xpose.msra.mxu0 0.0
    %634 = vmatprep.subr.mxu0 0.0
    %635 = vmatpush1.xpose.msra.mxu0 0.0
    %636 = vmatprep.subr.mxu0 0.0
    %637 = vmatpush1.xpose.msra.mxu0 0.0
    %638 = vmatprep.subr.mxu0 0.0
    %639 = vmatpush1.xpose.msra.mxu0 0.0
    %640 = vmatprep.subr.mxu0 0.0
    %641 = vmatpush1.xpose.msra.mxu0 0.0
    %642 = vmatprep.subr.mxu0 0.0
    %643 = vmatpush1.xpose.msra.mxu0 0.0
    %644 = vmatprep.subr.mxu0 0.0
    %645 = vmatpush1.xpose.msra.mxu0 0.0
    %646 = vmatprep.subr.mxu0 0.0
    %647 = vmatpush1.xpose.msra.mxu0 %v616
    %648 = vmatprep.subr.mxu0 0.0
    %649 = vmatpush1.xpose.msra.mxu0 %v614
    %650 = vmatprep.subr.mxu0 0.0
    %651 = vmatpush2.xpose.msra.mxu0 0.0
    %652 = vmatprep.subr.mxu0 0.0
    %653 = vmatpush2.xpose.msra.mxu0 0.0
    %654 = vmatprep.subr.mxu0 0.0
    %655 = vmatpush2.xpose.msra.mxu0 0.0
    %656 = vmatprep.subr.mxu0 0.0
    %657 = vmatpush2.xpose.msra.mxu0 0.0
    %658 = vmatprep.subr.mxu0 0.0
    %659 = vmatpush2.xpose.msra.mxu0 0.0
    %660 = vmatprep.subr.mxu0 0.0
    %661 = vmatpush2.xpose.msra.mxu0 0.0
    %662 = vmatprep.subr.mxu0 0.0
    %663 = vmatpush2.xpose.msra.mxu0 0.0
    %664 = vmatprep.subr.mxu0 0.0
    %665 = vmatpush2.xpose.msra.mxu0 0.0
    %666 = vmatprep.subr.mxu0 0.0
    %667 = vmatpush2.xpose.msra.mxu0 0.0
    %668 = vmatprep.subr.mxu0 0.0
    %669 = vmatpush2.xpose.msra.mxu0 0.0
    %670 = vmatprep.subr.mxu0 0.0
    %671 = vmatpush2.xpose.msra.mxu0 0.0
    %672 = vmatprep.subr.mxu0 0.0
    %673 = vmatpush2.xpose.msra.mxu0 0.0
    %674 = vmatprep.subr.mxu0 0.0
    %675 = vmatpush2.xpose.msra.mxu0 0.0
    %676 = vmatprep.subr.mxu0 0.0
    %677 = vmatpush2.xpose.msra.mxu0 0.0
    %678 = vmatprep.subr.mxu0 0.0
    %679 = vmatpush2.xpose.msra.mxu0 0.0
    %680 = vmatprep.subr.mxu0 0.0
    %681 = vmatpush2.xpose.msra.mxu0 0.0
    %682 = vmatprep.mubr.f32.mxu0 0.0
    %683 = vmatmul.mubr.f32.gmra.mxu0 %v609
    %v684 = vpop.f32.mrf.mxu0
    %v685 = vadd.f32 0.0, %v684
    %v686 = vpop.f32.mrf.mxu0
    %687 = vmatprep.mubr.f32.mxu0 0.0
    %688 = vmatmul.mubr.f32.gmra.mxu0 %v612
    %v689 = vpop.f32.mrf.mxu0
    %v690 = vadd.f32 0.0, %v689
    %v691 = vpop.f32.mrf.mxu0
    %692 = vdwg.mxu0
    %vm693 = vcmp.gt.f32.partialorder %v399, 0.0
    %vm694 = vcmp.gt.f32.partialorder %v400, 0.0
    %v695 = vsel %vm693, %v685, -1e+30
    %v696 = vsel %vm694, %v690, -1e+30
    %vm697 = vcmask 97280
    %v698 = vsel %vm697, %v695, -inf
    %699 = vmax.xlane.f32.xlu0 %v698
    %v700 = vpop.xlane.xlu0 %699
    %v701 = vsel %vm697, %v696, -inf
    %702 = vmax.xlane.f32.xlu0 %v701
    %v703 = vpop.xlane.xlu0 %702
    %v704 = vsub.f32 %v695, %v700
    %v705 = vsub.f32 %v696, %v703
    %v706 = vmul.f32 %v704, 1.442695
    %v707 = vpow.pop %v706
    %v708 = vmul.f32 %v705, 1.442695
    %v709 = vpow.pop %v708
    %v710 = vsel %vm697, %v707, 0.0
    %711 = vadd.xlane.f32.xlu0 %v710
    %v712 = vpop.xlane.xlu0 %711
    %v713 = vsel %vm697, %v709, 0.0
    %714 = vadd.xlane.f32.xlu0 %v713
    %v715 = vpop.xlane.xlu0 %714
    %v716 = vmax.f32 %v712, 1e-20
    %v717 = vmax.f32 %v715, 1e-20
    %v718 = vrcp.pop %v716
    %v719 = vmul.f32 %v707, %v718
    %v720 = vrcp.pop %v717
    %v721 = vmul.f32 %v709, %v720
    %722 = vrot.lane.b32.xlu0 %v490, 112
    %v723 = vpop.permute.xlu0 %722
    %724 = vrot.lane.b32.xlu0 %v495, 112
    %v725 = vpop.permute.xlu0 %724
    %726 = vrot.lane.b32.xlu0 %v591, 80
    %v727 = vpop.permute.xlu0 %726
    %728 = vrot.lane.b32.xlu0 %v597, 80
    %v729 = vpop.permute.xlu0 %728
    %v730 = vsel %vm607, %v723, 0
    %v732 = vsel %vm607, %v725, 0
    %v734 = vsel %vm607, %v727, 0
    %v736 = vsel %vm607, %v729, 0
    %738 = vmatprep.subr.mxu0 0.0
    %739 = vmatpush1.xpose.msra.mxu0 0.0
    %740 = vmatprep.subr.mxu0 0.0
    %741 = vmatpush1.xpose.msra.mxu0 0.0
    %742 = vmatprep.subr.mxu0 0.0
    %743 = vmatpush1.xpose.msra.mxu0 0.0
    %744 = vmatprep.subr.mxu0 0.0
    %745 = vmatpush1.xpose.msra.mxu0 0.0
    %746 = vmatprep.subr.mxu0 0.0
    %747 = vmatpush1.xpose.msra.mxu0 0.0
    %748 = vmatprep.subr.mxu0 0.0
    %749 = vmatpush1.xpose.msra.mxu0 0.0
    %750 = vmatprep.subr.mxu0 0.0
    %751 = vmatpush1.xpose.msra.mxu0 0.0
    %752 = vmatprep.subr.mxu0 0.0
    %753 = vmatpush1.xpose.msra.mxu0 0.0
    %754 = vmatprep.subr.mxu0 0.0
    %755 = vmatpush1.xpose.msra.mxu0 0.0
    %756 = vmatprep.subr.mxu0 0.0
    %757 = vmatpush1.xpose.msra.mxu0 0.0
    %758 = vmatprep.subr.mxu0 0.0
    %759 = vmatpush1.xpose.msra.mxu0 0.0
    %760 = vmatprep.subr.mxu0 0.0
    %761 = vmatpush1.xpose.msra.mxu0 0.0
    %762 = vmatprep.subr.mxu0 0.0
    %763 = vmatpush1.xpose.msra.mxu0 0.0
    %764 = vmatprep.subr.mxu0 0.0
    %765 = vmatpush1.xpose.msra.mxu0 0.0
    %766 = vmatprep.subr.mxu0 0.0
    %767 = vmatpush1.xpose.msra.mxu0 %v736
    %768 = vmatprep.subr.mxu0 0.0
    %769 = vmatpush1.xpose.msra.mxu0 %v734
    %770 = vmatprep.subr.mxu0 0.0
    %771 = vmatpush2.xpose.msra.mxu0 0.0
    %772 = vmatprep.subr.mxu0 0.0
    %773 = vmatpush2.xpose.msra.mxu0 0.0
    %774 = vmatprep.subr.mxu0 0.0
    %775 = vmatpush2.xpose.msra.mxu0 0.0
    %776 = vmatprep.subr.mxu0 0.0
    %777 = vmatpush2.xpose.msra.mxu0 0.0
    %778 = vmatprep.subr.mxu0 0.0
    %779 = vmatpush2.xpose.msra.mxu0 0.0
    %780 = vmatprep.subr.mxu0 0.0
    %781 = vmatpush2.xpose.msra.mxu0 0.0
    %782 = vmatprep.subr.mxu0 0.0
    %783 = vmatpush2.xpose.msra.mxu0 0.0
    %784 = vmatprep.subr.mxu0 0.0
    %785 = vmatpush2.xpose.msra.mxu0 0.0
    %786 = vmatprep.subr.mxu0 0.0
    %787 = vmatpush2.xpose.msra.mxu0 0.0
    %788 = vmatprep.subr.mxu0 0.0
    %789 = vmatpush2.xpose.msra.mxu0 0.0
    %790 = vmatprep.subr.mxu0 0.0
    %791 = vmatpush2.xpose.msra.mxu0 0.0
    %792 = vmatprep.subr.mxu0 0.0
    %793 = vmatpush2.xpose.msra.mxu0 0.0
    %794 = vmatprep.subr.mxu0 0.0
    %795 = vmatpush2.xpose.msra.mxu0 0.0
    %796 = vmatprep.subr.mxu0 0.0
    %797 = vmatpush2.xpose.msra.mxu0 0.0
    %798 = vmatprep.subr.mxu0 0.0
    %799 = vmatpush2.xpose.msra.mxu0 0.0
    %800 = vmatprep.subr.mxu0 0.0
    %801 = vmatpush2.xpose.msra.mxu0 0.0
    %802 = vmatprep.mubr.f32.mxu0 0.0
    %803 = vmatmul.mubr.f32.gmra.mxu0 %v730
    %v804 = vpop.f32.mrf.mxu0
    %v805 = vadd.f32 0.0, %v804
    %v806 = vpop.f32.mrf.mxu0
    %807 = vmatprep.mubr.f32.mxu0 0.0
    %808 = vmatmul.mubr.f32.gmra.mxu0 %v732
    %v809 = vpop.f32.mrf.mxu0
    %v810 = vadd.f32 0.0, %v809
    %v811 = vpop.f32.mrf.mxu0
    %812 = vdwg.mxu0
    %v813 = vsel %vm693, %v805, -1e+30
    %v814 = vsel %vm694, %v810, -1e+30
    %v815 = vsel %vm697, %v813, -inf
    %816 = vmax.xlane.f32.xlu0 %v815
    %v817 = vpop.xlane.xlu0 %816
    %v818 = vsel %vm697, %v814, -inf
    %819 = vmax.xlane.f32.xlu0 %v818
    %v820 = vpop.xlane.xlu0 %819
    %v821 = vsub.f32 %v813, %v817
    %v822 = vsub.f32 %v814, %v820
    %v823 = vmul.f32 %v821, 1.442695
    %v824 = vpow.pop %v823
    %v825 = vmul.f32 %v822, 1.442695
    %v826 = vpow.pop %v825
    %v827 = vsel %vm697, %v824, 0.0
    %828 = vadd.xlane.f32.xlu0 %v827
    %v829 = vpop.xlane.xlu0 %828
    %v830 = vsel %vm697, %v826, 0.0
    %831 = vadd.xlane.f32.xlu0 %v830
    %v832 = vpop.xlane.xlu0 %831
    %v833 = vmax.f32 %v829, 1e-20
    %v834 = vmax.f32 %v832, 1e-20
    %v835 = vrcp.pop %v833
    %v836 = vmul.f32 %v824, %v835
    %v837 = vrcp.pop %v834
    %v838 = vmul.f32 %v826, %v837
    %839 = vrot.lane.b32.xlu0 %v591, 32
    %v840 = vpop.permute.xlu0 %839
    %841 = vrot.lane.b32.xlu0 %v597, 32
    %v842 = vpop.permute.xlu0 %841
    %v845 = vsel %vm697, %v836, 0
    %v848 = vsel %vm697, %v838, 0
    %v850 = vsel %vm302, %v842, 0
    %852 = vmatprep.subr.mxu0 0.0
    %853 = vmatpush1.msra.mxu0 0.0
    %854 = vmatprep.subr.mxu0 0.0
    %855 = vmatpush1.msra.mxu0 0.0
    %856 = vmatprep.subr.mxu0 0.0
    %857 = vmatpush1.msra.mxu0 0.0
    %858 = vmatprep.subr.mxu0 0.0
    %859 = vmatpush1.msra.mxu0 0.0
    %860 = vmatprep.subr.mxu0 0.0
    %861 = vmatpush1.msra.mxu0 0.0
    %862 = vmatprep.subr.mxu0 0.0
    %863 = vmatpush1.msra.mxu0 0.0
    %864 = vmatprep.subr.mxu0 0.0
    %865 = vmatpush1.msra.mxu0 0.0
    %866 = vmatprep.subr.mxu0 0.0
    %867 = vmatpush1.msra.mxu0 0.0
    %868 = vmatprep.subr.mxu0 0.0
    %869 = vmatpush1.msra.mxu0 0.0
    %870 = vmatprep.subr.mxu0 0.0
    %871 = vmatpush1.msra.mxu0 0.0
    %872 = vmatprep.subr.mxu0 0.0
    %873 = vmatpush1.msra.mxu0 0.0
    %874 = vmatprep.subr.mxu0 0.0
    %875 = vmatpush1.msra.mxu0 0.0
    %876 = vmatprep.subr.mxu0 0.0
    %877 = vmatpush1.msra.mxu0 0.0
    %878 = vmatprep.subr.mxu0 0.0
    %879 = vmatpush1.msra.mxu0 0.0
    %880 = vmatprep.subr.mxu0 0.0
    %881 = vmatpush1.msra.mxu0 %v850
    %882 = vmatprep.subr.mxu0 0.0
    %883 = vmatpush1.msra.mxu0 %v840
    %884 = vmatprep.subr.mxu0 0.0
    %885 = vmatpush2.msra.mxu0 0.0
    %886 = vmatprep.subr.mxu0 0.0
    %887 = vmatpush2.msra.mxu0 0.0
    %888 = vmatprep.subr.mxu0 0.0
    %889 = vmatpush2.msra.mxu0 0.0
    %890 = vmatprep.subr.mxu0 0.0
    %891 = vmatpush2.msra.mxu0 0.0
    %892 = vmatprep.subr.mxu0 0.0
    %893 = vmatpush2.msra.mxu0 0.0
    %894 = vmatprep.subr.mxu0 0.0
    %895 = vmatpush2.msra.mxu0 0.0
    %896 = vmatprep.subr.mxu0 0.0
    %897 = vmatpush2.msra.mxu0 0.0
    %898 = vmatprep.subr.mxu0 0.0
    %899 = vmatpush2.msra.mxu0 0.0
    %900 = vmatprep.subr.mxu0 0.0
    %901 = vmatpush2.msra.mxu0 0.0
    %902 = vmatprep.subr.mxu0 0.0
    %903 = vmatpush2.msra.mxu0 0.0
    %904 = vmatprep.subr.mxu0 0.0
    %905 = vmatpush2.msra.mxu0 0.0
    %906 = vmatprep.subr.mxu0 0.0
    %907 = vmatpush2.msra.mxu0 0.0
    %908 = vmatprep.subr.mxu0 0.0
    %909 = vmatpush2.msra.mxu0 0.0
    %910 = vmatprep.subr.mxu0 0.0
    %911 = vmatpush2.msra.mxu0 0.0
    %912 = vmatprep.subr.mxu0 0.0
    %913 = vmatpush2.msra.mxu0 0.0
    %914 = vmatprep.subr.mxu0 0.0
    %915 = vmatpush2.msra.mxu0 0.0
    %916 = vmatprep.mubr.f32.mxu0 0.0
    %917 = vmatmul.mubr.f32.gmra.mxu0 %v845
    %v918 = vpop.f32.mrf.mxu0
    %v919 = vadd.f32 0.0, %v918
    %v920 = vpop.f32.mrf.mxu0
    %921 = vmatprep.mubr.f32.mxu0 0.0
    %922 = vmatmul.mubr.f32.gmra.mxu0 %v848
    %v923 = vpop.f32.mrf.mxu0
    %v924 = vadd.f32 0.0, %v923
    %v925 = vpop.f32.mrf.mxu0
    %926 = vdwg.mxu0
    %927 = vrot.lane.b32.xlu0 %v591, 64
    %v928 = vpop.permute.xlu0 %927
    %929 = vrot.lane.b32.xlu0 %v597, 64
    %v930 = vpop.permute.xlu0 %929
    %v933 = vsel %vm697, %v719, 0
    %v936 = vsel %vm697, %v721, 0
    %v938 = vsel %vm302, %v930, 0
    %940 = vmatprep.subr.mxu0 0.0
    %941 = vmatpush1.msra.mxu0 0.0
    %942 = vmatprep.subr.mxu0 0.0
    %943 = vmatpush1.msra.mxu0 0.0
    %944 = vmatprep.subr.mxu0 0.0
    %945 = vmatpush1.msra.mxu0 0.0
    %946 = vmatprep.subr.mxu0 0.0
    %947 = vmatpush1.msra.mxu0 0.0
    %948 = vmatprep.subr.mxu0 0.0
    %949 = vmatpush1.msra.mxu0 0.0
    %950 = vmatprep.subr.mxu0 0.0
    %951 = vmatpush1.msra.mxu0 0.0
    %952 = vmatprep.subr.mxu0 0.0
    %953 = vmatpush1.msra.mxu0 0.0
    %954 = vmatprep.subr.mxu0 0.0
    %955 = vmatpush1.msra.mxu0 0.0
    %956 = vmatprep.subr.mxu0 0.0
    %957 = vmatpush1.msra.mxu0 0.0
    %958 = vmatprep.subr.mxu0 0.0
    %959 = vmatpush1.msra.mxu0 0.0
    %960 = vmatprep.subr.mxu0 0.0
    %961 = vmatpush1.msra.mxu0 0.0
    %962 = vmatprep.subr.mxu0 0.0
    %963 = vmatpush1.msra.mxu0 0.0
    %964 = vmatprep.subr.mxu0 0.0
    %965 = vmatpush1.msra.mxu0 0.0
    %966 = vmatprep.subr.mxu0 0.0
    %967 = vmatpush1.msra.mxu0 0.0
    %968 = vmatprep.subr.mxu0 0.0
    %969 = vmatpush1.msra.mxu0 %v938
    %970 = vmatprep.subr.mxu0 0.0
    %971 = vmatpush1.msra.mxu0 %v928
    %972 = vmatprep.subr.mxu0 0.0
    %973 = vmatpush2.msra.mxu0 0.0
    %974 = vmatprep.subr.mxu0 0.0
    %975 = vmatpush2.msra.mxu0 0.0
    %976 = vmatprep.subr.mxu0 0.0
    %977 = vmatpush2.msra.mxu0 0.0
    %978 = vmatprep.subr.mxu0 0.0
    %979 = vmatpush2.msra.mxu0 0.0
    %980 = vmatprep.subr.mxu0 0.0
    %981 = vmatpush2.msra.mxu0 0.0
    %982 = vmatprep.subr.mxu0 0.0
    %983 = vmatpush2.msra.mxu0 0.0
    %984 = vmatprep.subr.mxu0 0.0
    %985 = vmatpush2.msra.mxu0 0.0
    %986 = vmatprep.subr.mxu0 0.0
    %987 = vmatpush2.msra.mxu0 0.0
    %988 = vmatprep.subr.mxu0 0.0
    %989 = vmatpush2.msra.mxu0 0.0
    %990 = vmatprep.subr.mxu0 0.0
    %991 = vmatpush2.msra.mxu0 0.0
    %992 = vmatprep.subr.mxu0 0.0
    %993 = vmatpush2.msra.mxu0 0.0
    %994 = vmatprep.subr.mxu0 0.0
    %995 = vmatpush2.msra.mxu0 0.0
    %996 = vmatprep.subr.mxu0 0.0
    %997 = vmatpush2.msra.mxu0 0.0
    %998 = vmatprep.subr.mxu0 0.0
    %999 = vmatpush2.msra.mxu0 0.0
    %1000 = vmatprep.subr.mxu0 0.0
    %1001 = vmatpush2.msra.mxu0 0.0
    %1002 = vmatprep.subr.mxu0 0.0
    %1003 = vmatpush2.msra.mxu0 0.0
    %1004 = vmatprep.mubr.f32.mxu0 0.0
    %1005 = vmatmul.mubr.f32.gmra.mxu0 %v933
    %v1006 = vpop.f32.mrf.mxu0
    %v1007 = vadd.f32 %v919, %v1006
    %v1008 = vpop.f32.mrf.mxu0
    %1009 = vmatprep.mubr.f32.mxu0 0.0
    %1010 = vmatmul.mubr.f32.gmra.mxu0 %v936
    %v1011 = vpop.f32.mrf.mxu0
    %v1012 = vadd.f32 %v924, %v1011
    %v1013 = vpop.f32.mrf.mxu0
    %1014 = vdwg.mxu0
    %v1015 = vld [vmem:[%s29] sm:$0x1]
    %v1017 = vlaneseq
    %v1018 = vshrl.u32 %v1017, 7
    %v1019 = vsub.s32 0, %v1018
    %v1020 = vrot.slane %v1015, %v1019
    %v1022 = vadd.f32 %v1007, %v1020
    %v1023 = vadd.f32 %v1012, %v1020
    %1024 = vrot.lane.b32.xlu0 %v490, 96
    %v1025 = vpop.permute.xlu0 %1024
    %1026 = vrot.lane.b32.xlu0 %v495, 96
    %v1027 = vpop.permute.xlu0 %1026
    %v1028 = vsel %vm607, %v591, 0
    %v1030 = vsel %vm607, %v597, 0
    %v1032 = vsel %vm607, %v1025, 0
    %v1034 = vsel %vm607, %v1027, 0
    %1036 = vmatprep.subr.mxu0 0.0
    %1037 = vmatpush1.xpose.msra.mxu0 0.0
    %1038 = vmatprep.subr.mxu0 0.0
    %1039 = vmatpush1.xpose.msra.mxu0 0.0
    %1040 = vmatprep.subr.mxu0 0.0
    %1041 = vmatpush1.xpose.msra.mxu0 0.0
    %1042 = vmatprep.subr.mxu0 0.0
    %1043 = vmatpush1.xpose.msra.mxu0 0.0
    %1044 = vmatprep.subr.mxu0 0.0
    %1045 = vmatpush1.xpose.msra.mxu0 0.0
    %1046 = vmatprep.subr.mxu0 0.0
    %1047 = vmatpush1.xpose.msra.mxu0 0.0
    %1048 = vmatprep.subr.mxu0 0.0
    %1049 = vmatpush1.xpose.msra.mxu0 0.0
    %1050 = vmatprep.subr.mxu0 0.0
    %1051 = vmatpush1.xpose.msra.mxu0 0.0
    %1052 = vmatprep.subr.mxu0 0.0
    %1053 = vmatpush1.xpose.msra.mxu0 0.0
    %1054 = vmatprep.subr.mxu0 0.0
    %1055 = vmatpush1.xpose.msra.mxu0 0.0
    %1056 = vmatprep.subr.mxu0 0.0
    %1057 = vmatpush1.xpose.msra.mxu0 0.0
    %1058 = vmatprep.subr.mxu0 0.0
    %1059 = vmatpush1.xpose.msra.mxu0 0.0
    %1060 = vmatprep.subr.mxu0 0.0
    %1061 = vmatpush1.xpose.msra.mxu0 0.0
    %1062 = vmatprep.subr.mxu0 0.0
    %1063 = vmatpush1.xpose.msra.mxu0 0.0
    %1064 = vmatprep.subr.mxu0 0.0
    %1065 = vmatpush1.xpose.msra.mxu0 %v1034
    %1066 = vmatprep.subr.mxu0 0.0
    %1067 = vmatpush1.xpose.msra.mxu0 %v1032
    %1068 = vmatprep.subr.mxu0 0.0
    %1069 = vmatpush2.xpose.msra.mxu0 0.0
    %1070 = vmatprep.subr.mxu0 0.0
    %1071 = vmatpush2.xpose.msra.mxu0 0.0
    %1072 = vmatprep.subr.mxu0 0.0
    %1073 = vmatpush2.xpose.msra.mxu0 0.0
    %1074 = vmatprep.subr.mxu0 0.0
    %1075 = vmatpush2.xpose.msra.mxu0 0.0
    %1076 = vmatprep.subr.mxu0 0.0
    %1077 = vmatpush2.xpose.msra.mxu0 0.0
    %1078 = vmatprep.subr.mxu0 0.0
    %1079 = vmatpush2.xpose.msra.mxu0 0.0
    %1080 = vmatprep.subr.mxu0 0.0
    %1081 = vmatpush2.xpose.msra.mxu0 0.0
    %1082 = vmatprep.subr.mxu0 0.0
    %1083 = vmatpush2.xpose.msra.mxu0 0.0
    %1084 = vmatprep.subr.mxu0 0.0
    %1085 = vmatpush2.xpose.msra.mxu0 0.0
    %1086 = vmatprep.subr.mxu0 0.0
    %1087 = vmatpush2.xpose.msra.mxu0 0.0
    %1088 = vmatprep.subr.mxu0 0.0
    %1089 = vmatpush2.xpose.msra.mxu0 0.0
    %1090 = vmatprep.subr.mxu0 0.0
    %1091 = vmatpush2.xpose.msra.mxu0 0.0
    %1092 = vmatprep.subr.mxu0 0.0
    %1093 = vmatpush2.xpose.msra.mxu0 0.0
    %1094 = vmatprep.subr.mxu0 0.0
    %1095 = vmatpush2.xpose.msra.mxu0 0.0
    %1096 = vmatprep.subr.mxu0 0.0
    %1097 = vmatpush2.xpose.msra.mxu0 0.0
    %1098 = vmatprep.subr.mxu0 0.0
    %1099 = vmatpush2.xpose.msra.mxu0 0.0
    %1100 = vmatprep.mubr.f32.mxu0 0.0
    %1101 = vmatmul.mubr.f32.gmra.mxu0 %v1028
    %v1102 = vpop.f32.mrf.mxu0
    %v1103 = vadd.f32 0.0, %v1102
    %v1104 = vpop.f32.mrf.mxu0
    %1105 = vmatprep.mubr.f32.mxu0 0.0
    %1106 = vmatmul.mubr.f32.gmra.mxu0 %v1030
    %v1107 = vpop.f32.mrf.mxu0
    %v1108 = vadd.f32 0.0, %v1107
    %v1109 = vpop.f32.mrf.mxu0
    %1110 = vdwg.mxu0
    %vm1111 = vcmp.gt.f32.partialorder %v401, 0.0
    %vm1112 = vcmp.gt.f32.partialorder %v402, 0.0
    %v1113 = vsel %vm1111, %v1103, -1e+30
    %v1114 = vsel %vm1112, %v1108, -1e+30
    %v1115 = vsel %vm607, %v1113, -inf
    %1116 = vmax.xlane.f32.xlu0 %v1115
    %v1117 = vpop.xlane.xlu0 %1116
    %vm1118 = vcmask 125952
    %v1119 = vsel %vm1118, %v1114, -inf
    %1120 = vmax.xlane.f32.xlu0 %v1119
    %v1121 = vpop.xlane.xlu0 %1120
    %v1122 = vsub.f32 %v1113, %v1117
    %v1123 = vsub.f32 %v1114, %v1121
    %v1124 = vmul.f32 %v1122, 1.442695
    %v1125 = vpow.pop %v1124
    %v1126 = vmul.f32 %v1123, 1.442695
    %v1127 = vpow.pop %v1126
    %v1128 = vsel %vm607, %v1125, 0.0
    %1129 = vadd.xlane.f32.xlu0 %v1128
    %v1130 = vpop.xlane.xlu0 %1129
    %v1131 = vsel %vm1118, %v1127, 0.0
    %1132 = vadd.xlane.f32.xlu0 %v1131
    %v1133 = vpop.xlane.xlu0 %1132
    %v1134 = vmax.f32 %v1130, 1e-20
    %v1135 = vmax.f32 %v1133, 1e-20
    %v1136 = vrcp.pop %v1134
    %v1137 = vmul.f32 %v1125, %v1136
    %v1138 = vrcp.pop %v1135
    %v1139 = vmul.f32 %v1127, %v1138
    %1140 = vrot.lane.b32.xlu0 %v591, 112
    %v1141 = vpop.permute.xlu0 %1140
    %1142 = vrot.lane.b32.xlu0 %v597, 112
    %v1143 = vpop.permute.xlu0 %1142
    %1144 = vrot.lane.b32.xlu0 %v490, 80
    %v1145 = vpop.permute.xlu0 %1144
    %1146 = vrot.lane.b32.xlu0 %v495, 80
    %v1147 = vpop.permute.xlu0 %1146
    %v1148 = vsel %vm607, %v1141, 0
    %v1150 = vsel %vm607, %v1143, 0
    %v1152 = vsel %vm607, %v1145, 0
    %v1154 = vsel %vm607, %v1147, 0
    %1156 = vmatprep.subr.mxu0 0.0
    %1157 = vmatpush1.xpose.msra.mxu0 0.0
    %1158 = vmatprep.subr.mxu0 0.0
    %1159 = vmatpush1.xpose.msra.mxu0 0.0
    %1160 = vmatprep.subr.mxu0 0.0
    %1161 = vmatpush1.xpose.msra.mxu0 0.0
    %1162 = vmatprep.subr.mxu0 0.0
    %1163 = vmatpush1.xpose.msra.mxu0 0.0
    %1164 = vmatprep.subr.mxu0 0.0
    %1165 = vmatpush1.xpose.msra.mxu0 0.0
    %1166 = vmatprep.subr.mxu0 0.0
    %1167 = vmatpush1.xpose.msra.mxu0 0.0
    %1168 = vmatprep.subr.mxu0 0.0
    %1169 = vmatpush1.xpose.msra.mxu0 0.0
    %1170 = vmatprep.subr.mxu0 0.0
    %1171 = vmatpush1.xpose.msra.mxu0 0.0
    %1172 = vmatprep.subr.mxu0 0.0
    %1173 = vmatpush1.xpose.msra.mxu0 0.0
    %1174 = vmatprep.subr.mxu0 0.0
    %1175 = vmatpush1.xpose.msra.mxu0 0.0
    %1176 = vmatprep.subr.mxu0 0.0
    %1177 = vmatpush1.xpose.msra.mxu0 0.0
    %1178 = vmatprep.subr.mxu0 0.0
    %1179 = vmatpush1.xpose.msra.mxu0 0.0
    %1180 = vmatprep.subr.mxu0 0.0
    %1181 = vmatpush1.xpose.msra.mxu0 0.0
    %1182 = vmatprep.subr.mxu0 0.0
    %1183 = vmatpush1.xpose.msra.mxu0 0.0
    %1184 = vmatprep.subr.mxu0 0.0
    %1185 = vmatpush1.xpose.msra.mxu0 %v1154
    %1186 = vmatprep.subr.mxu0 0.0
    %1187 = vmatpush1.xpose.msra.mxu0 %v1152
    %1188 = vmatprep.subr.mxu0 0.0
    %1189 = vmatpush2.xpose.msra.mxu0 0.0
    %1190 = vmatprep.subr.mxu0 0.0
    %1191 = vmatpush2.xpose.msra.mxu0 0.0
    %1192 = vmatprep.subr.mxu0 0.0
    %1193 = vmatpush2.xpose.msra.mxu0 0.0
    %1194 = vmatprep.subr.mxu0 0.0
    %1195 = vmatpush2.xpose.msra.mxu0 0.0
    %1196 = vmatprep.subr.mxu0 0.0
    %1197 = vmatpush2.xpose.msra.mxu0 0.0
    %1198 = vmatprep.subr.mxu0 0.0
    %1199 = vmatpush2.xpose.msra.mxu0 0.0
    %1200 = vmatprep.subr.mxu0 0.0
    %1201 = vmatpush2.xpose.msra.mxu0 0.0
    %1202 = vmatprep.subr.mxu0 0.0
    %1203 = vmatpush2.xpose.msra.mxu0 0.0
    %1204 = vmatprep.subr.mxu0 0.0
    %1205 = vmatpush2.xpose.msra.mxu0 0.0
    %1206 = vmatprep.subr.mxu0 0.0
    %1207 = vmatpush2.xpose.msra.mxu0 0.0
    %1208 = vmatprep.subr.mxu0 0.0
    %1209 = vmatpush2.xpose.msra.mxu0 0.0
    %1210 = vmatprep.subr.mxu0 0.0
    %1211 = vmatpush2.xpose.msra.mxu0 0.0
    %1212 = vmatprep.subr.mxu0 0.0
    %1213 = vmatpush2.xpose.msra.mxu0 0.0
    %1214 = vmatprep.subr.mxu0 0.0
    %1215 = vmatpush2.xpose.msra.mxu0 0.0
    %1216 = vmatprep.subr.mxu0 0.0
    %1217 = vmatpush2.xpose.msra.mxu0 0.0
    %1218 = vmatprep.subr.mxu0 0.0
    %1219 = vmatpush2.xpose.msra.mxu0 0.0
    %1220 = vmatprep.mubr.f32.mxu0 0.0
    %1221 = vmatmul.mubr.f32.gmra.mxu0 %v1148
    %v1222 = vpop.f32.mrf.mxu0
    %v1223 = vadd.f32 0.0, %v1222
    %v1224 = vpop.f32.mrf.mxu0
    %1225 = vmatprep.mubr.f32.mxu0 0.0
    %1226 = vmatmul.mubr.f32.gmra.mxu0 %v1150
    %v1227 = vpop.f32.mrf.mxu0
    %v1228 = vadd.f32 0.0, %v1227
    %v1229 = vpop.f32.mrf.mxu0
    %1230 = vdwg.mxu0
    %v1231 = vsel %vm1111, %v1223, -1e+30
    %v1232 = vsel %vm1112, %v1228, -1e+30
    %v1233 = vsel %vm607, %v1231, -inf
    %1234 = vmax.xlane.f32.xlu0 %v1233
    %v1235 = vpop.xlane.xlu0 %1234
    %v1236 = vsel %vm1118, %v1232, -inf
    %1237 = vmax.xlane.f32.xlu0 %v1236
    %v1238 = vpop.xlane.xlu0 %1237
    %v1239 = vsub.f32 %v1231, %v1235
    %v1240 = vsub.f32 %v1232, %v1238
    %v1241 = vmul.f32 %v1239, 1.442695
    %v1242 = vpow.pop %v1241
    %v1243 = vmul.f32 %v1240, 1.442695
    %v1244 = vpow.pop %v1243
    %v1245 = vsel %vm607, %v1242, 0.0
    %1246 = vadd.xlane.f32.xlu0 %v1245
    %v1247 = vpop.xlane.xlu0 %1246
    %v1248 = vsel %vm1118, %v1244, 0.0
    %1249 = vadd.xlane.f32.xlu0 %v1248
    %v1250 = vpop.xlane.xlu0 %1249
    %v1251 = vmax.f32 %v1247, 1e-20
    %v1252 = vmax.f32 %v1250, 1e-20
    %v1253 = vrcp.pop %v1251
    %v1254 = vmul.f32 %v1242, %v1253
    %v1255 = vrcp.pop %v1252
    %v1256 = vmul.f32 %v1244, %v1255
    %1257 = vrot.lane.b32.xlu0 %v490, 32
    %v1258 = vpop.permute.xlu0 %1257
    %1259 = vrot.lane.b32.xlu0 %v495, 32
    %v1260 = vpop.permute.xlu0 %1259
    %v1264 = vsel %vm607, %v1254, 0
    %v1267 = vsel %vm607, %v1256, 0
    %1269 = vmatprep.subr.mxu0 0.0
    %1270 = vmatpush1.msra.mxu0 0.0
    %1271 = vmatprep.subr.mxu0 0.0
    %1272 = vmatpush1.msra.mxu0 0.0
    %1273 = vmatprep.subr.mxu0 0.0
    %1274 = vmatpush1.msra.mxu0 0.0
    %1275 = vmatprep.subr.mxu0 0.0
    %1276 = vmatpush1.msra.mxu0 0.0
    %1277 = vmatprep.subr.mxu0 0.0
    %1278 = vmatpush1.msra.mxu0 0.0
    %1279 = vmatprep.subr.mxu0 0.0
    %1280 = vmatpush1.msra.mxu0 0.0
    %1281 = vmatprep.subr.mxu0 0.0
    %1282 = vmatpush1.msra.mxu0 0.0
    %1283 = vmatprep.subr.mxu0 0.0
    %1284 = vmatpush1.msra.mxu0 0.0
    %1285 = vmatprep.subr.mxu0 0.0
    %1286 = vmatpush1.msra.mxu0 0.0
    %1287 = vmatprep.subr.mxu0 0.0
    %1288 = vmatpush1.msra.mxu0 0.0
    %1289 = vmatprep.subr.mxu0 0.0
    %1290 = vmatpush1.msra.mxu0 0.0
    %1291 = vmatprep.subr.mxu0 0.0
    %1292 = vmatpush1.msra.mxu0 0.0
    %1293 = vmatprep.subr.mxu0 0.0
    %1294 = vmatpush1.msra.mxu0 0.0
    %1295 = vmatprep.subr.mxu0 0.0
    %1296 = vmatpush1.msra.mxu0 0.0
    %1297 = vmatprep.subr.mxu0 0.0
    %1298 = vmatpush1.msra.mxu0 %v1260
    %1299 = vmatprep.subr.mxu0 0.0
    %1300 = vmatpush1.msra.mxu0 %v1258
    %1301 = vmatprep.subr.mxu0 0.0
    %1302 = vmatpush2.msra.mxu0 0.0
    %1303 = vmatprep.subr.mxu0 0.0
    %1304 = vmatpush2.msra.mxu0 0.0
    %1305 = vmatprep.subr.mxu0 0.0
    %1306 = vmatpush2.msra.mxu0 0.0
    %1307 = vmatprep.subr.mxu0 0.0
    %1308 = vmatpush2.msra.mxu0 0.0
    %1309 = vmatprep.subr.mxu0 0.0
    %1310 = vmatpush2.msra.mxu0 0.0
    %1311 = vmatprep.subr.mxu0 0.0
    %1312 = vmatpush2.msra.mxu0 0.0
    %1313 = vmatprep.subr.mxu0 0.0
    %1314 = vmatpush2.msra.mxu0 0.0
    %1315 = vmatprep.subr.mxu0 0.0
    %1316 = vmatpush2.msra.mxu0 0.0
    %1317 = vmatprep.subr.mxu0 0.0
    %1318 = vmatpush2.msra.mxu0 0.0
    %1319 = vmatprep.subr.mxu0 0.0
    %1320 = vmatpush2.msra.mxu0 0.0
    %1321 = vmatprep.subr.mxu0 0.0
    %1322 = vmatpush2.msra.mxu0 0.0
    %1323 = vmatprep.subr.mxu0 0.0
    %1324 = vmatpush2.msra.mxu0 0.0
    %1325 = vmatprep.subr.mxu0 0.0
    %1326 = vmatpush2.msra.mxu0 0.0
    %1327 = vmatprep.subr.mxu0 0.0
    %1328 = vmatpush2.msra.mxu0 0.0
    %1329 = vmatprep.subr.mxu0 0.0
    %1330 = vmatpush2.msra.mxu0 0.0
    %1331 = vmatprep.subr.mxu0 0.0
    %1332 = vmatpush2.msra.mxu0 0.0
    %1333 = vmatprep.mubr.f32.mxu0 0.0
    %1334 = vmatmul.mubr.f32.gmra.mxu0 %v1264
    %v1335 = vpop.f32.mrf.mxu0
    %v1336 = vadd.f32 0.0, %v1335
    %v1337 = vpop.f32.mrf.mxu0
    %1338 = vmatprep.mubr.f32.mxu0 0.0
    %1339 = vmatmul.mubr.f32.gmra.mxu0 %v1267
    %v1340 = vpop.f32.mrf.mxu0
    %v1341 = vadd.f32 0.0, %v1340
    %v1342 = vpop.f32.mrf.mxu0
    %1343 = vdwg.mxu0
    %1344 = vrot.lane.b32.xlu0 %v490, 64
    %v1345 = vpop.permute.xlu0 %1344
    %1346 = vrot.lane.b32.xlu0 %v495, 64
    %v1347 = vpop.permute.xlu0 %1346
    %v1351 = vsel %vm607, %v1137, 0
    %v1354 = vsel %vm607, %v1139, 0
    %1356 = vmatprep.subr.mxu0 0.0
    %1357 = vmatpush1.msra.mxu0 0.0
    %1358 = vmatprep.subr.mxu0 0.0
    %1359 = vmatpush1.msra.mxu0 0.0
    %1360 = vmatprep.subr.mxu0 0.0
    %1361 = vmatpush1.msra.mxu0 0.0
    %1362 = vmatprep.subr.mxu0 0.0
    %1363 = vmatpush1.msra.mxu0 0.0
    %1364 = vmatprep.subr.mxu0 0.0
    %1365 = vmatpush1.msra.mxu0 0.0
    %1366 = vmatprep.subr.mxu0 0.0
    %1367 = vmatpush1.msra.mxu0 0.0
    %1368 = vmatprep.subr.mxu0 0.0
    %1369 = vmatpush1.msra.mxu0 0.0
    %1370 = vmatprep.subr.mxu0 0.0
    %1371 = vmatpush1.msra.mxu0 0.0
    %1372 = vmatprep.subr.mxu0 0.0
    %1373 = vmatpush1.msra.mxu0 0.0
    %1374 = vmatprep.subr.mxu0 0.0
    %1375 = vmatpush1.msra.mxu0 0.0
    %1376 = vmatprep.subr.mxu0 0.0
    %1377 = vmatpush1.msra.mxu0 0.0
    %1378 = vmatprep.subr.mxu0 0.0
    %1379 = vmatpush1.msra.mxu0 0.0
    %1380 = vmatprep.subr.mxu0 0.0
    %1381 = vmatpush1.msra.mxu0 0.0
    %1382 = vmatprep.subr.mxu0 0.0
    %1383 = vmatpush1.msra.mxu0 0.0
    %1384 = vmatprep.subr.mxu0 0.0
    %1385 = vmatpush1.msra.mxu0 %v1347
    %1386 = vmatprep.subr.mxu0 0.0
    %1387 = vmatpush1.msra.mxu0 %v1345
    %1388 = vmatprep.subr.mxu0 0.0
    %1389 = vmatpush2.msra.mxu0 0.0
    %1390 = vmatprep.subr.mxu0 0.0
    %1391 = vmatpush2.msra.mxu0 0.0
    %1392 = vmatprep.subr.mxu0 0.0
    %1393 = vmatpush2.msra.mxu0 0.0
    %1394 = vmatprep.subr.mxu0 0.0
    %1395 = vmatpush2.msra.mxu0 0.0
    %1396 = vmatprep.subr.mxu0 0.0
    %1397 = vmatpush2.msra.mxu0 0.0
    %1398 = vmatprep.subr.mxu0 0.0
    %1399 = vmatpush2.msra.mxu0 0.0
    %1400 = vmatprep.subr.mxu0 0.0
    %1401 = vmatpush2.msra.mxu0 0.0
    %1402 = vmatprep.subr.mxu0 0.0
    %1403 = vmatpush2.msra.mxu0 0.0
    %1404 = vmatprep.subr.mxu0 0.0
    %1405 = vmatpush2.msra.mxu0 0.0
    %1406 = vmatprep.subr.mxu0 0.0
    %1407 = vmatpush2.msra.mxu0 0.0
    %1408 = vmatprep.subr.mxu0 0.0
    %1409 = vmatpush2.msra.mxu0 0.0
    %1410 = vmatprep.subr.mxu0 0.0
    %1411 = vmatpush2.msra.mxu0 0.0
    %1412 = vmatprep.subr.mxu0 0.0
    %1413 = vmatpush2.msra.mxu0 0.0
    %1414 = vmatprep.subr.mxu0 0.0
    %1415 = vmatpush2.msra.mxu0 0.0
    %1416 = vmatprep.subr.mxu0 0.0
    %1417 = vmatpush2.msra.mxu0 0.0
    %1418 = vmatprep.subr.mxu0 0.0
    %1419 = vmatpush2.msra.mxu0 0.0
    %1420 = vmatprep.mubr.f32.mxu0 0.0
    %1421 = vmatmul.mubr.f32.gmra.mxu0 %v1351
    %v1422 = vpop.f32.mrf.mxu0
    %v1423 = vadd.f32 %v1336, %v1422
    %v1424 = vpop.f32.mrf.mxu0
    %1425 = vmatprep.mubr.f32.mxu0 0.0
    %1426 = vmatmul.mubr.f32.gmra.mxu0 %v1354
    %v1427 = vpop.f32.mrf.mxu0
    %v1428 = vadd.f32 %v1341, %v1427
    %v1429 = vpop.f32.mrf.mxu0
    %1430 = vdwg.mxu0
    %v1432 = vsel %vm607, %v593, 0
    %v1435 = vsel %vm607, %v599, 0
    %1437 = vmatprep.subr.mxu0 0.0
    %1438 = vmatpush1.xpose.msra.mxu0 0.0
    %1439 = vmatprep.subr.mxu0 0.0
    %1440 = vmatpush1.xpose.msra.mxu0 0.0
    %1441 = vmatprep.subr.mxu0 0.0
    %1442 = vmatpush1.xpose.msra.mxu0 0.0
    %1443 = vmatprep.subr.mxu0 0.0
    %1444 = vmatpush1.xpose.msra.mxu0 0.0
    %1445 = vmatprep.subr.mxu0 0.0
    %1446 = vmatpush1.xpose.msra.mxu0 0.0
    %1447 = vmatprep.subr.mxu0 0.0
    %1448 = vmatpush1.xpose.msra.mxu0 0.0
    %1449 = vmatprep.subr.mxu0 0.0
    %1450 = vmatpush1.xpose.msra.mxu0 0.0
    %1451 = vmatprep.subr.mxu0 0.0
    %1452 = vmatpush1.xpose.msra.mxu0 0.0
    %1453 = vmatprep.subr.mxu0 0.0
    %1454 = vmatpush1.xpose.msra.mxu0 0.0
    %1455 = vmatprep.subr.mxu0 0.0
    %1456 = vmatpush1.xpose.msra.mxu0 0.0
    %1457 = vmatprep.subr.mxu0 0.0
    %1458 = vmatpush1.xpose.msra.mxu0 0.0
    %1459 = vmatprep.subr.mxu0 0.0
    %1460 = vmatpush1.xpose.msra.mxu0 0.0
    %1461 = vmatprep.subr.mxu0 0.0
    %1462 = vmatpush1.xpose.msra.mxu0 0.0
    %1463 = vmatprep.subr.mxu0 0.0
    %1464 = vmatpush1.xpose.msra.mxu0 0.0
    %1465 = vmatprep.subr.mxu0 0.0
    %1466 = vmatpush1.xpose.msra.mxu0 %v1435
    %1467 = vmatprep.subr.mxu0 0.0
    %1468 = vmatpush1.xpose.msra.mxu0 %v1432
    %1469 = vmatprep.subr.mxu0 0.0
    %1470 = vmatpush2.xpose.msra.mxu0 0.0
    %1471 = vmatprep.subr.mxu0 0.0
    %1472 = vmatpush2.xpose.msra.mxu0 0.0
    %1473 = vmatprep.subr.mxu0 0.0
    %1474 = vmatpush2.xpose.msra.mxu0 0.0
    %1475 = vmatprep.subr.mxu0 0.0
    %1476 = vmatpush2.xpose.msra.mxu0 0.0
    %1477 = vmatprep.subr.mxu0 0.0
    %1478 = vmatpush2.xpose.msra.mxu0 0.0
    %1479 = vmatprep.subr.mxu0 0.0
    %1480 = vmatpush2.xpose.msra.mxu0 0.0
    %1481 = vmatprep.subr.mxu0 0.0
    %1482 = vmatpush2.xpose.msra.mxu0 0.0
    %1483 = vmatprep.subr.mxu0 0.0
    %1484 = vmatpush2.xpose.msra.mxu0 0.0
    %1485 = vmatprep.subr.mxu0 0.0
    %1486 = vmatpush2.xpose.msra.mxu0 0.0
    %1487 = vmatprep.subr.mxu0 0.0
    %1488 = vmatpush2.xpose.msra.mxu0 0.0
    %1489 = vmatprep.subr.mxu0 0.0
    %1490 = vmatpush2.xpose.msra.mxu0 0.0
    %1491 = vmatprep.subr.mxu0 0.0
    %1492 = vmatpush2.xpose.msra.mxu0 0.0
    %1493 = vmatprep.subr.mxu0 0.0
    %1494 = vmatpush2.xpose.msra.mxu0 0.0
    %1495 = vmatprep.subr.mxu0 0.0
    %1496 = vmatpush2.xpose.msra.mxu0 0.0
    %1497 = vmatprep.subr.mxu0 0.0
    %1498 = vmatpush2.xpose.msra.mxu0 0.0
    %1499 = vmatprep.subr.mxu0 0.0
    %1500 = vmatpush2.xpose.msra.mxu0 0.0
    %1501 = vmatprep.mubr.f32.mxu0 0.0
    %1502 = vmatmul.mubr.f32.gmra.mxu0 %v1028
    %v1503 = vpop.f32.mrf.mxu0
    %v1504 = vadd.f32 0.0, %v1503
    %v1505 = vpop.f32.mrf.mxu0
    %1506 = vmatprep.mubr.f32.mxu0 0.0
    %1507 = vmatmul.mubr.f32.gmra.mxu0 %v1030
    %v1508 = vpop.f32.mrf.mxu0
    %v1509 = vadd.f32 0.0, %v1508
    %v1510 = vpop.f32.mrf.mxu0
    %1511 = vdwg.mxu0
    %vm1512 = vcmp.gt.f32.partialorder %v403, 0.0
    %vm1513 = vcmp.gt.f32.partialorder %v404, 0.0
    %v1514 = vsel %vm1512, %v1504, -1e+30
    %v1515 = vsel %vm1513, %v1509, -1e+30
    %v1516 = vsel %vm697, %v1514, -inf
    %1517 = vmax.xlane.f32.xlu0 %v1516
    %v1518 = vpop.xlane.xlu0 %1517
    %vm1519 = vcmask 93184
    %v1520 = vsel %vm1519, %v1515, -inf
    %1521 = vmax.xlane.f32.xlu0 %v1520
    %v1522 = vpop.xlane.xlu0 %1521
    %v1523 = vsub.f32 %v1514, %v1518
    %v1524 = vsub.f32 %v1515, %v1522
    %v1525 = vmul.f32 %v1523, 1.442695
    %v1526 = vpow.pop %v1525
    %v1527 = vmul.f32 %v1524, 1.442695
    %v1528 = vpow.pop %v1527
    %v1529 = vsel %vm697, %v1526, 0.0
    %1530 = vadd.xlane.f32.xlu0 %v1529
    %v1531 = vpop.xlane.xlu0 %1530
    %v1532 = vsel %vm1519, %v1528, 0.0
    %1533 = vadd.xlane.f32.xlu0 %v1532
    %v1534 = vpop.xlane.xlu0 %1533
    %v1535 = vmax.f32 %v1531, 1e-20
    %v1536 = vmax.f32 %v1534, 1e-20
    %v1537 = vrcp.pop %v1535
    %v1538 = vmul.f32 %v1526, %v1537
    %v1539 = vrcp.pop %v1536
    %v1540 = vmul.f32 %v1528, %v1539
    %1541 = vrot.lane.b32.xlu0 %v593, 112
    %v1542 = vpop.permute.xlu0 %1541
    %1543 = vrot.lane.b32.xlu0 %v599, 112
    %v1544 = vpop.permute.xlu0 %1543
    %v1545 = vsel %vm607, %v1542, 0
    %v1547 = vsel %vm607, %v1544, 0
    %1549 = vmatprep.subr.mxu0 0.0
    %1550 = vmatpush1.xpose.msra.mxu0 0.0
    %1551 = vmatprep.subr.mxu0 0.0
    %1552 = vmatpush1.xpose.msra.mxu0 0.0
    %1553 = vmatprep.subr.mxu0 0.0
    %1554 = vmatpush1.xpose.msra.mxu0 0.0
    %1555 = vmatprep.subr.mxu0 0.0
    %1556 = vmatpush1.xpose.msra.mxu0 0.0
    %1557 = vmatprep.subr.mxu0 0.0
    %1558 = vmatpush1.xpose.msra.mxu0 0.0
    %1559 = vmatprep.subr.mxu0 0.0
    %1560 = vmatpush1.xpose.msra.mxu0 0.0
    %1561 = vmatprep.subr.mxu0 0.0
    %1562 = vmatpush1.xpose.msra.mxu0 0.0
    %1563 = vmatprep.subr.mxu0 0.0
    %1564 = vmatpush1.xpose.msra.mxu0 0.0
    %1565 = vmatprep.subr.mxu0 0.0
    %1566 = vmatpush1.xpose.msra.mxu0 0.0
    %1567 = vmatprep.subr.mxu0 0.0
    %1568 = vmatpush1.xpose.msra.mxu0 0.0
    %1569 = vmatprep.subr.mxu0 0.0
    %1570 = vmatpush1.xpose.msra.mxu0 0.0
    %1571 = vmatprep.subr.mxu0 0.0
    %1572 = vmatpush1.xpose.msra.mxu0 0.0
    %1573 = vmatprep.subr.mxu0 0.0
    %1574 = vmatpush1.xpose.msra.mxu0 0.0
    %1575 = vmatprep.subr.mxu0 0.0
    %1576 = vmatpush1.xpose.msra.mxu0 0.0
    %1577 = vmatprep.subr.mxu0 0.0
    %1578 = vmatpush1.xpose.msra.mxu0 %v1547
    %1579 = vmatprep.subr.mxu0 0.0
    %1580 = vmatpush1.xpose.msra.mxu0 %v1545
    %1581 = vmatprep.subr.mxu0 0.0
    %1582 = vmatpush2.xpose.msra.mxu0 0.0
    %1583 = vmatprep.subr.mxu0 0.0
    %1584 = vmatpush2.xpose.msra.mxu0 0.0
    %1585 = vmatprep.subr.mxu0 0.0
    %1586 = vmatpush2.xpose.msra.mxu0 0.0
    %1587 = vmatprep.subr.mxu0 0.0
    %1588 = vmatpush2.xpose.msra.mxu0 0.0
    %1589 = vmatprep.subr.mxu0 0.0
    %1590 = vmatpush2.xpose.msra.mxu0 0.0
    %1591 = vmatprep.subr.mxu0 0.0
    %1592 = vmatpush2.xpose.msra.mxu0 0.0
    %1593 = vmatprep.subr.mxu0 0.0
    %1594 = vmatpush2.xpose.msra.mxu0 0.0
    %1595 = vmatprep.subr.mxu0 0.0
    %1596 = vmatpush2.xpose.msra.mxu0 0.0
    %1597 = vmatprep.subr.mxu0 0.0
    %1598 = vmatpush2.xpose.msra.mxu0 0.0
    %1599 = vmatprep.subr.mxu0 0.0
    %1600 = vmatpush2.xpose.msra.mxu0 0.0
    %1601 = vmatprep.subr.mxu0 0.0
    %1602 = vmatpush2.xpose.msra.mxu0 0.0
    %1603 = vmatprep.subr.mxu0 0.0
    %1604 = vmatpush2.xpose.msra.mxu0 0.0
    %1605 = vmatprep.subr.mxu0 0.0
    %1606 = vmatpush2.xpose.msra.mxu0 0.0
    %1607 = vmatprep.subr.mxu0 0.0
    %1608 = vmatpush2.xpose.msra.mxu0 0.0
    %1609 = vmatprep.subr.mxu0 0.0
    %1610 = vmatpush2.xpose.msra.mxu0 0.0
    %1611 = vmatprep.subr.mxu0 0.0
    %1612 = vmatpush2.xpose.msra.mxu0 0.0
    %1613 = vmatprep.mubr.f32.mxu0 0.0
    %1614 = vmatmul.mubr.f32.gmra.mxu0 %v1148
    %v1615 = vpop.f32.mrf.mxu0
    %v1616 = vadd.f32 0.0, %v1615
    %v1617 = vpop.f32.mrf.mxu0
    %1618 = vmatprep.mubr.f32.mxu0 0.0
    %1619 = vmatmul.mubr.f32.gmra.mxu0 %v1150
    %v1620 = vpop.f32.mrf.mxu0
    %v1621 = vadd.f32 0.0, %v1620
    %v1622 = vpop.f32.mrf.mxu0
    %1623 = vdwg.mxu0
    %v1624 = vsel %vm1512, %v1616, -1e+30
    %v1625 = vsel %vm1513, %v1621, -1e+30
    %v1626 = vsel %vm697, %v1624, -inf
    %1627 = vmax.xlane.f32.xlu0 %v1626
    %v1628 = vpop.xlane.xlu0 %1627
    %v1629 = vsel %vm1519, %v1625, -inf
    %1630 = vmax.xlane.f32.xlu0 %v1629
    %v1631 = vpop.xlane.xlu0 %1630
    %v1632 = vsub.f32 %v1624, %v1628
    %v1633 = vsub.f32 %v1625, %v1631
    %v1634 = vmul.f32 %v1632, 1.442695
    %v1635 = vpow.pop %v1634
    %v1636 = vmul.f32 %v1633, 1.442695
    %v1637 = vpow.pop %v1636
    %v1638 = vsel %vm697, %v1635, 0.0
    %1639 = vadd.xlane.f32.xlu0 %v1638
    %v1640 = vpop.xlane.xlu0 %1639
    %v1641 = vsel %vm1519, %v1637, 0.0
    %1642 = vadd.xlane.f32.xlu0 %v1641
    %v1643 = vpop.xlane.xlu0 %1642
    %v1644 = vmax.f32 %v1640, 1e-20
    %v1645 = vmax.f32 %v1643, 1e-20
    %v1646 = vrcp.pop %v1644
    %v1647 = vmul.f32 %v1635, %v1646
    %v1648 = vrcp.pop %v1645
    %v1649 = vmul.f32 %v1637, %v1648
    %1650 = vrot.lane.b32.xlu0 %v593, 64
    %v1651 = vpop.permute.xlu0 %1650
    %1652 = vrot.lane.b32.xlu0 %v599, 64
    %v1653 = vpop.permute.xlu0 %1652
    %v1656 = vsel %vm697, %v1647, 0
    %v1659 = vsel %vm697, %v1649, 0
    %v1661 = vsel %vm302, %v1653, 0
    %1663 = vmatprep.subr.mxu0 0.0
    %1664 = vmatpush1.msra.mxu0 0.0
    %1665 = vmatprep.subr.mxu0 0.0
    %1666 = vmatpush1.msra.mxu0 0.0
    %1667 = vmatprep.subr.mxu0 0.0
    %1668 = vmatpush1.msra.mxu0 0.0
    %1669 = vmatprep.subr.mxu0 0.0
    %1670 = vmatpush1.msra.mxu0 0.0
    %1671 = vmatprep.subr.mxu0 0.0
    %1672 = vmatpush1.msra.mxu0 0.0
    %1673 = vmatprep.subr.mxu0 0.0
    %1674 = vmatpush1.msra.mxu0 0.0
    %1675 = vmatprep.subr.mxu0 0.0
    %1676 = vmatpush1.msra.mxu0 0.0
    %1677 = vmatprep.subr.mxu0 0.0
    %1678 = vmatpush1.msra.mxu0 0.0
    %1679 = vmatprep.subr.mxu0 0.0
    %1680 = vmatpush1.msra.mxu0 0.0
    %1681 = vmatprep.subr.mxu0 0.0
    %1682 = vmatpush1.msra.mxu0 0.0
    %1683 = vmatprep.subr.mxu0 0.0
    %1684 = vmatpush1.msra.mxu0 0.0
    %1685 = vmatprep.subr.mxu0 0.0
    %1686 = vmatpush1.msra.mxu0 0.0
    %1687 = vmatprep.subr.mxu0 0.0
    %1688 = vmatpush1.msra.mxu0 0.0
    %1689 = vmatprep.subr.mxu0 0.0
    %1690 = vmatpush1.msra.mxu0 0.0
    %1691 = vmatprep.subr.mxu0 0.0
    %1692 = vmatpush1.msra.mxu0 %v1661
    %1693 = vmatprep.subr.mxu0 0.0
    %1694 = vmatpush1.msra.mxu0 %v1651
    %1695 = vmatprep.subr.mxu0 0.0
    %1696 = vmatpush2.msra.mxu0 0.0
    %1697 = vmatprep.subr.mxu0 0.0
    %1698 = vmatpush2.msra.mxu0 0.0
    %1699 = vmatprep.subr.mxu0 0.0
    %1700 = vmatpush2.msra.mxu0 0.0
    %1701 = vmatprep.subr.mxu0 0.0
    %1702 = vmatpush2.msra.mxu0 0.0
    %1703 = vmatprep.subr.mxu0 0.0
    %1704 = vmatpush2.msra.mxu0 0.0
    %1705 = vmatprep.subr.mxu0 0.0
    %1706 = vmatpush2.msra.mxu0 0.0
    %1707 = vmatprep.subr.mxu0 0.0
    %1708 = vmatpush2.msra.mxu0 0.0
    %1709 = vmatprep.subr.mxu0 0.0
    %1710 = vmatpush2.msra.mxu0 0.0
    %1711 = vmatprep.subr.mxu0 0.0
    %1712 = vmatpush2.msra.mxu0 0.0
    %1713 = vmatprep.subr.mxu0 0.0
    %1714 = vmatpush2.msra.mxu0 0.0
    %1715 = vmatprep.subr.mxu0 0.0
    %1716 = vmatpush2.msra.mxu0 0.0
    %1717 = vmatprep.subr.mxu0 0.0
    %1718 = vmatpush2.msra.mxu0 0.0
    %1719 = vmatprep.subr.mxu0 0.0
    %1720 = vmatpush2.msra.mxu0 0.0
    %1721 = vmatprep.subr.mxu0 0.0
    %1722 = vmatpush2.msra.mxu0 0.0
    %1723 = vmatprep.subr.mxu0 0.0
    %1724 = vmatpush2.msra.mxu0 0.0
    %1725 = vmatprep.subr.mxu0 0.0
    %1726 = vmatpush2.msra.mxu0 0.0
    %1727 = vmatprep.mubr.f32.mxu0 0.0
    %1728 = vmatmul.mubr.f32.gmra.mxu0 %v1656
    %v1729 = vpop.f32.mrf.mxu0
    %v1730 = vadd.f32 0.0, %v1729
    %v1731 = vpop.f32.mrf.mxu0
    %1732 = vmatprep.mubr.f32.mxu0 0.0
    %1733 = vmatmul.mubr.f32.gmra.mxu0 %v1659
    %v1734 = vpop.f32.mrf.mxu0
    %v1735 = vadd.f32 0.0, %v1734
    %v1736 = vpop.f32.mrf.mxu0
    %1737 = vdwg.mxu0
    %1738 = vrot.lane.b32.xlu0 %v593, 96
    %v1739 = vpop.permute.xlu0 %1738
    %1740 = vrot.lane.b32.xlu0 %v599, 96
    %v1741 = vpop.permute.xlu0 %1740
    %v1744 = vsel %vm697, %v1538, 0
    %v1747 = vsel %vm697, %v1540, 0
    %v1749 = vsel %vm302, %v1741, 0
    %1751 = vmatprep.subr.mxu0 0.0
    %1752 = vmatpush1.msra.mxu0 0.0
    %1753 = vmatprep.subr.mxu0 0.0
    %1754 = vmatpush1.msra.mxu0 0.0
    %1755 = vmatprep.subr.mxu0 0.0
    %1756 = vmatpush1.msra.mxu0 0.0
    %1757 = vmatprep.subr.mxu0 0.0
    %1758 = vmatpush1.msra.mxu0 0.0
    %1759 = vmatprep.subr.mxu0 0.0
    %1760 = vmatpush1.msra.mxu0 0.0
    %1761 = vmatprep.subr.mxu0 0.0
    %1762 = vmatpush1.msra.mxu0 0.0
    %1763 = vmatprep.subr.mxu0 0.0
    %1764 = vmatpush1.msra.mxu0 0.0
    %1765 = vmatprep.subr.mxu0 0.0
    %1766 = vmatpush1.msra.mxu0 0.0
    %1767 = vmatprep.subr.mxu0 0.0
    %1768 = vmatpush1.msra.mxu0 0.0
    %1769 = vmatprep.subr.mxu0 0.0
    %1770 = vmatpush1.msra.mxu0 0.0
    %1771 = vmatprep.subr.mxu0 0.0
    %1772 = vmatpush1.msra.mxu0 0.0
    %1773 = vmatprep.subr.mxu0 0.0
    %1774 = vmatpush1.msra.mxu0 0.0
    %1775 = vmatprep.subr.mxu0 0.0
    %1776 = vmatpush1.msra.mxu0 0.0
    %1777 = vmatprep.subr.mxu0 0.0
    %1778 = vmatpush1.msra.mxu0 0.0
    %1779 = vmatprep.subr.mxu0 0.0
    %1780 = vmatpush1.msra.mxu0 %v1749
    %1781 = vmatprep.subr.mxu0 0.0
    %1782 = vmatpush1.msra.mxu0 %v1739
    %1783 = vmatprep.subr.mxu0 0.0
    %1784 = vmatpush2.msra.mxu0 0.0
    %1785 = vmatprep.subr.mxu0 0.0
    %1786 = vmatpush2.msra.mxu0 0.0
    %1787 = vmatprep.subr.mxu0 0.0
    %1788 = vmatpush2.msra.mxu0 0.0
    %1789 = vmatprep.subr.mxu0 0.0
    %1790 = vmatpush2.msra.mxu0 0.0
    %1791 = vmatprep.subr.mxu0 0.0
    %1792 = vmatpush2.msra.mxu0 0.0
    %1793 = vmatprep.subr.mxu0 0.0
    %1794 = vmatpush2.msra.mxu0 0.0
    %1795 = vmatprep.subr.mxu0 0.0
    %1796 = vmatpush2.msra.mxu0 0.0
    %1797 = vmatprep.subr.mxu0 0.0
    %1798 = vmatpush2.msra.mxu0 0.0
    %1799 = vmatprep.subr.mxu0 0.0
    %1800 = vmatpush2.msra.mxu0 0.0
    %1801 = vmatprep.subr.mxu0 0.0
    %1802 = vmatpush2.msra.mxu0 0.0
    %1803 = vmatprep.subr.mxu0 0.0
    %1804 = vmatpush2.msra.mxu0 0.0
    %1805 = vmatprep.subr.mxu0 0.0
    %1806 = vmatpush2.msra.mxu0 0.0
    %1807 = vmatprep.subr.mxu0 0.0
    %1808 = vmatpush2.msra.mxu0 0.0
    %1809 = vmatprep.subr.mxu0 0.0
    %1810 = vmatpush2.msra.mxu0 0.0
    %1811 = vmatprep.subr.mxu0 0.0
    %1812 = vmatpush2.msra.mxu0 0.0
    %1813 = vmatprep.subr.mxu0 0.0
    %1814 = vmatpush2.msra.mxu0 0.0
    %1815 = vmatprep.mubr.f32.mxu0 0.0
    %1816 = vmatmul.mubr.f32.gmra.mxu0 %v1744
    %v1817 = vpop.f32.mrf.mxu0
    %v1818 = vadd.f32 %v1730, %v1817
    %v1819 = vpop.f32.mrf.mxu0
    %1820 = vmatprep.mubr.f32.mxu0 0.0
    %1821 = vmatmul.mubr.f32.gmra.mxu0 %v1747
    %v1822 = vpop.f32.mrf.mxu0
    %v1823 = vadd.f32 %v1735, %v1822
    %v1824 = vpop.f32.mrf.mxu0
    %1825 = vdwg.mxu0
    %v1826 = vadd.f32 %v1423, %v1818
    %v1827 = vadd.f32 %v1428, %v1823
    %v1828 = vmul.f32 %v1826, 0.5
    %v1829 = vmul.f32 %v1827, 0.5
    %v1830 = vld [vmem:[%s31] sm:$0x1]
    %v1832 = vlaneseq
    %v1833 = vshrl.u32 %v1832, 7
    %v1834 = vsub.s32 0, %v1833
    %v1835 = vrot.slane %v1830, %v1834
    %v1837 = vadd.f32 %v1828, %v1835
    %v1838 = vadd.f32 %v1829, %v1835
    %s1839 = sld [smem:[#allocation2]]
    %s1840 = sld [smem:[#allocation2 + $0x1]]
    %v1841 = vstv %s1839
    %v1842 = vmul.f32 %v1022, %v1841
    %v1843 = vmul.f32 %v1023, %v1841
    %s1844 = ssub.f32 1.0, %s1839
    %v1845 = vstv %s1844
    %v1846 = vmul.f32 %v281, %v1845
    %v1847 = vmul.f32 %v282, %v1845
    %v1848 = vadd.f32 %v1842, %v1846
    %v1849 = vadd.f32 %v1843, %v1847
    %v1850 = vsel %vm416, %v1848, 0.0
    %1851 = vadd.xlane.f32.xlu0 %v1850
    %v1852 = vpop.xlane.xlu0 %1851
    %v1853 = vsel %vm416, %v1849, 0.0
    %1854 = vadd.xlane.f32.xlu0 %v1853
    %v1855 = vpop.xlane.xlu0 %1854
    %v1856 = vrcp.pop 32.0
    %v1857 = vmul.f32 %v1852, %v1856
    %v1858 = vmul.f32 %v1855, %v1856
    %v1859 = vsub.f32 %v1848, %v1857
    %v1860 = vsub.f32 %v1849, %v1858
    %v1861 = vmul.f32 %v1859, %v1859
    %v1862 = vmul.f32 %v1860, %v1860
    %v1863 = vsel %vm416, %v1861, 0.0
    %1864 = vadd.xlane.f32.xlu0 %v1863
    %v1865 = vpop.xlane.xlu0 %1864
    %v1866 = vsel %vm416, %v1862, 0.0
    %1867 = vadd.xlane.f32.xlu0 %v1866
    %v1868 = vpop.xlane.xlu0 %1867
    %v1869 = vmul.f32 %v1865, %v1856
    %v1870 = vmul.f32 %v1868, %v1856
    %v1871 = vadd.f32 %v1869, 1e-05
    %v1872 = vadd.f32 %v1870, 1e-05
    %v1873 = vrsqrt.pop %v1871
    %v1874 = vrsqrt.pop %v1872
    %v1875 = vmul.f32 %v1859, %v1873
    %v1876 = vmul.f32 %v1860, %v1874
    %v1877 = vld [vmem:[%s33] sm:$0x1]
    %v1879 = vlaneseq
    %v1880 = vshrl.u32 %v1879, 7
    %v1881 = vsub.s32 0, %v1880
    %v1882 = vrot.slane %v1877, %v1881
    %v1884 = vmul.f32 %v1875, %v1882
    %v1885 = vmul.f32 %v1876, %v1882
    %v1886 = vld [vmem:[%s35] sm:$0x1]
    %v1888 = vlaneseq
    %v1889 = vshrl.u32 %v1888, 7
    %v1890 = vsub.s32 0, %v1889
    %v1891 = vrot.slane %v1886, %v1890
    %v1893 = vadd.f32 %v1884, %v1891
    %v1894 = vadd.f32 %v1885, %v1891
    %v1895 = vstv %s1840
    %v1896 = vmul.f32 %v1837, %v1895
    %v1897 = vmul.f32 %v1838, %v1895
    %s1898 = ssub.f32 1.0, %s1840
    %v1899 = vstv %s1898
    %v1900 = vmul.f32 %v397, %v1899
    %v1901 = vmul.f32 %v398, %v1899
    %v1902 = vadd.f32 %v1896, %v1900
    %v1903 = vadd.f32 %v1897, %v1901
    %v1904 = vsel %vm416, %v1902, 0.0
    %1905 = vadd.xlane.f32.xlu0 %v1904
    %v1906 = vpop.xlane.xlu0 %1905
    %vm1907 = vcmask 257024
    %v1908 = vsel %vm1907, %v1903, 0.0
    %1909 = vadd.xlane.f32.xlu0 %v1908
    %v1910 = vpop.xlane.xlu0 %1909
    %v1911 = vmul.f32 %v1906, %v1856
    %v1912 = vmul.f32 %v1910, %v1856
    %v1913 = vsub.f32 %v1902, %v1911
    %v1914 = vsub.f32 %v1903, %v1912
    %v1915 = vmul.f32 %v1913, %v1913
    %v1916 = vmul.f32 %v1914, %v1914
    %v1917 = vsel %vm416, %v1915, 0.0
    %1918 = vadd.xlane.f32.xlu0 %v1917
    %v1919 = vpop.xlane.xlu0 %1918
    %v1920 = vsel %vm1907, %v1916, 0.0
    %1921 = vadd.xlane.f32.xlu0 %v1920
    %v1922 = vpop.xlane.xlu0 %1921
    %v1923 = vmul.f32 %v1919, %v1856
    %v1924 = vmul.f32 %v1922, %v1856
    %v1925 = vadd.f32 %v1923, 1e-05
    %v1926 = vadd.f32 %v1924, 1e-05
    %v1927 = vrsqrt.pop %v1925
    %v1928 = vrsqrt.pop %v1926
    %v1929 = vmul.f32 %v1913, %v1927
    %v1930 = vmul.f32 %v1914, %v1928
    %v1931 = vld [vmem:[%s37] sm:$0x1]
    %v1933 = vlaneseq
    %v1934 = vshrl.u32 %v1933, 7
    %v1935 = vsub.s32 0, %v1934
    %v1936 = vrot.slane %v1931, %v1935
    %v1938 = vmul.f32 %v1929, %v1936
    %v1939 = vmul.f32 %v1930, %v1936
    %v1940 = vld [vmem:[%s39] sm:$0x1]
    %v1942 = vlaneseq
    %v1943 = vshrl.u32 %v1942, 7
    %v1944 = vsub.s32 0, %v1943
    %v1945 = vrot.slane %v1940, %v1944
    %v1947 = vadd.f32 %v1938, %v1945
    %v1948 = vadd.f32 %v1939, %v1945
    %v1949 = vld [vmem:[%s41] sm:$0xff]
    %v1950 = vld [vmem:[%s41 + $0x8] sm:$0xff]
    %v1951 = vld [vmem:[%s41 + $0x10] sm:$0xff]
    %v1952 = vld [vmem:[%s41 + $0x18] sm:$0xff]
    %v1953 = vld [vmem:[%s43] sm:$0x1]
    %v1955 = vlaneseq
    %v1956 = vshrl.u32 %v1955, 7
    %v1957 = vsub.s32 0, %v1956
    %v1958 = vrot.slane %v1953, %v1957
    %v1961 = vsel %vm416, %v1893, 0
    %v1964 = vsel %vm416, %v1894, 0
    %1966 = vmatprep.subr.mxu0 0.0
    %1967 = vmatpush1.msra.mxu0 0.0
    %1968 = vmatprep.subr.mxu0 0.0
    %1969 = vmatpush1.msra.mxu0 0.0
    %1970 = vmatprep.subr.mxu0 0.0
    %1971 = vmatpush1.msra.mxu0 0.0
    %1972 = vmatprep.subr.mxu0 0.0
    %1973 = vmatpush1.msra.mxu0 0.0
    %1974 = vmatprep.subr.mxu0 0.0
    %1975 = vmatpush1.msra.mxu0 0.0
    %1976 = vmatprep.subr.mxu0 0.0
    %1977 = vmatpush1.msra.mxu0 0.0
    %1978 = vmatprep.subr.mxu0 0.0
    %1979 = vmatpush1.msra.mxu0 0.0
    %1980 = vmatprep.subr.mxu0 0.0
    %1981 = vmatpush1.msra.mxu0 0.0
    %1982 = vmatprep.subr.mxu0 0.0
    %1983 = vmatpush1.msra.mxu0 0.0
    %1984 = vmatprep.subr.mxu0 0.0
    %1985 = vmatpush1.msra.mxu0 0.0
    %1986 = vmatprep.subr.mxu0 0.0
    %1987 = vmatpush1.msra.mxu0 0.0
    %1988 = vmatprep.subr.mxu0 0.0
    %1989 = vmatpush1.msra.mxu0 0.0
    %1990 = vmatprep.subr.mxu0 0.0
    %1991 = vmatpush1.msra.mxu0 %v1952
    %1992 = vmatprep.subr.mxu0 0.0
    %1993 = vmatpush1.msra.mxu0 %v1951
    %1994 = vmatprep.subr.mxu0 0.0
    %1995 = vmatpush1.msra.mxu0 %v1950
    %1996 = vmatprep.subr.mxu0 0.0
    %1997 = vmatpush1.msra.mxu0 %v1949
    %1998 = vmatprep.subr.mxu0 0.0
    %1999 = vmatpush2.msra.mxu0 0.0
    %2000 = vmatprep.subr.mxu0 0.0
    %2001 = vmatpush2.msra.mxu0 0.0
    %2002 = vmatprep.subr.mxu0 0.0
    %2003 = vmatpush2.msra.mxu0 0.0
    %2004 = vmatprep.subr.mxu0 0.0
    %2005 = vmatpush2.msra.mxu0 0.0
    %2006 = vmatprep.subr.mxu0 0.0
    %2007 = vmatpush2.msra.mxu0 0.0
    %2008 = vmatprep.subr.mxu0 0.0
    %2009 = vmatpush2.msra.mxu0 0.0
    %2010 = vmatprep.subr.mxu0 0.0
    %2011 = vmatpush2.msra.mxu0 0.0
    %2012 = vmatprep.subr.mxu0 0.0
    %2013 = vmatpush2.msra.mxu0 0.0
    %2014 = vmatprep.subr.mxu0 0.0
    %2015 = vmatpush2.msra.mxu0 0.0
    %2016 = vmatprep.subr.mxu0 0.0
    %2017 = vmatpush2.msra.mxu0 0.0
    %2018 = vmatprep.subr.mxu0 0.0
    %2019 = vmatpush2.msra.mxu0 0.0
    %2020 = vmatprep.subr.mxu0 0.0
    %2021 = vmatpush2.msra.mxu0 0.0
    %2022 = vmatprep.subr.mxu0 0.0
    %2023 = vmatpush2.msra.mxu0 0.0
    %2024 = vmatprep.subr.mxu0 0.0
    %2025 = vmatpush2.msra.mxu0 0.0
    %2026 = vmatprep.subr.mxu0 0.0
    %2027 = vmatpush2.msra.mxu0 0.0
    %2028 = vmatprep.subr.mxu0 0.0
    %2029 = vmatpush2.msra.mxu0 0.0
    %2030 = vmatprep.mubr.f32.mxu0 0.0
    %2031 = vmatmul.mubr.f32.gmra.mxu0 %v1961
    %v2032 = vpop.f32.mrf.mxu0
    %v2033 = vadd.f32 %v1958, %v2032
    %v2034 = vpop.f32.mrf.mxu0
    %2035 = vmatprep.mubr.f32.mxu0 0.0
    %2036 = vmatmul.mubr.f32.gmra.mxu0 %v1964
    %v2037 = vpop.f32.mrf.mxu0
    %v2038 = vadd.f32 %v1958, %v2037
    %v2039 = vpop.f32.mrf.mxu0
    %2040 = vdwg.mxu0
    %v2041 = vld [vmem:[%s45] sm:$0xff]
    %v2042 = vld [vmem:[%s45 + $0x8] sm:$0xff]
    %v2043 = vld [vmem:[%s45 + $0x10] sm:$0xff]
    %v2044 = vld [vmem:[%s45 + $0x18] sm:$0xff]
    %v2045 = vld [vmem:[%s45 + $0x20] sm:$0xff]
    %v2046 = vld [vmem:[%s45 + $0x28] sm:$0xff]
    %v2047 = vld [vmem:[%s45 + $0x30] sm:$0xff]
    %v2048 = vld [vmem:[%s45 + $0x38] sm:$0xff]
    %v2049 = vld [vmem:[%s47] sm:$0x3]
    %v2051 = vlaneseq
    %v2052 = vshrl.u32 %v2051, 7
    %v2053 = vsub.s32 0, %v2052
    %v2054 = vrot.slane %v2049, %v2053
    %v2055 = vlaneseq
    %v2056 = vshrl.u32 %v2055, 7
    %v2057 = vsub.s32 1, %v2056
    %v2058 = vrot.slane %v2049, %v2057
    %v2062 = vsel %vm416, %v1947, 0
    %v2065 = vsel %vm416, %v1948, 0
    %2067 = vmatprep.subr.mxu0 0.0
    %2068 = vmatpush1.msra.mxu0 0.0
    %2069 = vmatprep.subr.mxu0 0.0
    %2070 = vmatpush1.msra.mxu0 0.0
    %2071 = vmatprep.subr.mxu0 0.0
    %2072 = vmatpush1.msra.mxu0 0.0
    %2073 = vmatprep.subr.mxu0 0.0
    %2074 = vmatpush1.msra.mxu0 0.0
    %2075 = vmatprep.subr.mxu0 0.0
    %2076 = vmatpush1.msra.mxu0 0.0
    %2077 = vmatprep.subr.mxu0 0.0
    %2078 = vmatpush1.msra.mxu0 0.0
    %2079 = vmatprep.subr.mxu0 0.0
    %2080 = vmatpush1.msra.mxu0 0.0
    %2081 = vmatprep.subr.mxu0 0.0
    %2082 = vmatpush1.msra.mxu0 0.0
    %2083 = vmatprep.subr.mxu0 0.0
    %2084 = vmatpush1.msra.mxu0 0.0
    %2085 = vmatprep.subr.mxu0 0.0
    %2086 = vmatpush1.msra.mxu0 0.0
    %2087 = vmatprep.subr.mxu0 0.0
    %2088 = vmatpush1.msra.mxu0 0.0
    %2089 = vmatprep.subr.mxu0 0.0
    %2090 = vmatpush1.msra.mxu0 0.0
    %2091 = vmatprep.subr.mxu0 %v2048
    %2092 = vmatpush1.msra.mxu0 %v2047
    %2093 = vmatprep.subr.mxu0 %v2046
    %2094 = vmatpush1.msra.mxu0 %v2045
    %2095 = vmatprep.subr.mxu0 %v2044
    %2096 = vmatpush1.msra.mxu0 %v2043
    %2097 = vmatprep.subr.mxu0 %v2042
    %2098 = vmatpush1.msra.mxu0 %v2041
    %2099 = vmatprep.subr.mxu0 0.0
    %2100 = vmatpush2.msra.mxu0 0.0
    %2101 = vmatprep.subr.mxu0 0.0
    %2102 = vmatpush2.msra.mxu0 0.0
    %2103 = vmatprep.subr.mxu0 0.0
    %2104 = vmatpush2.msra.mxu0 0.0
    %2105 = vmatprep.subr.mxu0 0.0
    %2106 = vmatpush2.msra.mxu0 0.0
    %2107 = vmatprep.subr.mxu0 0.0
    %2108 = vmatpush2.msra.mxu0 0.0
    %2109 = vmatprep.subr.mxu0 0.0
    %2110 = vmatpush2.msra.mxu0 0.0
    %2111 = vmatprep.subr.mxu0 0.0
    %2112 = vmatpush2.msra.mxu0 0.0
    %2113 = vmatprep.subr.mxu0 0.0
    %2114 = vmatpush2.msra.mxu0 0.0
    %2115 = vmatprep.subr.mxu0 0.0
    %2116 = vmatpush2.msra.mxu0 0.0
    %2117 = vmatprep.subr.mxu0 0.0
    %2118 = vmatpush2.msra.mxu0 0.0
    %2119 = vmatprep.subr.mxu0 0.0
    %2120 = vmatpush2.msra.mxu0 0.0
    %2121 = vmatprep.subr.mxu0 0.0
    %2122 = vmatpush2.msra.mxu0 0.0
    %2123 = vmatprep.subr.mxu0 0.0
    %2124 = vmatpush2.msra.mxu0 0.0
    %2125 = vmatprep.subr.mxu0 0.0
    %2126 = vmatpush2.msra.mxu0 0.0
    %2127 = vmatprep.subr.mxu0 0.0
    %2128 = vmatpush2.msra.mxu0 0.0
    %2129 = vmatprep.subr.mxu0 0.0
    %2130 = vmatpush2.msra.mxu0 0.0
    %2131 = vmatprep.mubr.f32.mxu0 0.0
    %2132 = vmatmul.mubr.f32.gmra.mxu0 %v2062
    %v2133 = vpop.f32.mrf.mxu0
    %v2134 = vadd.f32 %v2054, %v2133
    %v2135 = vpop.f32.mrf.mxu0
    %v2136 = vadd.f32 %v2058, %v2135
    %2137 = vmatprep.mubr.f32.mxu0 0.0
    %2138 = vmatmul.mubr.f32.gmra.mxu0 %v2065
    %v2139 = vpop.f32.mrf.mxu0
    %v2140 = vadd.f32 %v2054, %v2139
    %v2141 = vpop.f32.mrf.mxu0
    %v2142 = vadd.f32 %v2058, %v2141
    %2143 = vdwg.mxu0
    %2146 = vrot.lane.b32.xlu0 %v2134, 96
    %v2147 = vpop.permute.xlu0 %2146
    %2148 = vrot.lane.b32.xlu0 %v2140, 96
    %v2149 = vpop.permute.xlu0 %2148
    %v2151 = vsel %vm607, %v2033, 0
    %v2154 = vsel %vm607, %v2038, 0
    %v2156 = vsel %vm607, %v2147, 0
    %v2158 = vsel %vm607, %v2149, 0
    %2160 = vmatprep.subr.mxu0 0.0
    %2161 = vmatpush1.xpose.msra.mxu0 0.0
    %2162 = vmatprep.subr.mxu0 0.0
    %2163 = vmatpush1.xpose.msra.mxu0 0.0
    %2164 = vmatprep.subr.mxu0 0.0
    %2165 = vmatpush1.xpose.msra.mxu0 0.0
    %2166 = vmatprep.subr.mxu0 0.0
    %2167 = vmatpush1.xpose.msra.mxu0 0.0
    %2168 = vmatprep.subr.mxu0 0.0
    %2169 = vmatpush1.xpose.msra.mxu0 0.0
    %2170 = vmatprep.subr.mxu0 0.0
    %2171 = vmatpush1.xpose.msra.mxu0 0.0
    %2172 = vmatprep.subr.mxu0 0.0
    %2173 = vmatpush1.xpose.msra.mxu0 0.0
    %2174 = vmatprep.subr.mxu0 0.0
    %2175 = vmatpush1.xpose.msra.mxu0 0.0
    %2176 = vmatprep.subr.mxu0 0.0
    %2177 = vmatpush1.xpose.msra.mxu0 0.0
    %2178 = vmatprep.subr.mxu0 0.0
    %2179 = vmatpush1.xpose.msra.mxu0 0.0
    %2180 = vmatprep.subr.mxu0 0.0
    %2181 = vmatpush1.xpose.msra.mxu0 0.0
    %2182 = vmatprep.subr.mxu0 0.0
    %2183 = vmatpush1.xpose.msra.mxu0 0.0
    %2184 = vmatprep.subr.mxu0 0.0
    %2185 = vmatpush1.xpose.msra.mxu0 0.0
    %2186 = vmatprep.subr.mxu0 0.0
    %2187 = vmatpush1.xpose.msra.mxu0 0.0
    %2188 = vmatprep.subr.mxu0 0.0
    %2189 = vmatpush1.xpose.msra.mxu0 %v2158
    %2190 = vmatprep.subr.mxu0 0.0
    %2191 = vmatpush1.xpose.msra.mxu0 %v2156
    %2192 = vmatprep.subr.mxu0 0.0
    %2193 = vmatpush2.xpose.msra.mxu0 0.0
    %2194 = vmatprep.subr.mxu0 0.0
    %2195 = vmatpush2.xpose.msra.mxu0 0.0
    %2196 = vmatprep.subr.mxu0 0.0
    %2197 = vmatpush2.xpose.msra.mxu0 0.0
    %2198 = vmatprep.subr.mxu0 0.0
    %2199 = vmatpush2.xpose.msra.mxu0 0.0
    %2200 = vmatprep.subr.mxu0 0.0
    %2201 = vmatpush2.xpose.msra.mxu0 0.0
    %2202 = vmatprep.subr.mxu0 0.0
    %2203 = vmatpush2.xpose.msra.mxu0 0.0
    %2204 = vmatprep.subr.mxu0 0.0
    %2205 = vmatpush2.xpose.msra.mxu0 0.0
    %2206 = vmatprep.subr.mxu0 0.0
    %2207 = vmatpush2.xpose.msra.mxu0 0.0
    %2208 = vmatprep.subr.mxu0 0.0
    %2209 = vmatpush2.xpose.msra.mxu0 0.0
    %2210 = vmatprep.subr.mxu0 0.0
    %2211 = vmatpush2.xpose.msra.mxu0 0.0
    %2212 = vmatprep.subr.mxu0 0.0
    %2213 = vmatpush2.xpose.msra.mxu0 0.0
    %2214 = vmatprep.subr.mxu0 0.0
    %2215 = vmatpush2.xpose.msra.mxu0 0.0
    %2216 = vmatprep.subr.mxu0 0.0
    %2217 = vmatpush2.xpose.msra.mxu0 0.0
    %2218 = vmatprep.subr.mxu0 0.0
    %2219 = vmatpush2.xpose.msra.mxu0 0.0
    %2220 = vmatprep.subr.mxu0 0.0
    %2221 = vmatpush2.xpose.msra.mxu0 0.0
    %2222 = vmatprep.subr.mxu0 0.0
    %2223 = vmatpush2.xpose.msra.mxu0 0.0
    %2224 = vmatprep.mubr.f32.mxu0 0.0
    %2225 = vmatmul.mubr.f32.gmra.mxu0 %v2151
    %v2226 = vpop.f32.mrf.mxu0
    %v2227 = vadd.f32 0.0, %v2226
    %v2228 = vpop.f32.mrf.mxu0
    %2229 = vmatprep.mubr.f32.mxu0 0.0
    %2230 = vmatmul.mubr.f32.gmra.mxu0 %v2154
    %v2231 = vpop.f32.mrf.mxu0
    %v2232 = vadd.f32 0.0, %v2231
    %v2233 = vpop.f32.mrf.mxu0
    %2234 = vdwg.mxu0
    %v2235 = vsel %vm693, %v2227, -1e+30
    %v2236 = vsel %vm694, %v2232, -1e+30
    %v2237 = vsel %vm697, %v2235, -inf
    %2238 = vmax.xlane.f32.xlu0 %v2237
    %v2239 = vpop.xlane.xlu0 %2238
    %v2240 = vsel %vm697, %v2236, -inf
    %2241 = vmax.xlane.f32.xlu0 %v2240
    %v2242 = vpop.xlane.xlu0 %2241
    %v2243 = vsub.f32 %v2235, %v2239
    %v2244 = vsub.f32 %v2236, %v2242
    %v2245 = vmul.f32 %v2243, 1.442695
    %v2246 = vpow.pop %v2245
    %v2247 = vmul.f32 %v2244, 1.442695
    %v2248 = vpow.pop %v2247
    %v2249 = vsel %vm697, %v2246, 0.0
    %2250 = vadd.xlane.f32.xlu0 %v2249
    %v2251 = vpop.xlane.xlu0 %2250
    %v2252 = vsel %vm697, %v2248, 0.0
    %2253 = vadd.xlane.f32.xlu0 %v2252
    %v2254 = vpop.xlane.xlu0 %2253
    %v2255 = vmax.f32 %v2251, 1e-20
    %v2256 = vmax.f32 %v2254, 1e-20
    %v2257 = vrcp.pop %v2255
    %v2258 = vmul.f32 %v2246, %v2257
    %v2259 = vrcp.pop %v2256
    %v2260 = vmul.f32 %v2248, %v2259
    %2261 = vrot.lane.b32.xlu0 %v2033, 112
    %v2262 = vpop.permute.xlu0 %2261
    %2263 = vrot.lane.b32.xlu0 %v2038, 112
    %v2264 = vpop.permute.xlu0 %2263
    %2265 = vrot.lane.b32.xlu0 %v2134, 80
    %v2266 = vpop.permute.xlu0 %2265
    %2267 = vrot.lane.b32.xlu0 %v2140, 80
    %v2268 = vpop.permute.xlu0 %2267
    %v2269 = vsel %vm607, %v2262, 0
    %v2271 = vsel %vm607, %v2264, 0
    %v2273 = vsel %vm607, %v2266, 0
    %v2275 = vsel %vm607, %v2268, 0
    %2277 = vmatprep.subr.mxu0 0.0
    %2278 = vmatpush1.xpose.msra.mxu0 0.0
    %2279 = vmatprep.subr.mxu0 0.0
    %2280 = vmatpush1.xpose.msra.mxu0 0.0
    %2281 = vmatprep.subr.mxu0 0.0
    %2282 = vmatpush1.xpose.msra.mxu0 0.0
    %2283 = vmatprep.subr.mxu0 0.0
    %2284 = vmatpush1.xpose.msra.mxu0 0.0
    %2285 = vmatprep.subr.mxu0 0.0
    %2286 = vmatpush1.xpose.msra.mxu0 0.0
    %2287 = vmatprep.subr.mxu0 0.0
    %2288 = vmatpush1.xpose.msra.mxu0 0.0
    %2289 = vmatprep.subr.mxu0 0.0
    %2290 = vmatpush1.xpose.msra.mxu0 0.0
    %2291 = vmatprep.subr.mxu0 0.0
    %2292 = vmatpush1.xpose.msra.mxu0 0.0
    %2293 = vmatprep.subr.mxu0 0.0
    %2294 = vmatpush1.xpose.msra.mxu0 0.0
    %2295 = vmatprep.subr.mxu0 0.0
    %2296 = vmatpush1.xpose.msra.mxu0 0.0
    %2297 = vmatprep.subr.mxu0 0.0
    %2298 = vmatpush1.xpose.msra.mxu0 0.0
    %2299 = vmatprep.subr.mxu0 0.0
    %2300 = vmatpush1.xpose.msra.mxu0 0.0
    %2301 = vmatprep.subr.mxu0 0.0
    %2302 = vmatpush1.xpose.msra.mxu0 0.0
    %2303 = vmatprep.subr.mxu0 0.0
    %2304 = vmatpush1.xpose.msra.mxu0 0.0
    %2305 = vmatprep.subr.mxu0 0.0
    %2306 = vmatpush1.xpose.msra.mxu0 %v2275
    %2307 = vmatprep.subr.mxu0 0.0
    %2308 = vmatpush1.xpose.msra.mxu0 %v2273
    %2309 = vmatprep.subr.mxu0 0.0
    %2310 = vmatpush2.xpose.msra.mxu0 0.0
    %2311 = vmatprep.subr.mxu0 0.0
    %2312 = vmatpush2.xpose.msra.mxu0 0.0
    %2313 = vmatprep.subr.mxu0 0.0
    %2314 = vmatpush2.xpose.msra.mxu0 0.0
    %2315 = vmatprep.subr.mxu0 0.0
    %2316 = vmatpush2.xpose.msra.mxu0 0.0
    %2317 = vmatprep.subr.mxu0 0.0
    %2318 = vmatpush2.xpose.msra.mxu0 0.0
    %2319 = vmatprep.subr.mxu0 0.0
    %2320 = vmatpush2.xpose.msra.mxu0 0.0
    %2321 = vmatprep.subr.mxu0 0.0
    %2322 = vmatpush2.xpose.msra.mxu0 0.0
    %2323 = vmatprep.subr.mxu0 0.0
    %2324 = vmatpush2.xpose.msra.mxu0 0.0
    %2325 = vmatprep.subr.mxu0 0.0
    %2326 = vmatpush2.xpose.msra.mxu0 0.0
    %2327 = vmatprep.subr.mxu0 0.0
    %2328 = vmatpush2.xpose.msra.mxu0 0.0
    %2329 = vmatprep.subr.mxu0 0.0
    %2330 = vmatpush2.xpose.msra.mxu0 0.0
    %2331 = vmatprep.subr.mxu0 0.0
    %2332 = vmatpush2.xpose.msra.mxu0 0.0
    %2333 = vmatprep.subr.mxu0 0.0
    %2334 = vmatpush2.xpose.msra.mxu0 0.0
    %2335 = vmatprep.subr.mxu0 0.0
    %2336 = vmatpush2.xpose.msra.mxu0 0.0
    %2337 = vmatprep.subr.mxu0 0.0
    %2338 = vmatpush2.xpose.msra.mxu0 0.0
    %2339 = vmatprep.subr.mxu0 0.0
    %2340 = vmatpush2.xpose.msra.mxu0 0.0
    %2341 = vmatprep.mubr.f32.mxu0 0.0
    %2342 = vmatmul.mubr.f32.gmra.mxu0 %v2269
    %v2343 = vpop.f32.mrf.mxu0
    %v2344 = vadd.f32 0.0, %v2343
    %v2345 = vpop.f32.mrf.mxu0
    %2346 = vmatprep.mubr.f32.mxu0 0.0
    %2347 = vmatmul.mubr.f32.gmra.mxu0 %v2271
    %v2348 = vpop.f32.mrf.mxu0
    %v2349 = vadd.f32 0.0, %v2348
    %v2350 = vpop.f32.mrf.mxu0
    %2351 = vdwg.mxu0
    %v2352 = vsel %vm693, %v2344, -1e+30
    %v2353 = vsel %vm694, %v2349, -1e+30
    %v2354 = vsel %vm697, %v2352, -inf
    %2355 = vmax.xlane.f32.xlu0 %v2354
    %v2356 = vpop.xlane.xlu0 %2355
    %v2357 = vsel %vm697, %v2353, -inf
    %2358 = vmax.xlane.f32.xlu0 %v2357
    %v2359 = vpop.xlane.xlu0 %2358
    %v2360 = vsub.f32 %v2352, %v2356
    %v2361 = vsub.f32 %v2353, %v2359
    %v2362 = vmul.f32 %v2360, 1.442695
    %v2363 = vpow.pop %v2362
    %v2364 = vmul.f32 %v2361, 1.442695
    %v2365 = vpow.pop %v2364
    %v2366 = vsel %vm697, %v2363, 0.0
    %2367 = vadd.xlane.f32.xlu0 %v2366
    %v2368 = vpop.xlane.xlu0 %2367
    %v2369 = vsel %vm697, %v2365, 0.0
    %2370 = vadd.xlane.f32.xlu0 %v2369
    %v2371 = vpop.xlane.xlu0 %2370
    %v2372 = vmax.f32 %v2368, 1e-20
    %v2373 = vmax.f32 %v2371, 1e-20
    %v2374 = vrcp.pop %v2372
    %v2375 = vmul.f32 %v2363, %v2374
    %v2376 = vrcp.pop %v2373
    %v2377 = vmul.f32 %v2365, %v2376
    %2378 = vrot.lane.b32.xlu0 %v2134, 32
    %v2379 = vpop.permute.xlu0 %2378
    %2380 = vrot.lane.b32.xlu0 %v2140, 32
    %v2381 = vpop.permute.xlu0 %2380
    %v2384 = vsel %vm697, %v2375, 0
    %v2387 = vsel %vm697, %v2377, 0
    %v2389 = vsel %vm302, %v2381, 0
    %2391 = vmatprep.subr.mxu0 0.0
    %2392 = vmatpush1.msra.mxu0 0.0
    %2393 = vmatprep.subr.mxu0 0.0
    %2394 = vmatpush1.msra.mxu0 0.0
    %2395 = vmatprep.subr.mxu0 0.0
    %2396 = vmatpush1.msra.mxu0 0.0
    %2397 = vmatprep.subr.mxu0 0.0
    %2398 = vmatpush1.msra.mxu0 0.0
    %2399 = vmatprep.subr.mxu0 0.0
    %2400 = vmatpush1.msra.mxu0 0.0
    %2401 = vmatprep.subr.mxu0 0.0
    %2402 = vmatpush1.msra.mxu0 0.0
    %2403 = vmatprep.subr.mxu0 0.0
    %2404 = vmatpush1.msra.mxu0 0.0
    %2405 = vmatprep.subr.mxu0 0.0
    %2406 = vmatpush1.msra.mxu0 0.0
    %2407 = vmatprep.subr.mxu0 0.0
    %2408 = vmatpush1.msra.mxu0 0.0
    %2409 = vmatprep.subr.mxu0 0.0
    %2410 = vmatpush1.msra.mxu0 0.0
    %2411 = vmatprep.subr.mxu0 0.0
    %2412 = vmatpush1.msra.mxu0 0.0
    %2413 = vmatprep.subr.mxu0 0.0
    %2414 = vmatpush1.msra.mxu0 0.0
    %2415 = vmatprep.subr.mxu0 0.0
    %2416 = vmatpush1.msra.mxu0 0.0
    %2417 = vmatprep.subr.mxu0 0.0
    %2418 = vmatpush1.msra.mxu0 0.0
    %2419 = vmatprep.subr.mxu0 0.0
    %2420 = vmatpush1.msra.mxu0 %v2389
    %2421 = vmatprep.subr.mxu0 0.0
    %2422 = vmatpush1.msra.mxu0 %v2379
    %2423 = vmatprep.subr.mxu0 0.0
    %2424 = vmatpush2.msra.mxu0 0.0
    %2425 = vmatprep.subr.mxu0 0.0
    %2426 = vmatpush2.msra.mxu0 0.0
    %2427 = vmatprep.subr.mxu0 0.0
    %2428 = vmatpush2.msra.mxu0 0.0
    %2429 = vmatprep.subr.mxu0 0.0
    %2430 = vmatpush2.msra.mxu0 0.0
    %2431 = vmatprep.subr.mxu0 0.0
    %2432 = vmatpush2.msra.mxu0 0.0
    %2433 = vmatprep.subr.mxu0 0.0
    %2434 = vmatpush2.msra.mxu0 0.0
    %2435 = vmatprep.subr.mxu0 0.0
    %2436 = vmatpush2.msra.mxu0 0.0
    %2437 = vmatprep.subr.mxu0 0.0
    %2438 = vmatpush2.msra.mxu0 0.0
    %2439 = vmatprep.subr.mxu0 0.0
    %2440 = vmatpush2.msra.mxu0 0.0
    %2441 = vmatprep.subr.mxu0 0.0
    %2442 = vmatpush2.msra.mxu0 0.0
    %2443 = vmatprep.subr.mxu0 0.0
    %2444 = vmatpush2.msra.mxu0 0.0
    %2445 = vmatprep.subr.mxu0 0.0
    %2446 = vmatpush2.msra.mxu0 0.0
    %2447 = vmatprep.subr.mxu0 0.0
    %2448 = vmatpush2.msra.mxu0 0.0
    %2449 = vmatprep.subr.mxu0 0.0
    %2450 = vmatpush2.msra.mxu0 0.0
    %2451 = vmatprep.subr.mxu0 0.0
    %2452 = vmatpush2.msra.mxu0 0.0
    %2453 = vmatprep.subr.mxu0 0.0
    %2454 = vmatpush2.msra.mxu0 0.0
    %2455 = vmatprep.mubr.f32.mxu0 0.0
    %2456 = vmatmul.mubr.f32.gmra.mxu0 %v2384
    %v2457 = vpop.f32.mrf.mxu0
    %v2458 = vadd.f32 0.0, %v2457
    %v2459 = vpop.f32.mrf.mxu0
    %2460 = vmatprep.mubr.f32.mxu0 0.0
    %2461 = vmatmul.mubr.f32.gmra.mxu0 %v2387
    %v2462 = vpop.f32.mrf.mxu0
    %v2463 = vadd.f32 0.0, %v2462
    %v2464 = vpop.f32.mrf.mxu0
    %2465 = vdwg.mxu0
    %2466 = vrot.lane.b32.xlu0 %v2134, 64
    %v2467 = vpop.permute.xlu0 %2466
    %2468 = vrot.lane.b32.xlu0 %v2140, 64
    %v2469 = vpop.permute.xlu0 %2468
    %v2472 = vsel %vm697, %v2258, 0
    %v2475 = vsel %vm697, %v2260, 0
    %v2477 = vsel %vm302, %v2469, 0
    %2479 = vmatprep.subr.mxu0 0.0
    %2480 = vmatpush1.msra.mxu0 0.0
    %2481 = vmatprep.subr.mxu0 0.0
    %2482 = vmatpush1.msra.mxu0 0.0
    %2483 = vmatprep.subr.mxu0 0.0
    %2484 = vmatpush1.msra.mxu0 0.0
    %2485 = vmatprep.subr.mxu0 0.0
    %2486 = vmatpush1.msra.mxu0 0.0
    %2487 = vmatprep.subr.mxu0 0.0
    %2488 = vmatpush1.msra.mxu0 0.0
    %2489 = vmatprep.subr.mxu0 0.0
    %2490 = vmatpush1.msra.mxu0 0.0
    %2491 = vmatprep.subr.mxu0 0.0
    %2492 = vmatpush1.msra.mxu0 0.0
    %2493 = vmatprep.subr.mxu0 0.0
    %2494 = vmatpush1.msra.mxu0 0.0
    %2495 = vmatprep.subr.mxu0 0.0
    %2496 = vmatpush1.msra.mxu0 0.0
    %2497 = vmatprep.subr.mxu0 0.0
    %2498 = vmatpush1.msra.mxu0 0.0
    %2499 = vmatprep.subr.mxu0 0.0
    %2500 = vmatpush1.msra.mxu0 0.0
    %2501 = vmatprep.subr.mxu0 0.0
    %2502 = vmatpush1.msra.mxu0 0.0
    %2503 = vmatprep.subr.mxu0 0.0
    %2504 = vmatpush1.msra.mxu0 0.0
    %2505 = vmatprep.subr.mxu0 0.0
    %2506 = vmatpush1.msra.mxu0 0.0
    %2507 = vmatprep.subr.mxu0 0.0
    %2508 = vmatpush1.msra.mxu0 %v2477
    %2509 = vmatprep.subr.mxu0 0.0
    %2510 = vmatpush1.msra.mxu0 %v2467
    %2511 = vmatprep.subr.mxu0 0.0
    %2512 = vmatpush2.msra.mxu0 0.0
    %2513 = vmatprep.subr.mxu0 0.0
    %2514 = vmatpush2.msra.mxu0 0.0
    %2515 = vmatprep.subr.mxu0 0.0
    %2516 = vmatpush2.msra.mxu0 0.0
    %2517 = vmatprep.subr.mxu0 0.0
    %2518 = vmatpush2.msra.mxu0 0.0
    %2519 = vmatprep.subr.mxu0 0.0
    %2520 = vmatpush2.msra.mxu0 0.0
    %2521 = vmatprep.subr.mxu0 0.0
    %2522 = vmatpush2.msra.mxu0 0.0
    %2523 = vmatprep.subr.mxu0 0.0
    %2524 = vmatpush2.msra.mxu0 0.0
    %2525 = vmatprep.subr.mxu0 0.0
    %2526 = vmatpush2.msra.mxu0 0.0
    %2527 = vmatprep.subr.mxu0 0.0
    %2528 = vmatpush2.msra.mxu0 0.0
    %2529 = vmatprep.subr.mxu0 0.0
    %2530 = vmatpush2.msra.mxu0 0.0
    %2531 = vmatprep.subr.mxu0 0.0
    %2532 = vmatpush2.msra.mxu0 0.0
    %2533 = vmatprep.subr.mxu0 0.0
    %2534 = vmatpush2.msra.mxu0 0.0
    %2535 = vmatprep.subr.mxu0 0.0
    %2536 = vmatpush2.msra.mxu0 0.0
    %2537 = vmatprep.subr.mxu0 0.0
    %2538 = vmatpush2.msra.mxu0 0.0
    %2539 = vmatprep.subr.mxu0 0.0
    %2540 = vmatpush2.msra.mxu0 0.0
    %2541 = vmatprep.subr.mxu0 0.0
    %2542 = vmatpush2.msra.mxu0 0.0
    %2543 = vmatprep.mubr.f32.mxu0 0.0
    %2544 = vmatmul.mubr.f32.gmra.mxu0 %v2472
    %v2545 = vpop.f32.mrf.mxu0
    %v2546 = vadd.f32 %v2458, %v2545
    %v2547 = vpop.f32.mrf.mxu0
    %2548 = vmatprep.mubr.f32.mxu0 0.0
    %2549 = vmatmul.mubr.f32.gmra.mxu0 %v2475
    %v2550 = vpop.f32.mrf.mxu0
    %v2551 = vadd.f32 %v2463, %v2550
    %v2552 = vpop.f32.mrf.mxu0
    %2553 = vdwg.mxu0
    %v2554 = vld [vmem:[%s49] sm:$0x1]
    %v2556 = vlaneseq
    %v2557 = vshrl.u32 %v2556, 7
    %v2558 = vsub.s32 0, %v2557
    %v2559 = vrot.slane %v2554, %v2558
    %v2561 = vadd.f32 %v2546, %v2559
    %v2562 = vadd.f32 %v2551, %v2559
    %2563 = vrot.lane.b32.xlu0 %v2033, 96
    %v2564 = vpop.permute.xlu0 %2563
    %2565 = vrot.lane.b32.xlu0 %v2038, 96
    %v2566 = vpop.permute.xlu0 %2565
    %v2567 = vsel %vm607, %v2134, 0
    %v2569 = vsel %vm607, %v2140, 0
    %v2571 = vsel %vm607, %v2564, 0
    %v2573 = vsel %vm607, %v2566, 0
    %2575 = vmatprep.subr.mxu0 0.0
    %2576 = vmatpush1.xpose.msra.mxu0 0.0
    %2577 = vmatprep.subr.mxu0 0.0
    %2578 = vmatpush1.xpose.msra.mxu0 0.0
    %2579 = vmatprep.subr.mxu0 0.0
    %2580 = vmatpush1.xpose.msra.mxu0 0.0
    %2581 = vmatprep.subr.mxu0 0.0
    %2582 = vmatpush1.xpose.msra.mxu0 0.0
    %2583 = vmatprep.subr.mxu0 0.0
    %2584 = vmatpush1.xpose.msra.mxu0 0.0
    %2585 = vmatprep.subr.mxu0 0.0
    %2586 = vmatpush1.xpose.msra.mxu0 0.0
    %2587 = vmatprep.subr.mxu0 0.0
    %2588 = vmatpush1.xpose.msra.mxu0 0.0
    %2589 = vmatprep.subr.mxu0 0.0
    %2590 = vmatpush1.xpose.msra.mxu0 0.0
    %2591 = vmatprep.subr.mxu0 0.0
    %2592 = vmatpush1.xpose.msra.mxu0 0.0
    %2593 = vmatprep.subr.mxu0 0.0
    %2594 = vmatpush1.xpose.msra.mxu0 0.0
    %2595 = vmatprep.subr.mxu0 0.0
    %2596 = vmatpush1.xpose.msra.mxu0 0.0
    %2597 = vmatprep.subr.mxu0 0.0
    %2598 = vmatpush1.xpose.msra.mxu0 0.0
    %2599 = vmatprep.subr.mxu0 0.0
    %2600 = vmatpush1.xpose.msra.mxu0 0.0
    %2601 = vmatprep.subr.mxu0 0.0
    %2602 = vmatpush1.xpose.msra.mxu0 0.0
    %2603 = vmatprep.subr.mxu0 0.0
    %2604 = vmatpush1.xpose.msra.mxu0 %v2573
    %2605 = vmatprep.subr.mxu0 0.0
    %2606 = vmatpush1.xpose.msra.mxu0 %v2571
    %2607 = vmatprep.subr.mxu0 0.0
    %2608 = vmatpush2.xpose.msra.mxu0 0.0
    %2609 = vmatprep.subr.mxu0 0.0
    %2610 = vmatpush2.xpose.msra.mxu0 0.0
    %2611 = vmatprep.subr.mxu0 0.0
    %2612 = vmatpush2.xpose.msra.mxu0 0.0
    %2613 = vmatprep.subr.mxu0 0.0
    %2614 = vmatpush2.xpose.msra.mxu0 0.0
    %2615 = vmatprep.subr.mxu0 0.0
    %2616 = vmatpush2.xpose.msra.mxu0 0.0
    %2617 = vmatprep.subr.mxu0 0.0
    %2618 = vmatpush2.xpose.msra.mxu0 0.0
    %2619 = vmatprep.subr.mxu0 0.0
    %2620 = vmatpush2.xpose.msra.mxu0 0.0
    %2621 = vmatprep.subr.mxu0 0.0
    %2622 = vmatpush2.xpose.msra.mxu0 0.0
    %2623 = vmatprep.subr.mxu0 0.0
    %2624 = vmatpush2.xpose.msra.mxu0 0.0
    %2625 = vmatprep.subr.mxu0 0.0
    %2626 = vmatpush2.xpose.msra.mxu0 0.0
    %2627 = vmatprep.subr.mxu0 0.0
    %2628 = vmatpush2.xpose.msra.mxu0 0.0
    %2629 = vmatprep.subr.mxu0 0.0
    %2630 = vmatpush2.xpose.msra.mxu0 0.0
    %2631 = vmatprep.subr.mxu0 0.0
    %2632 = vmatpush2.xpose.msra.mxu0 0.0
    %2633 = vmatprep.subr.mxu0 0.0
    %2634 = vmatpush2.xpose.msra.mxu0 0.0
    %2635 = vmatprep.subr.mxu0 0.0
    %2636 = vmatpush2.xpose.msra.mxu0 0.0
    %2637 = vmatprep.subr.mxu0 0.0
    %2638 = vmatpush2.xpose.msra.mxu0 0.0
    %2639 = vmatprep.mubr.f32.mxu0 0.0
    %2640 = vmatmul.mubr.f32.gmra.mxu0 %v2567
    %v2641 = vpop.f32.mrf.mxu0
    %v2642 = vadd.f32 0.0, %v2641
    %v2643 = vpop.f32.mrf.mxu0
    %2644 = vmatprep.mubr.f32.mxu0 0.0
    %2645 = vmatmul.mubr.f32.gmra.mxu0 %v2569
    %v2646 = vpop.f32.mrf.mxu0
    %v2647 = vadd.f32 0.0, %v2646
    %v2648 = vpop.f32.mrf.mxu0
    %2649 = vdwg.mxu0
    %v2650 = vsel %vm1111, %v2642, -1e+30
    %v2651 = vsel %vm1112, %v2647, -1e+30
    %v2652 = vsel %vm607, %v2650, -inf
    %2653 = vmax.xlane.f32.xlu0 %v2652
    %v2654 = vpop.xlane.xlu0 %2653
    %v2655 = vsel %vm1118, %v2651, -inf
    %2656 = vmax.xlane.f32.xlu0 %v2655
    %v2657 = vpop.xlane.xlu0 %2656
    %v2658 = vsub.f32 %v2650, %v2654
    %v2659 = vsub.f32 %v2651, %v2657
    %v2660 = vmul.f32 %v2658, 1.442695
    %v2661 = vpow.pop %v2660
    %v2662 = vmul.f32 %v2659, 1.442695
    %v2663 = vpow.pop %v2662
    %v2664 = vsel %vm607, %v2661, 0.0
    %2665 = vadd.xlane.f32.xlu0 %v2664
    %v2666 = vpop.xlane.xlu0 %2665
    %v2667 = vsel %vm1118, %v2663, 0.0
    %2668 = vadd.xlane.f32.xlu0 %v2667
    %v2669 = vpop.xlane.xlu0 %2668
    %v2670 = vmax.f32 %v2666, 1e-20
    %v2671 = vmax.f32 %v2669, 1e-20
    %v2672 = vrcp.pop %v2670
    %v2673 = vmul.f32 %v2661, %v2672
    %v2674 = vrcp.pop %v2671
    %v2675 = vmul.f32 %v2663, %v2674
    %2676 = vrot.lane.b32.xlu0 %v2134, 112
    %v2677 = vpop.permute.xlu0 %2676
    %2678 = vrot.lane.b32.xlu0 %v2140, 112
    %v2679 = vpop.permute.xlu0 %2678
    %2680 = vrot.lane.b32.xlu0 %v2033, 80
    %v2681 = vpop.permute.xlu0 %2680
    %2682 = vrot.lane.b32.xlu0 %v2038, 80
    %v2683 = vpop.permute.xlu0 %2682
    %v2684 = vsel %vm607, %v2677, 0
    %v2686 = vsel %vm607, %v2679, 0
    %v2688 = vsel %vm607, %v2681, 0
    %v2690 = vsel %vm607, %v2683, 0
    %2692 = vmatprep.subr.mxu0 0.0
    %2693 = vmatpush1.xpose.msra.mxu0 0.0
    %2694 = vmatprep.subr.mxu0 0.0
    %2695 = vmatpush1.xpose.msra.mxu0 0.0
    %2696 = vmatprep.subr.mxu0 0.0
    %2697 = vmatpush1.xpose.msra.mxu0 0.0
    %2698 = vmatprep.subr.mxu0 0.0
    %2699 = vmatpush1.xpose.msra.mxu0 0.0
    %2700 = vmatprep.subr.mxu0 0.0
    %2701 = vmatpush1.xpose.msra.mxu0 0.0
    %2702 = vmatprep.subr.mxu0 0.0
    %2703 = vmatpush1.xpose.msra.mxu0 0.0
    %2704 = vmatprep.subr.mxu0 0.0
    %2705 = vmatpush1.xpose.msra.mxu0 0.0
    %2706 = vmatprep.subr.mxu0 0.0
    %2707 = vmatpush1.xpose.msra.mxu0 0.0
    %2708 = vmatprep.subr.mxu0 0.0
    %2709 = vmatpush1.xpose.msra.mxu0 0.0
    %2710 = vmatprep.subr.mxu0 0.0
    %2711 = vmatpush1.xpose.msra.mxu0 0.0
    %2712 = vmatprep.subr.mxu0 0.0
    %2713 = vmatpush1.xpose.msra.mxu0 0.0
    %2714 = vmatprep.subr.mxu0 0.0
    %2715 = vmatpush1.xpose.msra.mxu0 0.0
    %2716 = vmatprep.subr.mxu0 0.0
    %2717 = vmatpush1.xpose.msra.mxu0 0.0
    %2718 = vmatprep.subr.mxu0 0.0
    %2719 = vmatpush1.xpose.msra.mxu0 0.0
    %2720 = vmatprep.subr.mxu0 0.0
    %2721 = vmatpush1.xpose.msra.mxu0 %v2690
    %2722 = vmatprep.subr.mxu0 0.0
    %2723 = vmatpush1.xpose.msra.mxu0 %v2688
    %2724 = vmatprep.subr.mxu0 0.0
    %2725 = vmatpush2.xpose.msra.mxu0 0.0
    %2726 = vmatprep.subr.mxu0 0.0
    %2727 = vmatpush2.xpose.msra.mxu0 0.0
    %2728 = vmatprep.subr.mxu0 0.0
    %2729 = vmatpush2.xpose.msra.mxu0 0.0
    %2730 = vmatprep.subr.mxu0 0.0
    %2731 = vmatpush2.xpose.msra.mxu0 0.0
    %2732 = vmatprep.subr.mxu0 0.0
    %2733 = vmatpush2.xpose.msra.mxu0 0.0
    %2734 = vmatprep.subr.mxu0 0.0
    %2735 = vmatpush2.xpose.msra.mxu0 0.0
    %2736 = vmatprep.subr.mxu0 0.0
    %2737 = vmatpush2.xpose.msra.mxu0 0.0
    %2738 = vmatprep.subr.mxu0 0.0
    %2739 = vmatpush2.xpose.msra.mxu0 0.0
    %2740 = vmatprep.subr.mxu0 0.0
    %2741 = vmatpush2.xpose.msra.mxu0 0.0
    %2742 = vmatprep.subr.mxu0 0.0
    %2743 = vmatpush2.xpose.msra.mxu0 0.0
    %2744 = vmatprep.subr.mxu0 0.0
    %2745 = vmatpush2.xpose.msra.mxu0 0.0
    %2746 = vmatprep.subr.mxu0 0.0
    %2747 = vmatpush2.xpose.msra.mxu0 0.0
    %2748 = vmatprep.subr.mxu0 0.0
    %2749 = vmatpush2.xpose.msra.mxu0 0.0
    %2750 = vmatprep.subr.mxu0 0.0
    %2751 = vmatpush2.xpose.msra.mxu0 0.0
    %2752 = vmatprep.subr.mxu0 0.0
    %2753 = vmatpush2.xpose.msra.mxu0 0.0
    %2754 = vmatprep.subr.mxu0 0.0
    %2755 = vmatpush2.xpose.msra.mxu0 0.0
    %2756 = vmatprep.mubr.f32.mxu0 0.0
    %2757 = vmatmul.mubr.f32.gmra.mxu0 %v2684
    %v2758 = vpop.f32.mrf.mxu0
    %v2759 = vadd.f32 0.0, %v2758
    %v2760 = vpop.f32.mrf.mxu0
    %2761 = vmatprep.mubr.f32.mxu0 0.0
    %2762 = vmatmul.mubr.f32.gmra.mxu0 %v2686
    %v2763 = vpop.f32.mrf.mxu0
    %v2764 = vadd.f32 0.0, %v2763
    %v2765 = vpop.f32.mrf.mxu0
    %2766 = vdwg.mxu0
    %v2767 = vsel %vm1111, %v2759, -1e+30
    %v2768 = vsel %vm1112, %v2764, -1e+30
    %v2769 = vsel %vm607, %v2767, -inf
    %2770 = vmax.xlane.f32.xlu0 %v2769
    %v2771 = vpop.xlane.xlu0 %2770
    %v2772 = vsel %vm1118, %v2768, -inf
    %2773 = vmax.xlane.f32.xlu0 %v2772
    %v2774 = vpop.xlane.xlu0 %2773
    %v2775 = vsub.f32 %v2767, %v2771
    %v2776 = vsub.f32 %v2768, %v2774
    %v2777 = vmul.f32 %v2775, 1.442695
    %v2778 = vpow.pop %v2777
    %v2779 = vmul.f32 %v2776, 1.442695
    %v2780 = vpow.pop %v2779
    %v2781 = vsel %vm607, %v2778, 0.0
    %2782 = vadd.xlane.f32.xlu0 %v2781
    %v2783 = vpop.xlane.xlu0 %2782
    %v2784 = vsel %vm1118, %v2780, 0.0
    %2785 = vadd.xlane.f32.xlu0 %v2784
    %v2786 = vpop.xlane.xlu0 %2785
    %v2787 = vmax.f32 %v2783, 1e-20
    %v2788 = vmax.f32 %v2786, 1e-20
    %v2789 = vrcp.pop %v2787
    %v2790 = vmul.f32 %v2778, %v2789
    %v2791 = vrcp.pop %v2788
    %v2792 = vmul.f32 %v2780, %v2791
    %2793 = vrot.lane.b32.xlu0 %v2033, 32
    %v2794 = vpop.permute.xlu0 %2793
    %2795 = vrot.lane.b32.xlu0 %v2038, 32
    %v2796 = vpop.permute.xlu0 %2795
    %v2800 = vsel %vm607, %v2790, 0
    %v2803 = vsel %vm607, %v2792, 0
    %2805 = vmatprep.subr.mxu0 0.0
    %2806 = vmatpush1.msra.mxu0 0.0
    %2807 = vmatprep.subr.mxu0 0.0
    %2808 = vmatpush1.msra.mxu0 0.0
    %2809 = vmatprep.subr.mxu0 0.0
    %2810 = vmatpush1.msra.mxu0 0.0
    %2811 = vmatprep.subr.mxu0 0.0
    %2812 = vmatpush1.msra.mxu0 0.0
    %2813 = vmatprep.subr.mxu0 0.0
    %2814 = vmatpush1.msra.mxu0 0.0
    %2815 = vmatprep.subr.mxu0 0.0
    %2816 = vmatpush1.msra.mxu0 0.0
    %2817 = vmatprep.subr.mxu0 0.0
    %2818 = vmatpush1.msra.mxu0 0.0
    %2819 = vmatprep.subr.mxu0 0.0
    %2820 = vmatpush1.msra.mxu0 0.0
    %2821 = vmatprep.subr.mxu0 0.0
    %2822 = vmatpush1.msra.mxu0 0.0
    %2823 = vmatprep.subr.mxu0 0.0
    %2824 = vmatpush1.msra.mxu0 0.0
    %2825 = vmatprep.subr.mxu0 0.0
    %2826 = vmatpush1.msra.mxu0 0.0
    %2827 = vmatprep.subr.mxu0 0.0
    %2828 = vmatpush1.msra.mxu0 0.0
    %2829 = vmatprep.subr.mxu0 0.0
    %2830 = vmatpush1.msra.mxu0 0.0
    %2831 = vmatprep.subr.mxu0 0.0
    %2832 = vmatpush1.msra.mxu0 0.0
    %2833 = vmatprep.subr.mxu0 0.0
    %2834 = vmatpush1.msra.mxu0 %v2796
    %2835 = vmatprep.subr.mxu0 0.0
    %2836 = vmatpush1.msra.mxu0 %v2794
    %2837 = vmatprep.subr.mxu0 0.0
    %2838 = vmatpush2.msra.mxu0 0.0
    %2839 = vmatprep.subr.mxu0 0.0
    %2840 = vmatpush2.msra.mxu0 0.0
    %2841 = vmatprep.subr.mxu0 0.0
    %2842 = vmatpush2.msra.mxu0 0.0
    %2843 = vmatprep.subr.mxu0 0.0
    %2844 = vmatpush2.msra.mxu0 0.0
    %2845 = vmatprep.subr.mxu0 0.0
    %2846 = vmatpush2.msra.mxu0 0.0
    %2847 = vmatprep.subr.mxu0 0.0
    %2848 = vmatpush2.msra.mxu0 0.0
    %2849 = vmatprep.subr.mxu0 0.0
    %2850 = vmatpush2.msra.mxu0 0.0
    %2851 = vmatprep.subr.mxu0 0.0
    %2852 = vmatpush2.msra.mxu0 0.0
    %2853 = vmatprep.subr.mxu0 0.0
    %2854 = vmatpush2.msra.mxu0 0.0
    %2855 = vmatprep.subr.mxu0 0.0
    %2856 = vmatpush2.msra.mxu0 0.0
    %2857 = vmatprep.subr.mxu0 0.0
    %2858 = vmatpush2.msra.mxu0 0.0
    %2859 = vmatprep.subr.mxu0 0.0
    %2860 = vmatpush2.msra.mxu0 0.0
    %2861 = vmatprep.subr.mxu0 0.0
    %2862 = vmatpush2.msra.mxu0 0.0
    %2863 = vmatprep.subr.mxu0 0.0
    %2864 = vmatpush2.msra.mxu0 0.0
    %2865 = vmatprep.subr.mxu0 0.0
    %2866 = vmatpush2.msra.mxu0 0.0
    %2867 = vmatprep.subr.mxu0 0.0
    %2868 = vmatpush2.msra.mxu0 0.0
    %2869 = vmatprep.mubr.f32.mxu0 0.0
    %2870 = vmatmul.mubr.f32.gmra.mxu0 %v2800
    %v2871 = vpop.f32.mrf.mxu0
    %v2872 = vadd.f32 0.0, %v2871
    %v2873 = vpop.f32.mrf.mxu0
    %2874 = vmatprep.mubr.f32.mxu0 0.0
    %2875 = vmatmul.mubr.f32.gmra.mxu0 %v2803
    %v2876 = vpop.f32.mrf.mxu0
    %v2877 = vadd.f32 0.0, %v2876
    %v2878 = vpop.f32.mrf.mxu0
    %2879 = vdwg.mxu0
    %2880 = vrot.lane.b32.xlu0 %v2033, 64
    %v2881 = vpop.permute.xlu0 %2880
    %2882 = vrot.lane.b32.xlu0 %v2038, 64
    %v2883 = vpop.permute.xlu0 %2882
    %v2887 = vsel %vm607, %v2673, 0
    %v2890 = vsel %vm607, %v2675, 0
    %2892 = vmatprep.subr.mxu0 0.0
    %2893 = vmatpush1.msra.mxu0 0.0
    %2894 = vmatprep.subr.mxu0 0.0
    %2895 = vmatpush1.msra.mxu0 0.0
    %2896 = vmatprep.subr.mxu0 0.0
    %2897 = vmatpush1.msra.mxu0 0.0
    %2898 = vmatprep.subr.mxu0 0.0
    %2899 = vmatpush1.msra.mxu0 0.0
    %2900 = vmatprep.subr.mxu0 0.0
    %2901 = vmatpush1.msra.mxu0 0.0
    %2902 = vmatprep.subr.mxu0 0.0
    %2903 = vmatpush1.msra.mxu0 0.0
    %2904 = vmatprep.subr.mxu0 0.0
    %2905 = vmatpush1.msra.mxu0 0.0
    %2906 = vmatprep.subr.mxu0 0.0
    %2907 = vmatpush1.msra.mxu0 0.0
    %2908 = vmatprep.subr.mxu0 0.0
    %2909 = vmatpush1.msra.mxu0 0.0
    %2910 = vmatprep.subr.mxu0 0.0
    %2911 = vmatpush1.msra.mxu0 0.0
    %2912 = vmatprep.subr.mxu0 0.0
    %2913 = vmatpush1.msra.mxu0 0.0
    %2914 = vmatprep.subr.mxu0 0.0
    %2915 = vmatpush1.msra.mxu0 0.0
    %2916 = vmatprep.subr.mxu0 0.0
    %2917 = vmatpush1.msra.mxu0 0.0
    %2918 = vmatprep.subr.mxu0 0.0
    %2919 = vmatpush1.msra.mxu0 0.0
    %2920 = vmatprep.subr.mxu0 0.0
    %2921 = vmatpush1.msra.mxu0 %v2883
    %2922 = vmatprep.subr.mxu0 0.0
    %2923 = vmatpush1.msra.mxu0 %v2881
    %2924 = vmatprep.subr.mxu0 0.0
    %2925 = vmatpush2.msra.mxu0 0.0
    %2926 = vmatprep.subr.mxu0 0.0
    %2927 = vmatpush2.msra.mxu0 0.0
    %2928 = vmatprep.subr.mxu0 0.0
    %2929 = vmatpush2.msra.mxu0 0.0
    %2930 = vmatprep.subr.mxu0 0.0
    %2931 = vmatpush2.msra.mxu0 0.0
    %2932 = vmatprep.subr.mxu0 0.0
    %2933 = vmatpush2.msra.mxu0 0.0
    %2934 = vmatprep.subr.mxu0 0.0
    %2935 = vmatpush2.msra.mxu0 0.0
    %2936 = vmatprep.subr.mxu0 0.0
    %2937 = vmatpush2.msra.mxu0 0.0
    %2938 = vmatprep.subr.mxu0 0.0
    %2939 = vmatpush2.msra.mxu0 0.0
    %2940 = vmatprep.subr.mxu0 0.0
    %2941 = vmatpush2.msra.mxu0 0.0
    %2942 = vmatprep.subr.mxu0 0.0
    %2943 = vmatpush2.msra.mxu0 0.0
    %2944 = vmatprep.subr.mxu0 0.0
    %2945 = vmatpush2.msra.mxu0 0.0
    %2946 = vmatprep.subr.mxu0 0.0
    %2947 = vmatpush2.msra.mxu0 0.0
    %2948 = vmatprep.subr.mxu0 0.0
    %2949 = vmatpush2.msra.mxu0 0.0
    %2950 = vmatprep.subr.mxu0 0.0
    %2951 = vmatpush2.msra.mxu0 0.0
    %2952 = vmatprep.subr.mxu0 0.0
    %2953 = vmatpush2.msra.mxu0 0.0
    %2954 = vmatprep.subr.mxu0 0.0
    %2955 = vmatpush2.msra.mxu0 0.0
    %2956 = vmatprep.mubr.f32.mxu0 0.0
    %2957 = vmatmul.mubr.f32.gmra.mxu0 %v2887
    %v2958 = vpop.f32.mrf.mxu0
    %v2959 = vadd.f32 %v2872, %v2958
    %v2960 = vpop.f32.mrf.mxu0
    %2961 = vmatprep.mubr.f32.mxu0 0.0
    %2962 = vmatmul.mubr.f32.gmra.mxu0 %v2890
    %v2963 = vpop.f32.mrf.mxu0
    %v2964 = vadd.f32 %v2877, %v2963
    %v2965 = vpop.f32.mrf.mxu0
    %2966 = vdwg.mxu0
    %v2968 = vsel %vm607, %v2136, 0
    %v2971 = vsel %vm607, %v2142, 0
    %2973 = vmatprep.subr.mxu0 0.0
    %2974 = vmatpush1.xpose.msra.mxu0 0.0
    %2975 = vmatprep.subr.mxu0 0.0
    %2976 = vmatpush1.xpose.msra.mxu0 0.0
    %2977 = vmatprep.subr.mxu0 0.0
    %2978 = vmatpush1.xpose.msra.mxu0 0.0
    %2979 = vmatprep.subr.mxu0 0.0
    %2980 = vmatpush1.xpose.msra.mxu0 0.0
    %2981 = vmatprep.subr.mxu0 0.0
    %2982 = vmatpush1.xpose.msra.mxu0 0.0
    %2983 = vmatprep.subr.mxu0 0.0
    %2984 = vmatpush1.xpose.msra.mxu0 0.0
    %2985 = vmatprep.subr.mxu0 0.0
    %2986 = vmatpush1.xpose.msra.mxu0 0.0
    %2987 = vmatprep.subr.mxu0 0.0
    %2988 = vmatpush1.xpose.msra.mxu0 0.0
    %2989 = vmatprep.subr.mxu0 0.0
    %2990 = vmatpush1.xpose.msra.mxu0 0.0
    %2991 = vmatprep.subr.mxu0 0.0
    %2992 = vmatpush1.xpose.msra.mxu0 0.0
    %2993 = vmatprep.subr.mxu0 0.0
    %2994 = vmatpush1.xpose.msra.mxu0 0.0
    %2995 = vmatprep.subr.mxu0 0.0
    %2996 = vmatpush1.xpose.msra.mxu0 0.0
    %2997 = vmatprep.subr.mxu0 0.0
    %2998 = vmatpush1.xpose.msra.mxu0 0.0
    %2999 = vmatprep.subr.mxu0 0.0
    %3000 = vmatpush1.xpose.msra.mxu0 0.0
    %3001 = vmatprep.subr.mxu0 0.0
    %3002 = vmatpush1.xpose.msra.mxu0 %v2971
    %3003 = vmatprep.subr.mxu0 0.0
    %3004 = vmatpush1.xpose.msra.mxu0 %v2968
    %3005 = vmatprep.subr.mxu0 0.0
    %3006 = vmatpush2.xpose.msra.mxu0 0.0
    %3007 = vmatprep.subr.mxu0 0.0
    %3008 = vmatpush2.xpose.msra.mxu0 0.0
    %3009 = vmatprep.subr.mxu0 0.0
    %3010 = vmatpush2.xpose.msra.mxu0 0.0
    %3011 = vmatprep.subr.mxu0 0.0
    %3012 = vmatpush2.xpose.msra.mxu0 0.0
    %3013 = vmatprep.subr.mxu0 0.0
    %3014 = vmatpush2.xpose.msra.mxu0 0.0
    %3015 = vmatprep.subr.mxu0 0.0
    %3016 = vmatpush2.xpose.msra.mxu0 0.0
    %3017 = vmatprep.subr.mxu0 0.0
    %3018 = vmatpush2.xpose.msra.mxu0 0.0
    %3019 = vmatprep.subr.mxu0 0.0
    %3020 = vmatpush2.xpose.msra.mxu0 0.0
    %3021 = vmatprep.subr.mxu0 0.0
    %3022 = vmatpush2.xpose.msra.mxu0 0.0
    %3023 = vmatprep.subr.mxu0 0.0
    %3024 = vmatpush2.xpose.msra.mxu0 0.0
    %3025 = vmatprep.subr.mxu0 0.0
    %3026 = vmatpush2.xpose.msra.mxu0 0.0
    %3027 = vmatprep.subr.mxu0 0.0
    %3028 = vmatpush2.xpose.msra.mxu0 0.0
    %3029 = vmatprep.subr.mxu0 0.0
    %3030 = vmatpush2.xpose.msra.mxu0 0.0
    %3031 = vmatprep.subr.mxu0 0.0
    %3032 = vmatpush2.xpose.msra.mxu0 0.0
    %3033 = vmatprep.subr.mxu0 0.0
    %3034 = vmatpush2.xpose.msra.mxu0 0.0
    %3035 = vmatprep.subr.mxu0 0.0
    %3036 = vmatpush2.xpose.msra.mxu0 0.0
    %3037 = vmatprep.mubr.f32.mxu0 0.0
    %3038 = vmatmul.mubr.f32.gmra.mxu0 %v2567
    %v3039 = vpop.f32.mrf.mxu0
    %v3040 = vadd.f32 0.0, %v3039
    %v3041 = vpop.f32.mrf.mxu0
    %3042 = vmatprep.mubr.f32.mxu0 0.0
    %3043 = vmatmul.mubr.f32.gmra.mxu0 %v2569
    %v3044 = vpop.f32.mrf.mxu0
    %v3045 = vadd.f32 0.0, %v3044
    %v3046 = vpop.f32.mrf.mxu0
    %3047 = vdwg.mxu0
    %v3048 = vsel %vm1512, %v3040, -1e+30
    %v3049 = vsel %vm1513, %v3045, -1e+30
    %v3050 = vsel %vm697, %v3048, -inf
    %3051 = vmax.xlane.f32.xlu0 %v3050
    %v3052 = vpop.xlane.xlu0 %3051
    %v3053 = vsel %vm1519, %v3049, -inf
    %3054 = vmax.xlane.f32.xlu0 %v3053
    %v3055 = vpop.xlane.xlu0 %3054
    %v3056 = vsub.f32 %v3048, %v3052
    %v3057 = vsub.f32 %v3049, %v3055
    %v3058 = vmul.f32 %v3056, 1.442695
    %v3059 = vpow.pop %v3058
    %v3060 = vmul.f32 %v3057, 1.442695
    %v3061 = vpow.pop %v3060
    %v3062 = vsel %vm697, %v3059, 0.0
    %3063 = vadd.xlane.f32.xlu0 %v3062
    %v3064 = vpop.xlane.xlu0 %3063
    %v3065 = vsel %vm1519, %v3061, 0.0
    %3066 = vadd.xlane.f32.xlu0 %v3065
    %v3067 = vpop.xlane.xlu0 %3066
    %v3068 = vmax.f32 %v3064, 1e-20
    %v3069 = vmax.f32 %v3067, 1e-20
    %v3070 = vrcp.pop %v3068
    %v3071 = vmul.f32 %v3059, %v3070
    %v3072 = vrcp.pop %v3069
    %v3073 = vmul.f32 %v3061, %v3072
    %3074 = vrot.lane.b32.xlu0 %v2136, 112
    %v3075 = vpop.permute.xlu0 %3074
    %3076 = vrot.lane.b32.xlu0 %v2142, 112
    %v3077 = vpop.permute.xlu0 %3076
    %v3078 = vsel %vm607, %v3075, 0
    %v3080 = vsel %vm607, %v3077, 0
    %3082 = vmatprep.subr.mxu0 0.0
    %3083 = vmatpush1.xpose.msra.mxu0 0.0
    %3084 = vmatprep.subr.mxu0 0.0
    %3085 = vmatpush1.xpose.msra.mxu0 0.0
    %3086 = vmatprep.subr.mxu0 0.0
    %3087 = vmatpush1.xpose.msra.mxu0 0.0
    %3088 = vmatprep.subr.mxu0 0.0
    %3089 = vmatpush1.xpose.msra.mxu0 0.0
    %3090 = vmatprep.subr.mxu0 0.0
    %3091 = vmatpush1.xpose.msra.mxu0 0.0
    %3092 = vmatprep.subr.mxu0 0.0
    %3093 = vmatpush1.xpose.msra.mxu0 0.0
    %3094 = vmatprep.subr.mxu0 0.0
    %3095 = vmatpush1.xpose.msra.mxu0 0.0
    %3096 = vmatprep.subr.mxu0 0.0
    %3097 = vmatpush1.xpose.msra.mxu0 0.0
    %3098 = vmatprep.subr.mxu0 0.0
    %3099 = vmatpush1.xpose.msra.mxu0 0.0
    %3100 = vmatprep.subr.mxu0 0.0
    %3101 = vmatpush1.xpose.msra.mxu0 0.0
    %3102 = vmatprep.subr.mxu0 0.0
    %3103 = vmatpush1.xpose.msra.mxu0 0.0
    %3104 = vmatprep.subr.mxu0 0.0
    %3105 = vmatpush1.xpose.msra.mxu0 0.0
    %3106 = vmatprep.subr.mxu0 0.0
    %3107 = vmatpush1.xpose.msra.mxu0 0.0
    %3108 = vmatprep.subr.mxu0 0.0
    %3109 = vmatpush1.xpose.msra.mxu0 0.0
    %3110 = vmatprep.subr.mxu0 0.0
    %3111 = vmatpush1.xpose.msra.mxu0 %v3080
    %3112 = vmatprep.subr.mxu0 0.0
    %3113 = vmatpush1.xpose.msra.mxu0 %v3078
    %3114 = vmatprep.subr.mxu0 0.0
    %3115 = vmatpush2.xpose.msra.mxu0 0.0
    %3116 = vmatprep.subr.mxu0 0.0
    %3117 = vmatpush2.xpose.msra.mxu0 0.0
    %3118 = vmatprep.subr.mxu0 0.0
    %3119 = vmatpush2.xpose.msra.mxu0 0.0
    %3120 = vmatprep.subr.mxu0 0.0
    %3121 = vmatpush2.xpose.msra.mxu0 0.0
    %3122 = vmatprep.subr.mxu0 0.0
    %3123 = vmatpush2.xpose.msra.mxu0 0.0
    %3124 = vmatprep.subr.mxu0 0.0
    %3125 = vmatpush2.xpose.msra.mxu0 0.0
    %3126 = vmatprep.subr.mxu0 0.0
    %3127 = vmatpush2.xpose.msra.mxu0 0.0
    %3128 = vmatprep.subr.mxu0 0.0
    %3129 = vmatpush2.xpose.msra.mxu0 0.0
    %3130 = vmatprep.subr.mxu0 0.0
    %3131 = vmatpush2.xpose.msra.mxu0 0.0
    %3132 = vmatprep.subr.mxu0 0.0
    %3133 = vmatpush2.xpose.msra.mxu0 0.0
    %3134 = vmatprep.subr.mxu0 0.0
    %3135 = vmatpush2.xpose.msra.mxu0 0.0
    %3136 = vmatprep.subr.mxu0 0.0
    %3137 = vmatpush2.xpose.msra.mxu0 0.0
    %3138 = vmatprep.subr.mxu0 0.0
    %3139 = vmatpush2.xpose.msra.mxu0 0.0
    %3140 = vmatprep.subr.mxu0 0.0
    %3141 = vmatpush2.xpose.msra.mxu0 0.0
    %3142 = vmatprep.subr.mxu0 0.0
    %3143 = vmatpush2.xpose.msra.mxu0 0.0
    %3144 = vmatprep.subr.mxu0 0.0
    %3145 = vmatpush2.xpose.msra.mxu0 0.0
    %3146 = vmatprep.mubr.f32.mxu0 0.0
    %3147 = vmatmul.mubr.f32.gmra.mxu0 %v2684
    %v3148 = vpop.f32.mrf.mxu0
    %v3149 = vadd.f32 0.0, %v3148
    %v3150 = vpop.f32.mrf.mxu0
    %3151 = vmatprep.mubr.f32.mxu0 0.0
    %3152 = vmatmul.mubr.f32.gmra.mxu0 %v2686
    %v3153 = vpop.f32.mrf.mxu0
    %v3154 = vadd.f32 0.0, %v3153
    %v3155 = vpop.f32.mrf.mxu0
    %3156 = vdwg.mxu0
    %v3157 = vsel %vm1512, %v3149, -1e+30
    %v3158 = vsel %vm1513, %v3154, -1e+30
    %v3159 = vsel %vm697, %v3157, -inf
    %3160 = vmax.xlane.f32.xlu0 %v3159
    %v3161 = vpop.xlane.xlu0 %3160
    %v3162 = vsel %vm1519, %v3158, -inf
    %3163 = vmax.xlane.f32.xlu0 %v3162
    %v3164 = vpop.xlane.xlu0 %3163
    %v3165 = vsub.f32 %v3157, %v3161
    %v3166 = vsub.f32 %v3158, %v3164
    %v3167 = vmul.f32 %v3165, 1.442695
    %v3168 = vpow.pop %v3167
    %v3169 = vmul.f32 %v3166, 1.442695
    %v3170 = vpow.pop %v3169
    %v3171 = vsel %vm697, %v3168, 0.0
    %3172 = vadd.xlane.f32.xlu0 %v3171
    %v3173 = vpop.xlane.xlu0 %3172
    %v3174 = vsel %vm1519, %v3170, 0.0
    %3175 = vadd.xlane.f32.xlu0 %v3174
    %v3176 = vpop.xlane.xlu0 %3175
    %v3177 = vmax.f32 %v3173, 1e-20
    %v3178 = vmax.f32 %v3176, 1e-20
    %v3179 = vrcp.pop %v3177
    %v3180 = vmul.f32 %v3168, %v3179
    %v3181 = vrcp.pop %v3178
    %v3182 = vmul.f32 %v3170, %v3181
    %3183 = vrot.lane.b32.xlu0 %v2136, 64
    %v3184 = vpop.permute.xlu0 %3183
    %3185 = vrot.lane.b32.xlu0 %v2142, 64
    %v3186 = vpop.permute.xlu0 %3185
    %v3189 = vsel %vm697, %v3180, 0
    %v3192 = vsel %vm697, %v3182, 0
    %v3194 = vsel %vm302, %v3186, 0
    %3196 = vmatprep.subr.mxu0 0.0
    %3197 = vmatpush1.msra.mxu0 0.0
    %3198 = vmatprep.subr.mxu0 0.0
    %3199 = vmatpush1.msra.mxu0 0.0
    %3200 = vmatprep.subr.mxu0 0.0
    %3201 = vmatpush1.msra.mxu0 0.0
    %3202 = vmatprep.subr.mxu0 0.0
    %3203 = vmatpush1.msra.mxu0 0.0
    %3204 = vmatprep.subr.mxu0 0.0
    %3205 = vmatpush1.msra.mxu0 0.0
    %3206 = vmatprep.subr.mxu0 0.0
    %3207 = vmatpush1.msra.mxu0 0.0
    %3208 = vmatprep.subr.mxu0 0.0
    %3209 = vmatpush1.msra.mxu0 0.0
    %3210 = vmatprep.subr.mxu0 0.0
    %3211 = vmatpush1.msra.mxu0 0.0
    %3212 = vmatprep.subr.mxu0 0.0
    %3213 = vmatpush1.msra.mxu0 0.0
    %3214 = vmatprep.subr.mxu0 0.0
    %3215 = vmatpush1.msra.mxu0 0.0
    %3216 = vmatprep.subr.mxu0 0.0
    %3217 = vmatpush1.msra.mxu0 0.0
    %3218 = vmatprep.subr.mxu0 0.0
    %3219 = vmatpush1.msra.mxu0 0.0
    %3220 = vmatprep.subr.mxu0 0.0
    %3221 = vmatpush1.msra.mxu0 0.0
    %3222 = vmatprep.subr.mxu0 0.0
    %3223 = vmatpush1.msra.mxu0 0.0
    %3224 = vmatprep.subr.mxu0 0.0
    %3225 = vmatpush1.msra.mxu0 %v3194
    %3226 = vmatprep.subr.mxu0 0.0
    %3227 = vmatpush1.msra.mxu0 %v3184
    %3228 = vmatprep.subr.mxu0 0.0
    %3229 = vmatpush2.msra.mxu0 0.0
    %3230 = vmatprep.subr.mxu0 0.0
    %3231 = vmatpush2.msra.mxu0 0.0
    %3232 = vmatprep.subr.mxu0 0.0
    %3233 = vmatpush2.msra.mxu0 0.0
    %3234 = vmatprep.subr.mxu0 0.0
    %3235 = vmatpush2.msra.mxu0 0.0
    %3236 = vmatprep.subr.mxu0 0.0
    %3237 = vmatpush2.msra.mxu0 0.0
    %3238 = vmatprep.subr.mxu0 0.0
    %3239 = vmatpush2.msra.mxu0 0.0
    %3240 = vmatprep.subr.mxu0 0.0
    %3241 = vmatpush2.msra.mxu0 0.0
    %3242 = vmatprep.subr.mxu0 0.0
    %3243 = vmatpush2.msra.mxu0 0.0
    %3244 = vmatprep.subr.mxu0 0.0
    %3245 = vmatpush2.msra.mxu0 0.0
    %3246 = vmatprep.subr.mxu0 0.0
    %3247 = vmatpush2.msra.mxu0 0.0
    %3248 = vmatprep.subr.mxu0 0.0
    %3249 = vmatpush2.msra.mxu0 0.0
    %3250 = vmatprep.subr.mxu0 0.0
    %3251 = vmatpush2.msra.mxu0 0.0
    %3252 = vmatprep.subr.mxu0 0.0
    %3253 = vmatpush2.msra.mxu0 0.0
    %3254 = vmatprep.subr.mxu0 0.0
    %3255 = vmatpush2.msra.mxu0 0.0
    %3256 = vmatprep.subr.mxu0 0.0
    %3257 = vmatpush2.msra.mxu0 0.0
    %3258 = vmatprep.subr.mxu0 0.0
    %3259 = vmatpush2.msra.mxu0 0.0
    %3260 = vmatprep.mubr.f32.mxu0 0.0
    %3261 = vmatmul.mubr.f32.gmra.mxu0 %v3189
    %v3262 = vpop.f32.mrf.mxu0
    %v3263 = vadd.f32 0.0, %v3262
    %v3264 = vpop.f32.mrf.mxu0
    %3265 = vmatprep.mubr.f32.mxu0 0.0
    %3266 = vmatmul.mubr.f32.gmra.mxu0 %v3192
    %v3267 = vpop.f32.mrf.mxu0
    %v3268 = vadd.f32 0.0, %v3267
    %v3269 = vpop.f32.mrf.mxu0
    %3270 = vdwg.mxu0
    %3271 = vrot.lane.b32.xlu0 %v2136, 96
    %v3272 = vpop.permute.xlu0 %3271
    %3273 = vrot.lane.b32.xlu0 %v2142, 96
    %v3274 = vpop.permute.xlu0 %3273
    %v3277 = vsel %vm697, %v3071, 0
    %v3280 = vsel %vm697, %v3073, 0
    %v3282 = vsel %vm302, %v3274, 0
    %3284 = vmatprep.subr.mxu0 0.0
    %3285 = vmatpush1.msra.mxu0 0.0
    %3286 = vmatprep.subr.mxu0 0.0
    %3287 = vmatpush1.msra.mxu0 0.0
    %3288 = vmatprep.subr.mxu0 0.0
    %3289 = vmatpush1.msra.mxu0 0.0
    %3290 = vmatprep.subr.mxu0 0.0
    %3291 = vmatpush1.msra.mxu0 0.0
    %3292 = vmatprep.subr.mxu0 0.0
    %3293 = vmatpush1.msra.mxu0 0.0
    %3294 = vmatprep.subr.mxu0 0.0
    %3295 = vmatpush1.msra.mxu0 0.0
    %3296 = vmatprep.subr.mxu0 0.0
    %3297 = vmatpush1.msra.mxu0 0.0
    %3298 = vmatprep.subr.mxu0 0.0
    %3299 = vmatpush1.msra.mxu0 0.0
    %3300 = vmatprep.subr.mxu0 0.0
    %3301 = vmatpush1.msra.mxu0 0.0
    %3302 = vmatprep.subr.mxu0 0.0
    %3303 = vmatpush1.msra.mxu0 0.0
    %3304 = vmatprep.subr.mxu0 0.0
    %3305 = vmatpush1.msra.mxu0 0.0
    %3306 = vmatprep.subr.mxu0 0.0
    %3307 = vmatpush1.msra.mxu0 0.0
    %3308 = vmatprep.subr.mxu0 0.0
    %3309 = vmatpush1.msra.mxu0 0.0
    %3310 = vmatprep.subr.mxu0 0.0
    %3311 = vmatpush1.msra.mxu0 0.0
    %3312 = vmatprep.subr.mxu0 0.0
    %3313 = vmatpush1.msra.mxu0 %v3282
    %3314 = vmatprep.subr.mxu0 0.0
    %3315 = vmatpush1.msra.mxu0 %v3272
    %3316 = vmatprep.subr.mxu0 0.0
    %3317 = vmatpush2.msra.mxu0 0.0
    %3318 = vmatprep.subr.mxu0 0.0
    %3319 = vmatpush2.msra.mxu0 0.0
    %3320 = vmatprep.subr.mxu0 0.0
    %3321 = vmatpush2.msra.mxu0 0.0
    %3322 = vmatprep.subr.mxu0 0.0
    %3323 = vmatpush2.msra.mxu0 0.0
    %3324 = vmatprep.subr.mxu0 0.0
    %3325 = vmatpush2.msra.mxu0 0.0
    %3326 = vmatprep.subr.mxu0 0.0
    %3327 = vmatpush2.msra.mxu0 0.0
    %3328 = vmatprep.subr.mxu0 0.0
    %3329 = vmatpush2.msra.mxu0 0.0
    %3330 = vmatprep.subr.mxu0 0.0
    %3331 = vmatpush2.msra.mxu0 0.0
    %3332 = vmatprep.subr.mxu0 0.0
    %3333 = vmatpush2.msra.mxu0 0.0
    %3334 = vmatprep.subr.mxu0 0.0
    %3335 = vmatpush2.msra.mxu0 0.0
    %3336 = vmatprep.subr.mxu0 0.0
    %3337 = vmatpush2.msra.mxu0 0.0
    %3338 = vmatprep.subr.mxu0 0.0
    %3339 = vmatpush2.msra.mxu0 0.0
    %3340 = vmatprep.subr.mxu0 0.0
    %3341 = vmatpush2.msra.mxu0 0.0
    %3342 = vmatprep.subr.mxu0 0.0
    %3343 = vmatpush2.msra.mxu0 0.0
    %3344 = vmatprep.subr.mxu0 0.0
    %3345 = vmatpush2.msra.mxu0 0.0
    %3346 = vmatprep.subr.mxu0 0.0
    %3347 = vmatpush2.msra.mxu0 0.0
    %3348 = vmatprep.mubr.f32.mxu0 0.0
    %3349 = vmatmul.mubr.f32.gmra.mxu0 %v3277
    %v3350 = vpop.f32.mrf.mxu0
    %v3351 = vadd.f32 %v3263, %v3350
    %v3352 = vpop.f32.mrf.mxu0
    %3353 = vmatprep.mubr.f32.mxu0 0.0
    %3354 = vmatmul.mubr.f32.gmra.mxu0 %v3280
    %v3355 = vpop.f32.mrf.mxu0
    %v3356 = vadd.f32 %v3268, %v3355
    %v3357 = vpop.f32.mrf.mxu0
    %3358 = vdwg.mxu0
    %v3359 = vadd.f32 %v2959, %v3351
    %v3360 = vadd.f32 %v2964, %v3356
    %v3361 = vmul.f32 %v3359, 0.5
    %v3362 = vmul.f32 %v3360, 0.5
    %v3363 = vld [vmem:[%s51] sm:$0x1]
    %v3365 = vlaneseq
    %v3366 = vshrl.u32 %v3365, 7
    %v3367 = vsub.s32 0, %v3366
    %v3368 = vrot.slane %v3363, %v3367
    %v3370 = vadd.f32 %v3361, %v3368
    %v3371 = vadd.f32 %v3362, %v3368
    %s3372 = sld [smem:[#allocation2 + $0x2]]
    %s3373 = sld [smem:[#allocation2 + $0x3]]
    %v3374 = vstv %s3372
    %v3375 = vmul.f32 %v2561, %v3374
    %v3376 = vmul.f32 %v2562, %v3374
    %s3377 = ssub.f32 1.0, %s3372
    %v3378 = vstv %s3377
    %v3379 = vmul.f32 %v1893, %v3378
    %v3380 = vmul.f32 %v1894, %v3378
    %v3381 = vadd.f32 %v3375, %v3379
    %v3382 = vadd.f32 %v3376, %v3380
    %v3383 = vsel %vm416, %v3381, 0.0
    %3384 = vadd.xlane.f32.xlu0 %v3383
    %v3385 = vpop.xlane.xlu0 %3384
    %v3386 = vsel %vm416, %v3382, 0.0
    %3387 = vadd.xlane.f32.xlu0 %v3386
    %v3388 = vpop.xlane.xlu0 %3387
    %v3389 = vmul.f32 %v3385, %v1856
    %v3390 = vmul.f32 %v3388, %v1856
    %v3391 = vsub.f32 %v3381, %v3389
    %v3392 = vsub.f32 %v3382, %v3390
    %v3393 = vmul.f32 %v3391, %v3391
    %v3394 = vmul.f32 %v3392, %v3392
    %v3395 = vsel %vm416, %v3393, 0.0
    %3396 = vadd.xlane.f32.xlu0 %v3395
    %v3397 = vpop.xlane.xlu0 %3396
    %v3398 = vsel %vm416, %v3394, 0.0
    %3399 = vadd.xlane.f32.xlu0 %v3398
    %v3400 = vpop.xlane.xlu0 %3399
    %v3401 = vmul.f32 %v3397, %v1856
    %v3402 = vmul.f32 %v3400, %v1856
    %v3403 = vadd.f32 %v3401, 1e-05
    %v3404 = vadd.f32 %v3402, 1e-05
    %v3405 = vrsqrt.pop %v3403
    %v3406 = vrsqrt.pop %v3404
    %v3407 = vmul.f32 %v3391, %v3405
    %v3408 = vmul.f32 %v3392, %v3406
    %v3409 = vld [vmem:[%s53] sm:$0x1]
    %v3411 = vlaneseq
    %v3412 = vshrl.u32 %v3411, 7
    %v3413 = vsub.s32 0, %v3412
    %v3414 = vrot.slane %v3409, %v3413
    %v3416 = vmul.f32 %v3407, %v3414
    %v3417 = vmul.f32 %v3408, %v3414
    %v3418 = vld [vmem:[%s55] sm:$0x1]
    %v3420 = vlaneseq
    %v3421 = vshrl.u32 %v3420, 7
    %v3422 = vsub.s32 0, %v3421
    %v3423 = vrot.slane %v3418, %v3422
    %v3425 = vadd.f32 %v3416, %v3423
    %v3426 = vadd.f32 %v3417, %v3423
    %v3427 = vstv %s3373
    %v3428 = vmul.f32 %v3370, %v3427
    %v3429 = vmul.f32 %v3371, %v3427
    %s3430 = ssub.f32 1.0, %s3373
    %v3431 = vstv %s3430
    %v3432 = vmul.f32 %v1947, %v3431
    %v3433 = vmul.f32 %v1948, %v3431
    %v3434 = vadd.f32 %v3428, %v3432
    %v3435 = vadd.f32 %v3429, %v3433
    %v3436 = vsel %vm416, %v3434, 0.0
    %3437 = vadd.xlane.f32.xlu0 %v3436
    %v3438 = vpop.xlane.xlu0 %3437
    %v3439 = vsel %vm1907, %v3435, 0.0
    %3440 = vadd.xlane.f32.xlu0 %v3439
    %v3441 = vpop.xlane.xlu0 %3440
    %v3442 = vmul.f32 %v3438, %v1856
    %v3443 = vmul.f32 %v3441, %v1856
    %v3444 = vsub.f32 %v3434, %v3442
    %v3445 = vsub.f32 %v3435, %v3443
    %v3446 = vmul.f32 %v3444, %v3444
    %v3447 = vmul.f32 %v3445, %v3445
    %v3448 = vsel %vm416, %v3446, 0.0
    %3449 = vadd.xlane.f32.xlu0 %v3448
    %v3450 = vpop.xlane.xlu0 %3449
    %v3451 = vsel %vm1907, %v3447, 0.0
    %3452 = vadd.xlane.f32.xlu0 %v3451
    %v3453 = vpop.xlane.xlu0 %3452
    %v3454 = vmul.f32 %v3450, %v1856
    %v3455 = vmul.f32 %v3453, %v1856
    %v3456 = vadd.f32 %v3454, 1e-05
    %v3457 = vadd.f32 %v3455, 1e-05
    %v3458 = vrsqrt.pop %v3456
    %v3459 = vrsqrt.pop %v3457
    %v3460 = vmul.f32 %v3444, %v3458
    %v3461 = vmul.f32 %v3445, %v3459
    %v3462 = vld [vmem:[%s57] sm:$0x1]
    %v3464 = vlaneseq
    %v3465 = vshrl.u32 %v3464, 7
    %v3466 = vsub.s32 0, %v3465
    %v3467 = vrot.slane %v3462, %v3466
    %v3469 = vmul.f32 %v3460, %v3467
    %v3470 = vmul.f32 %v3461, %v3467
    %v3471 = vld [vmem:[%s59] sm:$0x1]
    %v3473 = vlaneseq
    %v3474 = vshrl.u32 %v3473, 7
    %v3475 = vsub.s32 0, %v3474
    %v3476 = vrot.slane %v3471, %v3475
    %v3478 = vadd.f32 %v3469, %v3476
    %v3479 = vadd.f32 %v3470, %v3476
    %3480 = vst.msk [vmem:[#allocation5] sm:$0xff] %vm416, %v3478
    %3481 = vst.msk [vmem:[#allocation5 + $0x8] sm:$0xf] %vm1907, %v3479
    %v3482 = vld [vmem:[%s61] sm:$0xff]
    %v3483 = vld [vmem:[%s61 + $0x8] sm:$0xff]
    %v3484 = vld [vmem:[%s61 + $0x10] sm:$0xff]
    %v3485 = vld [vmem:[%s61 + $0x18] sm:$0xff]
    %v3486 = vld [vmem:[%s63] sm:$0x1]
    %v3488 = vlaneseq
    %v3489 = vshrl.u32 %v3488, 7
    %v3490 = vsub.s32 0, %v3489
    %v3491 = vrot.slane %v3486, %v3490
    %v3494 = vsel %vm416, %v3425, 0
    %v3497 = vsel %vm416, %v3426, 0
    %3499 = vmatprep.subr.mxu0 0.0
    %3500 = vmatpush1.msra.mxu0 0.0
    %3501 = vmatprep.subr.mxu0 0.0
    %3502 = vmatpush1.msra.mxu0 0.0
    %3503 = vmatprep.subr.mxu0 0.0
    %3504 = vmatpush1.msra.mxu0 0.0
    %3505 = vmatprep.subr.mxu0 0.0
    %3506 = vmatpush1.msra.mxu0 0.0
    %3507 = vmatprep.subr.mxu0 0.0
    %3508 = vmatpush1.msra.mxu0 0.0
    %3509 = vmatprep.subr.mxu0 0.0
    %3510 = vmatpush1.msra.mxu0 0.0
    %3511 = vmatprep.subr.mxu0 0.0
    %3512 = vmatpush1.msra.mxu0 0.0
    %3513 = vmatprep.subr.mxu0 0.0
    %3514 = vmatpush1.msra.mxu0 0.0
    %3515 = vmatprep.subr.mxu0 0.0
    %3516 = vmatpush1.msra.mxu0 0.0
    %3517 = vmatprep.subr.mxu0 0.0
    %3518 = vmatpush1.msra.mxu0 0.0
    %3519 = vmatprep.subr.mxu0 0.0
    %3520 = vmatpush1.msra.mxu0 0.0
    %3521 = vmatprep.subr.mxu0 0.0
    %3522 = vmatpush1.msra.mxu0 0.0
    %3523 = vmatprep.subr.mxu0 0.0
    %3524 = vmatpush1.msra.mxu0 %v3485
    %3525 = vmatprep.subr.mxu0 0.0
    %3526 = vmatpush1.msra.mxu0 %v3484
    %3527 = vmatprep.subr.mxu0 0.0
    %3528 = vmatpush1.msra.mxu0 %v3483
    %3529 = vmatprep.subr.mxu0 0.0
    %3530 = vmatpush1.msra.mxu0 %v3482
    %3531 = vmatprep.subr.mxu0 0.0
    %3532 = vmatpush2.msra.mxu0 0.0
    %3533 = vmatprep.subr.mxu0 0.0
    %3534 = vmatpush2.msra.mxu0 0.0
    %3535 = vmatprep.subr.mxu0 0.0
    %3536 = vmatpush2.msra.mxu0 0.0
    %3537 = vmatprep.subr.mxu0 0.0
    %3538 = vmatpush2.msra.mxu0 0.0
    %3539 = vmatprep.subr.mxu0 0.0
    %3540 = vmatpush2.msra.mxu0 0.0
    %3541 = vmatprep.subr.mxu0 0.0
    %3542 = vmatpush2.msra.mxu0 0.0
    %3543 = vmatprep.subr.mxu0 0.0
    %3544 = vmatpush2.msra.mxu0 0.0
    %3545 = vmatprep.subr.mxu0 0.0
    %3546 = vmatpush2.msra.mxu0 0.0
    %3547 = vmatprep.subr.mxu0 0.0
    %3548 = vmatpush2.msra.mxu0 0.0
    %3549 = vmatprep.subr.mxu0 0.0
    %3550 = vmatpush2.msra.mxu0 0.0
    %3551 = vmatprep.subr.mxu0 0.0
    %3552 = vmatpush2.msra.mxu0 0.0
    %3553 = vmatprep.subr.mxu0 0.0
    %3554 = vmatpush2.msra.mxu0 0.0
    %3555 = vmatprep.subr.mxu0 0.0
    %3556 = vmatpush2.msra.mxu0 0.0
    %3557 = vmatprep.subr.mxu0 0.0
    %3558 = vmatpush2.msra.mxu0 0.0
    %3559 = vmatprep.subr.mxu0 0.0
    %3560 = vmatpush2.msra.mxu0 0.0
    %3561 = vmatprep.subr.mxu0 0.0
    %3562 = vmatpush2.msra.mxu0 0.0
    %3563 = vmatprep.mubr.f32.mxu0 0.0
    %3564 = vmatmul.mubr.f32.gmra.mxu0 %v3494
    %v3565 = vpop.f32.mrf.mxu0
    %v3566 = vadd.f32 %v3491, %v3565
    %v3567 = vpop.f32.mrf.mxu0
    %3568 = vmatprep.mubr.f32.mxu0 0.0
    %3569 = vmatmul.mubr.f32.gmra.mxu0 %v3497
    %v3570 = vpop.f32.mrf.mxu0
    %v3571 = vadd.f32 %v3491, %v3570
    %v3572 = vpop.f32.mrf.mxu0
    %3573 = vdwg.mxu0
    %v3574 = vld [vmem:[%s11] sm:$0x3f]
    %v3576 = vsel %vm607, %v3574, 0
    %3578 = vmatprep.subr.mxu0 0.0
    %3579 = vmatpush1.msra.mxu0 0.0
    %3580 = vmatprep.subr.mxu0 0.0
    %3581 = vmatpush1.msra.mxu0 0.0
    %3582 = vmatprep.subr.mxu0 0.0
    %3583 = vmatpush1.msra.mxu0 0.0
    %3584 = vmatprep.subr.mxu0 0.0
    %3585 = vmatpush1.msra.mxu0 0.0
    %3586 = vmatprep.subr.mxu0 0.0
    %3587 = vmatpush1.msra.mxu0 0.0
    %3588 = vmatprep.subr.mxu0 0.0
    %3589 = vmatpush1.msra.mxu0 0.0
    %3590 = vmatprep.subr.mxu0 0.0
    %3591 = vmatpush1.msra.mxu0 0.0
    %3592 = vmatprep.subr.mxu0 0.0
    %3593 = vmatpush1.msra.mxu0 0.0
    %3594 = vmatprep.subr.mxu0 0.0
    %3595 = vmatpush1.msra.mxu0 0.0
    %3596 = vmatprep.subr.mxu0 0.0
    %3597 = vmatpush1.msra.mxu0 0.0
    %3598 = vmatprep.subr.mxu0 0.0
    %3599 = vmatpush1.msra.mxu0 0.0
    %3600 = vmatprep.subr.mxu0 0.0
    %3601 = vmatpush1.msra.mxu0 0.0
    %3602 = vmatprep.subr.mxu0 0.0
    %3603 = vmatpush1.msra.mxu0 0.0
    %3604 = vmatprep.subr.mxu0 0.0
    %3605 = vmatpush1.msra.mxu0 0.0
    %3606 = vmatprep.subr.mxu0 0.0
    %3607 = vmatpush1.msra.mxu0 %v3571
    %3608 = vmatprep.subr.mxu0 0.0
    %3609 = vmatpush1.msra.mxu0 %v3566
    %3610 = vmatprep.subr.mxu0 0.0
    %3611 = vmatpush2.msra.mxu0 0.0
    %3612 = vmatprep.subr.mxu0 0.0
    %3613 = vmatpush2.msra.mxu0 0.0
    %3614 = vmatprep.subr.mxu0 0.0
    %3615 = vmatpush2.msra.mxu0 0.0
    %3616 = vmatprep.subr.mxu0 0.0
    %3617 = vmatpush2.msra.mxu0 0.0
    %3618 = vmatprep.subr.mxu0 0.0
    %3619 = vmatpush2.msra.mxu0 0.0
    %3620 = vmatprep.subr.mxu0 0.0
    %3621 = vmatpush2.msra.mxu0 0.0
    %3622 = vmatprep.subr.mxu0 0.0
    %3623 = vmatpush2.msra.mxu0 0.0
    %3624 = vmatprep.subr.mxu0 0.0
    %3625 = vmatpush2.msra.mxu0 0.0
    %3626 = vmatprep.subr.mxu0 0.0
    %3627 = vmatpush2.msra.mxu0 0.0
    %3628 = vmatprep.subr.mxu0 0.0
    %3629 = vmatpush2.msra.mxu0 0.0
    %3630 = vmatprep.subr.mxu0 0.0
    %3631 = vmatpush2.msra.mxu0 0.0
    %3632 = vmatprep.subr.mxu0 0.0
    %3633 = vmatpush2.msra.mxu0 0.0
    %3634 = vmatprep.subr.mxu0 0.0
    %3635 = vmatpush2.msra.mxu0 0.0
    %3636 = vmatprep.subr.mxu0 0.0
    %3637 = vmatpush2.msra.mxu0 0.0
    %3638 = vmatprep.subr.mxu0 0.0
    %3639 = vmatpush2.msra.mxu0 0.0
    %3640 = vmatprep.subr.mxu0 0.0
    %3641 = vmatpush2.msra.mxu0 0.0
    %3642 = vmatprep.mubr.f32.mxu0 0.0
    %3643 = vmatmul.mubr.f32.gmra.mxu0 %v3576
    %v3644 = vpop.f32.mrf.mxu0
    %v3645 = vadd.f32 0.0, %v3644
    %v3646 = vpop.f32.mrf.mxu0
    %3647 = vdwg.mxu0
    %v3648 = vld [vmem:[%s65] sm:$0xff]
    %v3649 = vld [vmem:[%s65 + $0x8] sm:$0xff]
    %v3650 = vld [vmem:[%s65 + $0x10] sm:$0xff]
    %v3651 = vld [vmem:[%s65 + $0x18] sm:$0xff]
    %v3652 = vld [vmem:[%s67] sm:$0x1]
    %v3654 = vlaneseq
    %v3655 = vshrl.u32 %v3654, 7
    %v3656 = vsub.s32 0, %v3655
    %v3657 = vrot.slane %v3652, %v3656
    %v3660 = vsel %vm416, %v3645, 0
    %3662 = vmatprep.subr.mxu0 0.0
    %3663 = vmatpush1.msra.mxu0 0.0
    %3664 = vmatprep.subr.mxu0 0.0
    %3665 = vmatpush1.msra.mxu0 0.0
    %3666 = vmatprep.subr.mxu0 0.0
    %3667 = vmatpush1.msra.mxu0 0.0
    %3668 = vmatprep.subr.mxu0 0.0
    %3669 = vmatpush1.msra.mxu0 0.0
    %3670 = vmatprep.subr.mxu0 0.0
    %3671 = vmatpush1.msra.mxu0 0.0
    %3672 = vmatprep.subr.mxu0 0.0
    %3673 = vmatpush1.msra.mxu0 0.0
    %3674 = vmatprep.subr.mxu0 0.0
    %3675 = vmatpush1.msra.mxu0 0.0
    %3676 = vmatprep.subr.mxu0 0.0
    %3677 = vmatpush1.msra.mxu0 0.0
    %3678 = vmatprep.subr.mxu0 0.0
    %3679 = vmatpush1.msra.mxu0 0.0
    %3680 = vmatprep.subr.mxu0 0.0
    %3681 = vmatpush1.msra.mxu0 0.0
    %3682 = vmatprep.subr.mxu0 0.0
    %3683 = vmatpush1.msra.mxu0 0.0
    %3684 = vmatprep.subr.mxu0 0.0
    %3685 = vmatpush1.msra.mxu0 0.0
    %3686 = vmatprep.subr.mxu0 0.0
    %3687 = vmatpush1.msra.mxu0 %v3651
    %3688 = vmatprep.subr.mxu0 0.0
    %3689 = vmatpush1.msra.mxu0 %v3650
    %3690 = vmatprep.subr.mxu0 0.0
    %3691 = vmatpush1.msra.mxu0 %v3649
    %3692 = vmatprep.subr.mxu0 0.0
    %3693 = vmatpush1.msra.mxu0 %v3648
    %3694 = vmatprep.subr.mxu0 0.0
    %3695 = vmatpush2.msra.mxu0 0.0
    %3696 = vmatprep.subr.mxu0 0.0
    %3697 = vmatpush2.msra.mxu0 0.0
    %3698 = vmatprep.subr.mxu0 0.0
    %3699 = vmatpush2.msra.mxu0 0.0
    %3700 = vmatprep.subr.mxu0 0.0
    %3701 = vmatpush2.msra.mxu0 0.0
    %3702 = vmatprep.subr.mxu0 0.0
    %3703 = vmatpush2.msra.mxu0 0.0
    %3704 = vmatprep.subr.mxu0 0.0
    %3705 = vmatpush2.msra.mxu0 0.0
    %3706 = vmatprep.subr.mxu0 0.0
    %3707 = vmatpush2.msra.mxu0 0.0
    %3708 = vmatprep.subr.mxu0 0.0
    %3709 = vmatpush2.msra.mxu0 0.0
    %3710 = vmatprep.subr.mxu0 0.0
    %3711 = vmatpush2.msra.mxu0 0.0
    %3712 = vmatprep.subr.mxu0 0.0
    %3713 = vmatpush2.msra.mxu0 0.0
    %3714 = vmatprep.subr.mxu0 0.0
    %3715 = vmatpush2.msra.mxu0 0.0
    %3716 = vmatprep.subr.mxu0 0.0
    %3717 = vmatpush2.msra.mxu0 0.0
    %3718 = vmatprep.subr.mxu0 0.0
    %3719 = vmatpush2.msra.mxu0 0.0
    %3720 = vmatprep.subr.mxu0 0.0
    %3721 = vmatpush2.msra.mxu0 0.0
    %3722 = vmatprep.subr.mxu0 0.0
    %3723 = vmatpush2.msra.mxu0 0.0
    %3724 = vmatprep.subr.mxu0 0.0
    %3725 = vmatpush2.msra.mxu0 0.0
    %3726 = vmatprep.mubr.f32.mxu0 0.0
    %3727 = vmatmul.mubr.f32.gmra.mxu0 %v3660
    %v3728 = vpop.f32.mrf.mxu0
    %v3729 = vadd.f32 %v3657, %v3728
    %v3730 = vpop.f32.mrf.mxu0
    %3731 = vdwg.mxu0
    %v3732 = vmax.f32 %v3729, 0.0
    %v3733 = vld [vmem:[%s69] sm:$0xff]
    %v3734 = vld [vmem:[%s69 + $0x8] sm:$0xff]
    %v3735 = vld [vmem:[%s71] sm:$0x1]
    %v3737 = vlaneseq
    %v3738 = vshrl.u32 %v3737, 7
    %v3739 = vsub.s32 0, %v3738
    %v3740 = vrot.slane %v3735, %v3739
    %v3743 = vsel %vm607, %v3732, 0
    %3745 = vmatprep.subr.mxu0 0.0
    %3746 = vmatpush1.msra.mxu0 0.0
    %3747 = vmatprep.subr.mxu0 0.0
    %3748 = vmatpush1.msra.mxu0 0.0
    %3749 = vmatprep.subr.mxu0 0.0
    %3750 = vmatpush1.msra.mxu0 0.0
    %3751 = vmatprep.subr.mxu0 0.0
    %3752 = vmatpush1.msra.mxu0 0.0
    %3753 = vmatprep.subr.mxu0 0.0
    %3754 = vmatpush1.msra.mxu0 0.0
    %3755 = vmatprep.subr.mxu0 0.0
    %3756 = vmatpush1.msra.mxu0 0.0
    %3757 = vmatprep.subr.mxu0 0.0
    %3758 = vmatpush1.msra.mxu0 0.0
    %3759 = vmatprep.subr.mxu0 0.0
    %3760 = vmatpush1.msra.mxu0 0.0
    %3761 = vmatprep.subr.mxu0 0.0
    %3762 = vmatpush1.msra.mxu0 0.0
    %3763 = vmatprep.subr.mxu0 0.0
    %3764 = vmatpush1.msra.mxu0 0.0
    %3765 = vmatprep.subr.mxu0 0.0
    %3766 = vmatpush1.msra.mxu0 0.0
    %3767 = vmatprep.subr.mxu0 0.0
    %3768 = vmatpush1.msra.mxu0 0.0
    %3769 = vmatprep.subr.mxu0 0.0
    %3770 = vmatpush1.msra.mxu0 0.0
    %3771 = vmatprep.subr.mxu0 0.0
    %3772 = vmatpush1.msra.mxu0 0.0
    %3773 = vmatprep.subr.mxu0 0.0
    %3774 = vmatpush1.msra.mxu0 %v3734
    %3775 = vmatprep.subr.mxu0 0.0
    %3776 = vmatpush1.msra.mxu0 %v3733
    %3777 = vmatprep.subr.mxu0 0.0
    %3778 = vmatpush2.msra.mxu0 0.0
    %3779 = vmatprep.subr.mxu0 0.0
    %3780 = vmatpush2.msra.mxu0 0.0
    %3781 = vmatprep.subr.mxu0 0.0
    %3782 = vmatpush2.msra.mxu0 0.0
    %3783 = vmatprep.subr.mxu0 0.0
    %3784 = vmatpush2.msra.mxu0 0.0
    %3785 = vmatprep.subr.mxu0 0.0
    %3786 = vmatpush2.msra.mxu0 0.0
    %3787 = vmatprep.subr.mxu0 0.0
    %3788 = vmatpush2.msra.mxu0 0.0
    %3789 = vmatprep.subr.mxu0 0.0
    %3790 = vmatpush2.msra.mxu0 0.0
    %3791 = vmatprep.subr.mxu0 0.0
    %3792 = vmatpush2.msra.mxu0 0.0
    %3793 = vmatprep.subr.mxu0 0.0
    %3794 = vmatpush2.msra.mxu0 0.0
    %3795 = vmatprep.subr.mxu0 0.0
    %3796 = vmatpush2.msra.mxu0 0.0
    %3797 = vmatprep.subr.mxu0 0.0
    %3798 = vmatpush2.msra.mxu0 0.0
    %3799 = vmatprep.subr.mxu0 0.0
    %3800 = vmatpush2.msra.mxu0 0.0
    %3801 = vmatprep.subr.mxu0 0.0
    %3802 = vmatpush2.msra.mxu0 0.0
    %3803 = vmatprep.subr.mxu0 0.0
    %3804 = vmatpush2.msra.mxu0 0.0
    %3805 = vmatprep.subr.mxu0 0.0
    %3806 = vmatpush2.msra.mxu0 0.0
    %3807 = vmatprep.subr.mxu0 0.0
    %3808 = vmatpush2.msra.mxu0 0.0
    %3809 = vmatprep.mubr.f32.mxu0 0.0
    %3810 = vmatmul.mubr.f32.gmra.mxu0 %v3743
    %v3811 = vpop.f32.mrf.mxu0
    %v3812 = vadd.f32 %v3740, %v3811
    %v3813 = vpop.f32.mrf.mxu0
    %3814 = vdwg.mxu0
    %vm3815 = vcmask 29696
    %v3816 = vsel %vm3815, %v3812, -inf
    %3817 = vmax.xlane.f32.xlu0 %v3816
    %v3818 = vpop.xlane.xlu0 %3817
    %v3819 = vsub.f32 %v3812, %v3818
    %v3820 = vmul.f32 %v3819, 1.442695
    %v3821 = vpow.pop %v3820
    %v3822 = vsel %vm3815, %v3821, 0.0
    %3823 = vadd.xlane.f32.xlu0 %v3822
    %v3824 = vpop.xlane.xlu0 %3823
    %v3825 = vlog2.pop %v3824
    %v3826 = vmul.f32 %v3825, 0.6931472
    %v3827 = vadd.f32 %v3818, %v3826
    %v3828 = vsub.f32 %v3812, %v3827
    %3829 = vst.msk [vmem:[%s75] sm:$0x3f] %vm3815, %v3828
    // Predicated region
    $region154: #{rtcs_hgt_forward_fused.1} parent=1 // pred_check
      _
    $region155: #{rtcs_hgt_forward_fused.1} parent=1 // pred_check_branch
      %3831 = sbr.rel (0) target = $region157
    $region156: #{rtcs_hgt_forward_fused.1} parent=1 // pred_region
      _
    $region157: #{rtcs_hgt_forward_fused.1} parent=1 // pred_fallthru
      _
    // Predicated region
    $region158: #{rtcs_hgt_forward_fused.1} parent=1 // pred_check
      _
    $region159: #{rtcs_hgt_forward_fused.1} parent=1 // pred_check_branch
      %3833 = sbr.rel (0) target = $region161
    $region160: #{rtcs_hgt_forward_fused.1} parent=1 // pred_region
      %s3835 = ssub.s32 256, 256
      %3836 = vsyncadd [#allocation3], %s3835
      %s3837 = sshll.u32 [#allocation5], 4
      %s3838 = int_to_ptr.vmem [resolvable:$true] %s3837
      %3843 = dma.vmem_to_hbm [thread:$0]  %s3838, 256, %s77, [#allocation3], 128, 128, 8
    $region161: #{rtcs_hgt_forward_fused.1} parent=1 // pred_fallthru
      _
    // Predicated region
    $region162: #{rtcs_hgt_forward_fused.1} parent=1 // pred_check
      _
    $region163: #{rtcs_hgt_forward_fused.1} parent=1 // pred_check_branch
      %3845 = sbr.rel (0) target = $region165
    $region164: #{rtcs_hgt_forward_fused.1} parent=1 // pred_region
      _
    $region165: #{rtcs_hgt_forward_fused.1} parent=1 // pred_fallthru
      _
    // Predicated region
    $region166: #{rtcs_hgt_forward_fused.1} parent=1 // pred_check
      _
    $region167: #{rtcs_hgt_forward_fused.1} parent=1 // pred_check_branch
      %3847 = sbr.rel (0) target = $region169
    $region168: #{rtcs_hgt_forward_fused.1} parent=1 // pred_region
      %3848 = dma.done [#allocation3], 256
    $region169: #{rtcs_hgt_forward_fused.1} parent=1 // pred_fallthru
      _
    %3849 = vsyncpa [#allocation3], 1
    %3850 = vsyncpa [#allocation4], 1

</llo_original>
